<compile_context>
chip_gen: v7x
topology: tpu7x:2x2x1
jax: 0.10.0
libtpu: 0.0.40
codegen_flags: <defaults>
</compile_context>

<pallas_src>
import jax
import jax.numpy as jnp
import numpy as np
from jax.experimental import pallas as pl
from jax.experimental.pallas import tpu as pltpu


# ----------------------------------------------------------------------------
# Kernel factory (closes over the static geometry).
# ----------------------------------------------------------------------------
def _make_kernel(Cin, Cout, H, W, Wp, HWp, Bt, relu_slope, use_HIN, eps=1e-5):
    HW = H * W
    inv_hw = 1.0 / HW
    half = Cout // 2
    taps = [(dy, dx) for dy in (-1, 0, 1) for dx in (-1, 0, 1)]

    def kernel(x_ref, w1_ref, b1_ref, w2_ref, b2_ref, idw_ref, idb_ref,
               gamma_ref, beta_ref, mrow_ref, mcol_ref, o_ref):
        mrow = mrow_ref[...]       # (1, HWp)  f32, 1.0 at real pixels, else 0
        mcol = mcol_ref[...]       # (HWp, 1)  f32, same mask as a column
        gamma = gamma_ref[...]     # (Cout, 1) f32 (second half padded with 1)
        beta = beta_ref[...]       # (Cout, 1) f32 (second half padded with 0)
        hin_ch = jax.lax.broadcasted_iota(jnp.int32, (Cout, 1), 0) < half

        def leaky(v):              # slope in [0, 1] -> max(v, slope*v)
            return jnp.maximum(v, relu_slope * v)

        def conv3x3(v, w_ref, b_ref):
            # v: (C, HWp) bf16, zero everywhere outside the real HxW interior
            # (zero halo => "same" zero-padding conv with no masks).
            acc = None
            for t, (dy, dx) in enumerate(taps):
                y = jnp.dot(w_ref[t], v, preferred_element_type=jnp.float32)
                d = dy * Wp + dx
                if d != 0:
                    y = pltpu.roll(y, shift=(-d) % HWp, axis=1)
                acc = y if acc is None else acc + y
            return acc + b_ref[...]

        for b in range(Bt):        # images packed into this grid step
            xb = x_ref[b]                                  # (Cin, HWp) bf16

            out = conv3x3(xb, w1_ref, b1_ref)              # (Cout, HWp) f32

            if use_HIN:
                # Per-image stats on the idle MXU: masked sum / sum-of-squares.
                s1 = jnp.dot(out, mcol, preferred_element_type=jnp.float32)
                s2 = jnp.dot(out * out, mcol,
                             preferred_element_type=jnp.float32)
                mean = s1 * inv_hw                          # (Cout, 1)
                var = jnp.maximum(s2 * inv_hw - mean * mean, 0.0)
                inv = jax.lax.rsqrt(var + eps)
                gi = gamma * inv
                a = jnp.where(hin_ch, gi, 1.0)              # identity on 2nd half
                c = jnp.where(hin_ch, beta - gi * mean, 0.0)
                # Affine apply fused with the halo re-zero conv_2 requires.
                h = (out * a + c) * mrow
            else:
                h = out * mrow                              # halo re-zero only

            h = leaky(h)
            hb = h.astype(jnp.bfloat16)

            out2 = leaky(conv3x3(hb, w2_ref, b2_ref))       # (Cout, HWp) f32

            ident = jnp.dot(idw_ref[...], xb,
                            preferred_element_type=jnp.float32) + idb_ref[...]

            o_ref[b] = (out2 + ident).astype(o_ref.dtype)

    return kernel


# ----------------------------------------------------------------------------
# Wrapper: halo packing, parameter packing, pallas_call.
# ----------------------------------------------------------------------------
def unet_conv_block_pallas(x, params, relu_slope=0.1, use_HIN=True,
                           images_per_step=None, out_dtype=jnp.float32):
    # x: (B, Cin, H, W) float32 (NCHW)
    B, Cin, H, W = x.shape
    Cout = params["c1w"].shape[0]
    assert Cout % 2 == 0, "HIN path assumes an even number of output channels"

    Hp, Wp = H + 2, W + 2                       # zero-halo frame
    HWhalo = Hp * Wp
    HWp = -(-HWhalo // 128) * 128               # lane-dense padded frame
    out_isz = np.dtype(out_dtype).itemsize

    # ---- images per grid step from a VMEM budget; keep G >= 2 (megacore) ----
    if images_per_step is None:
        per_img = (Cin * 2 * HWp                # x block (bf16)
                   + 4 * Cout * 4 * HWp         # f32 intermediates headroom
                   + Cout * 2 * HWp)            # bf16 conv_2 operand
        io_db = 2 * (Cin * 2 * HWp + Cout * out_isz * HWp)   # double-buffered IO
        budget = 20 * 1024 * 1024               # fits v7x's 64 MiB with margin
        bt = max(1, budget // max(per_img + io_db, 1))
        bt = min(bt, max(1, -(-B // 2)))        # >= 2 grid steps when B >= 2
        images_per_step = int(max(1, min(B, bt, 8)))
    Bt = int(images_per_step)
    G = -(-B // Bt)
    Bpad = G * Bt

    # ---- activations: bf16, zero halo, lane padded.  No transposes. --------
    xh = jnp.pad(x.astype(jnp.bfloat16),
                 ((0, Bpad - B), (0, 0), (1, 1), (1, 1)))    # (Bpad,Cin,Hp,Wp)
    xh = xh.reshape(Bpad, Cin, HWhalo)
    if HWp > HWhalo:
        xh = jnp.pad(xh, ((0, 0), (0, 0), (0, HWp - HWhalo)))

    # ---- parameters: per-tap (9, O, I) bf16 weights, f32 biases ------------
    def pack_taps(w):            # (O, I, 3, 3) -> (9, O, I); tap = (dy+1)*3+(dx+1)
        O, I = w.shape[0], w.shape[1]
        return jnp.transpose(w, (2, 3, 0, 1)).reshape(9, O, I).astype(jnp.bfloat16)

    w1 = pack_taps(params["c1w"])
    w2 = pack_taps(params["c2w"])
    idw = params["idw"][:, :, 0, 0].astype(jnp.bfloat16)
    b1 = params["c1b"].reshape(Cout, 1).astype(jnp.float32)
    b2 = params["c2b"].reshape(Cout, 1).astype(jnp.float32)
    idb = params["idb"].reshape(Cout, 1).astype(jnp.float32)
    half = Cout // 2
    gamma = jnp.concatenate(
        [params["gamma"].astype(jnp.float32), jnp.ones((Cout - half,), jnp.float32)]
    ).reshape(Cout, 1)
    beta = jnp.concatenate(
        [params["beta"].astype(jnp.float32), jnp.zeros((Cout - half,), jnp.float32)]
    ).reshape(Cout, 1)

    # real-pixel mask over one lane-padded halo frame
    pos = jnp.arange(HWp, dtype=jnp.int32)
    yy, xx = pos // Wp, pos % Wp
    real = ((pos < HWhalo) & (yy >= 1) & (yy <= H) & (xx >= 1) & (xx <= W))
    mrow = real.astype(jnp.float32).reshape(1, HWp)
    mcol = real.astype(jnp.float32).reshape(HWp, 1)

    kernel = _make_kernel(Cin, Cout, H, W, Wp, HWp, Bt, relu_slope, use_HIN)

    def rep(a):                   # full-array block, constant index map
        n = a.ndim
        return pl.BlockSpec(a.shape, lambda g, n=n: (0,) * n)

    flops = 2 * B * H * W * (9 * Cin * Cout + 9 * Cout * Cout + Cin * Cout)
    cost = pl.CostEstimate(
        flops=flops,
        transcendentals=B * Cout,
        bytes_accessed=Bpad * Cin * HWp * 2 + Bpad * Cout * HWp * out_isz)

    out = pl.pallas_call(
        kernel,
        out_shape=jax.ShapeDtypeStruct((Bpad, Cout, HWp), out_dtype),
        grid=(G,),
        in_specs=[pl.BlockSpec((Bt, Cin, HWp), lambda g: (g, 0, 0)),
                  rep(w1), rep(b1), rep(w2), rep(b2), rep(idw), rep(idb),
                  rep(gamma), rep(beta), rep(mrow), rep(mcol)],
        out_specs=pl.BlockSpec((Bt, Cout, HWp), lambda g: (g, 0, 0)),
        compiler_params=pltpu.CompilerParams(
            dimension_semantics=("parallel",),
            vmem_limit_bytes=48 * 1024 * 1024),
        cost_estimate=cost,
    )(xh, w1, b1, w2, b2, idw, idb, gamma, beta, mrow, mcol)

    # ---- unpack: slice the real HxW interior out of the halo frame ---------
    out = out[:, :, :HWhalo].reshape(Bpad, Cout, Hp, Wp)
    return out[:B, :, 1:H + 1, 1:W + 1]


# ----------------------------------------------------------------------------
# Parameters + pure-JAX reference (mirrors the PyTorch module) for validation.
# ----------------------------------------------------------------------------
def init_params(key, in_size, out_size):
    ks = jax.random.split(key, 8)
    return {
        "idw": 0.2 * jax.random.normal(ks[0], (out_size, in_size, 1, 1), jnp.float32),
        "idb": 0.1 * jax.random.normal(ks[1], (out_size,), jnp.float32),
        "c1w": 0.2 * jax.random.normal(ks[2], (out_size, in_size, 3, 3), jnp.float32),
        "c1b": 0.1 * jax.random.normal(ks[3], (out_size,), jnp.float32),
        "c2w": 0.2 * jax.random.normal(ks[4], (out_size, out_size, 3, 3), jnp.float32),
        "c2b": 0.1 * jax.random.normal(ks[5], (out_size,), jnp.float32),
        "gamma": 1.0 + 0.1 * jax.random.normal(ks[6], (out_size // 2,), jnp.float32),
        "beta": 0.1 * jax.random.normal(ks[7], (out_size // 2,), jnp.float32),
    }


def ref_unet_conv_block(x, p, slope=0.1):
    def conv(v, w, b, pad):
        out = jax.lax.conv_general_dilated(
            v, w, (1, 1), ((pad, pad), (pad, pad)),
            dimension_numbers=("NCHW", "OIHW", "NCHW"),
            precision=jax.lax.Precision.HIGHEST)
        return out + b[None, :, None, None]

    def leaky(v):
        return jnp.where(v >= 0, v, slope * v)

    out = conv(x, p["c1w"], p["c1b"], 1)
    half = out.shape[1] // 2
    o1, o2 = out[:, :half], out[:, half:]
    m = o1.mean(axis=(2, 3), keepdims=True)
    var = ((o1 - m) ** 2).mean(axis=(2, 3), keepdims=True)
    o1 = (o1 - m) / jnp.sqrt(var + 1e-5)
    o1 = o1 * p["gamma"][None, :, None, None] + p["beta"][None, :, None, None]
    out = leaky(jnp.concatenate([o1, o2], axis=1))
    out = leaky(conv(out, p["c2w"], p["c2b"], 1))
    return out + conv(x, p["idw"], p["idb"], 0)


# ----------------------------------------------------------------------------
if __name__ == "__main__":
    B, Cin, Cout, H, W = 2, 4, 4, 16, 16
    key = jax.random.PRNGKey(0)
    kx, kp = jax.random.split(key)
    x = jax.random.normal(kx, (B, Cin, H, W), jnp.float32)
    params = init_params(kp, Cin, Cout)

    out = unet_conv_block_pallas(x, params)
    out = jax.block_until_ready(out)

    ref = ref_unet_conv_block(x, params)
    max_err = float(jnp.max(jnp.abs(out - ref)))
    # bf16 MXU operands vs HIGHEST-precision f32 reference
    assert max_err < 5e-2, f"max abs diff too large: {max_err}"
    print("KERNEL_OK")
</pallas_src>

<mosaic_0001>
module attributes {stable_mosaic.version = 11 : i64} {
  func.func @kernel(%arg0: i32, %arg1: memref<1x4x384xbf16, #tpu.memory_space<vmem>>, %arg2: memref<9x4x4xbf16, #tpu.memory_space<vmem>>, %arg3: memref<4x1xf32, #tpu.memory_space<vmem>>, %arg4: memref<9x4x4xbf16, #tpu.memory_space<vmem>>, %arg5: memref<4x1xf32, #tpu.memory_space<vmem>>, %arg6: memref<4x4xbf16, #tpu.memory_space<vmem>>, %arg7: memref<4x1xf32, #tpu.memory_space<vmem>>, %arg8: memref<4x1xf32, #tpu.memory_space<vmem>>, %arg9: memref<4x1xf32, #tpu.memory_space<vmem>>, %arg10: memref<1x384xf32, #tpu.memory_space<vmem>>, %arg11: memref<384x1xf32, #tpu.memory_space<vmem>>, %arg12: memref<1x4x384xf32, #tpu.memory_space<vmem>>) attributes {dimension_semantics = [#tpu.dimension_semantics<parallel>], iteration_bounds = array<i64: 2>, scalar_prefetch = 0 : i64, scratch_operands = 0 : i64, tpu.core_type = #tpu.core_type<tc>, window_params = [{transform_indices = @transform_0, window_bounds = array<i64: 1, 4, 384>}, {pipeline_mode = #tpu.pipeline_mode<synchronous>, transform_indices = @transform_1, window_bounds = array<i64: 9, 4, 4>}, {pipeline_mode = #tpu.pipeline_mode<synchronous>, transform_indices = @transform_2, window_bounds = array<i64: 4, 1>}, {pipeline_mode = #tpu.pipeline_mode<synchronous>, transform_indices = @transform_3, window_bounds = array<i64: 9, 4, 4>}, {pipeline_mode = #tpu.pipeline_mode<synchronous>, transform_indices = @transform_4, window_bounds = array<i64: 4, 1>}, {pipeline_mode = #tpu.pipeline_mode<synchronous>, transform_indices = @transform_5, window_bounds = array<i64: 4, 4>}, {pipeline_mode = #tpu.pipeline_mode<synchronous>, transform_indices = @transform_6, window_bounds = array<i64: 4, 1>}, {pipeline_mode = #tpu.pipeline_mode<synchronous>, transform_indices = @transform_7, window_bounds = array<i64: 4, 1>}, {pipeline_mode = #tpu.pipeline_mode<synchronous>, transform_indices = @transform_8, window_bounds = array<i64: 4, 1>}, {pipeline_mode = #tpu.pipeline_mode<synchronous>, transform_indices = @transform_9, window_bounds = array<i64: 1, 384>}, {pipeline_mode = #tpu.pipeline_mode<synchronous>, transform_indices = @transform_10, window_bounds = array<i64: 384, 1>}, {transform_indices = @transform_11, window_bounds = array<i64: 1, 4, 384>}]} {
    %c0 = arith.constant 0 : index
    %c0_0 = arith.constant 0 : index
    %0 = vector.load %arg10[%c0, %c0_0] : memref<1x384xf32, #tpu.memory_space<vmem>>, vector<1x384xf32>
    %c0_1 = arith.constant 0 : index
    %c0_2 = arith.constant 0 : index
    %1 = vector.load %arg11[%c0_1, %c0_2] : memref<384x1xf32, #tpu.memory_space<vmem>>, vector<384x1xf32>
    %c0_3 = arith.constant 0 : index
    %c0_4 = arith.constant 0 : index
    %2 = vector.load %arg8[%c0_3, %c0_4] : memref<4x1xf32, #tpu.memory_space<vmem>>, vector<4x1xf32>
    %c0_5 = arith.constant 0 : index
    %c0_6 = arith.constant 0 : index
    %3 = vector.load %arg9[%c0_5, %c0_6] : memref<4x1xf32, #tpu.memory_space<vmem>>, vector<4x1xf32>
    %4 = tpu.iota {dimensions = array<i32: 0>} : vector<4x1xi32>
    %c2_i32 = arith.constant 2 : i32
    %5 = vector.broadcast %c2_i32 : i32 to vector<4x1xi32>
    %6 = arith.cmpi slt, %4, %5 : vector<4x1xi32>
    %c0_7 = arith.constant 0 : index
    %c0_8 = arith.constant 0 : index
    %c0_9 = arith.constant 0 : index
    %7 = vector.load %arg1[%c0_7, %c0_8, %c0_9] : memref<1x4x384xbf16, #tpu.memory_space<vmem>>, vector<1x4x384xbf16>
    %8 = vector.shape_cast %7 : vector<1x4x384xbf16> to vector<4x384xbf16>
    %c0_10 = arith.constant 0 : index
    %c0_11 = arith.constant 0 : index
    %c0_12 = arith.constant 0 : index
    %9 = vector.load %arg2[%c0_10, %c0_11, %c0_12] : memref<9x4x4xbf16, #tpu.memory_space<vmem>>, vector<1x4x4xbf16>
    %10 = vector.shape_cast %9 : vector<1x4x4xbf16> to vector<4x4xbf16>
    %cst = arith.constant dense<0.000000e+00> : vector<4x384xf32>
    %11 = tpu.matmul %10, %8, %cst {dimension_numbers = #tpu.dot_dimension_numbers<[1], [0], [0], [1], [0, 0, 1, 1], [], []>} : vector<4x4xbf16>, vector<4x384xbf16>, vector<4x384xf32> -> vector<4x384xf32>
    %c19_i32 = arith.constant 19 : i32
    %12 = tpu.dynamic_rotate %11 by %c19_i32 dim 1 : vector<4x384xf32>, i32 -> vector<4x384xf32>
    %c1 = arith.constant 1 : index
    %c0_13 = arith.constant 0 : index
    %c0_14 = arith.constant 0 : index
    %13 = vector.load %arg2[%c1, %c0_13, %c0_14] : memref<9x4x4xbf16, #tpu.memory_space<vmem>>, vector<1x4x4xbf16>
    %14 = vector.shape_cast %13 : vector<1x4x4xbf16> to vector<4x4xbf16>
    %cst_15 = arith.constant dense<0.000000e+00> : vector<4x384xf32>
    %15 = tpu.matmul %14, %8, %cst_15 {dimension_numbers = #tpu.dot_dimension_numbers<[1], [0], [0], [1], [0, 0, 1, 1], [], []>} : vector<4x4xbf16>, vector<4x384xbf16>, vector<4x384xf32> -> vector<4x384xf32>
    %c18_i32 = arith.constant 18 : i32
    %16 = tpu.dynamic_rotate %15 by %c18_i32 dim 1 : vector<4x384xf32>, i32 -> vector<4x384xf32>
    %17 = arith.addf %12, %16 : vector<4x384xf32>
    %c2 = arith.constant 2 : index
    %c0_16 = arith.constant 0 : index
    %c0_17 = arith.constant 0 : index
    %18 = vector.load %arg2[%c2, %c0_16, %c0_17] : memref<9x4x4xbf16, #tpu.memory_space<vmem>>, vector<1x4x4xbf16>
    %19 = vector.shape_cast %18 : vector<1x4x4xbf16> to vector<4x4xbf16>
    %cst_18 = arith.constant dense<0.000000e+00> : vector<4x384xf32>
    %20 = tpu.matmul %19, %8, %cst_18 {dimension_numbers = #tpu.dot_dimension_numbers<[1], [0], [0], [1], [0, 0, 1, 1], [], []>} : vector<4x4xbf16>, vector<4x384xbf16>, vector<4x384xf32> -> vector<4x384xf32>
    %c17_i32 = arith.constant 17 : i32
    %21 = tpu.dynamic_rotate %20 by %c17_i32 dim 1 : vector<4x384xf32>, i32 -> vector<4x384xf32>
    %22 = arith.addf %17, %21 : vector<4x384xf32>
    %c3 = arith.constant 3 : index
    %c0_19 = arith.constant 0 : index
    %c0_20 = arith.constant 0 : index
    %23 = vector.load %arg2[%c3, %c0_19, %c0_20] : memref<9x4x4xbf16, #tpu.memory_space<vmem>>, vector<1x4x4xbf16>
    %24 = vector.shape_cast %23 : vector<1x4x4xbf16> to vector<4x4xbf16>
    %cst_21 = arith.constant dense<0.000000e+00> : vector<4x384xf32>
    %25 = tpu.matmul %24, %8, %cst_21 {dimension_numbers = #tpu.dot_dimension_numbers<[1], [0], [0], [1], [0, 0, 1, 1], [], []>} : vector<4x4xbf16>, vector<4x384xbf16>, vector<4x384xf32> -> vector<4x384xf32>
    %c1_i32 = arith.constant 1 : i32
    %26 = tpu.dynamic_rotate %25 by %c1_i32 dim 1 : vector<4x384xf32>, i32 -> vector<4x384xf32>
    %27 = arith.addf %22, %26 : vector<4x384xf32>
    %c4 = arith.constant 4 : index
    %c0_22 = arith.constant 0 : index
    %c0_23 = arith.constant 0 : index
    %28 = vector.load %arg2[%c4, %c0_22, %c0_23] : memref<9x4x4xbf16, #tpu.memory_space<vmem>>, vector<1x4x4xbf16>
    %29 = vector.shape_cast %28 : vector<1x4x4xbf16> to vector<4x4xbf16>
    %cst_24 = arith.constant dense<0.000000e+00> : vector<4x384xf32>
    %30 = tpu.matmul %29, %8, %cst_24 {dimension_numbers = #tpu.dot_dimension_numbers<[1], [0], [0], [1], [0, 0, 1, 1], [], []>} : vector<4x4xbf16>, vector<4x384xbf16>, vector<4x384xf32> -> vector<4x384xf32>
    %31 = arith.addf %27, %30 : vector<4x384xf32>
    %c5 = arith.constant 5 : index
    %c0_25 = arith.constant 0 : index
    %c0_26 = arith.constant 0 : index
    %32 = vector.load %arg2[%c5, %c0_25, %c0_26] : memref<9x4x4xbf16, #tpu.memory_space<vmem>>, vector<1x4x4xbf16>
    %33 = vector.shape_cast %32 : vector<1x4x4xbf16> to vector<4x4xbf16>
    %cst_27 = arith.constant dense<0.000000e+00> : vector<4x384xf32>
    %34 = tpu.matmul %33, %8, %cst_27 {dimension_numbers = #tpu.dot_dimension_numbers<[1], [0], [0], [1], [0, 0, 1, 1], [], []>} : vector<4x4xbf16>, vector<4x384xbf16>, vector<4x384xf32> -> vector<4x384xf32>
    %c383_i32 = arith.constant 383 : i32
    %35 = tpu.dynamic_rotate %34 by %c383_i32 dim 1 : vector<4x384xf32>, i32 -> vector<4x384xf32>
    %36 = arith.addf %31, %35 : vector<4x384xf32>
    %c6 = arith.constant 6 : index
    %c0_28 = arith.constant 0 : index
    %c0_29 = arith.constant 0 : index
    %37 = vector.load %arg2[%c6, %c0_28, %c0_29] : memref<9x4x4xbf16, #tpu.memory_space<vmem>>, vector<1x4x4xbf16>
    %38 = vector.shape_cast %37 : vector<1x4x4xbf16> to vector<4x4xbf16>
    %cst_30 = arith.constant dense<0.000000e+00> : vector<4x384xf32>
    %39 = tpu.matmul %38, %8, %cst_30 {dimension_numbers = #tpu.dot_dimension_numbers<[1], [0], [0], [1], [0, 0, 1, 1], [], []>} : vector<4x4xbf16>, vector<4x384xbf16>, vector<4x384xf32> -> vector<4x384xf32>
    %c367_i32 = arith.constant 367 : i32
    %40 = tpu.dynamic_rotate %39 by %c367_i32 dim 1 : vector<4x384xf32>, i32 -> vector<4x384xf32>
    %41 = arith.addf %36, %40 : vector<4x384xf32>
    %c7 = arith.constant 7 : index
    %c0_31 = arith.constant 0 : index
    %c0_32 = arith.constant 0 : index
    %42 = vector.load %arg2[%c7, %c0_31, %c0_32] : memref<9x4x4xbf16, #tpu.memory_space<vmem>>, vector<1x4x4xbf16>
    %43 = vector.shape_cast %42 : vector<1x4x4xbf16> to vector<4x4xbf16>
    %cst_33 = arith.constant dense<0.000000e+00> : vector<4x384xf32>
    %44 = tpu.matmul %43, %8, %cst_33 {dimension_numbers = #tpu.dot_dimension_numbers<[1], [0], [0], [1], [0, 0, 1, 1], [], []>} : vector<4x4xbf16>, vector<4x384xbf16>, vector<4x384xf32> -> vector<4x384xf32>
    %c366_i32 = arith.constant 366 : i32
    %45 = tpu.dynamic_rotate %44 by %c366_i32 dim 1 : vector<4x384xf32>, i32 -> vector<4x384xf32>
    %46 = arith.addf %41, %45 : vector<4x384xf32>
    %c8 = arith.constant 8 : index
    %c0_34 = arith.constant 0 : index
    %c0_35 = arith.constant 0 : index
    %47 = vector.load %arg2[%c8, %c0_34, %c0_35] : memref<9x4x4xbf16, #tpu.memory_space<vmem>>, vector<1x4x4xbf16>
    %48 = vector.shape_cast %47 : vector<1x4x4xbf16> to vector<4x4xbf16>
    %cst_36 = arith.constant dense<0.000000e+00> : vector<4x384xf32>
    %49 = tpu.matmul %48, %8, %cst_36 {dimension_numbers = #tpu.dot_dimension_numbers<[1], [0], [0], [1], [0, 0, 1, 1], [], []>} : vector<4x4xbf16>, vector<4x384xbf16>, vector<4x384xf32> -> vector<4x384xf32>
    %c365_i32 = arith.constant 365 : i32
    %50 = tpu.dynamic_rotate %49 by %c365_i32 dim 1 : vector<4x384xf32>, i32 -> vector<4x384xf32>
    %51 = arith.addf %46, %50 : vector<4x384xf32>
    %c0_37 = arith.constant 0 : index
    %c0_38 = arith.constant 0 : index
    %52 = vector.load %arg3[%c0_37, %c0_38] : memref<4x1xf32, #tpu.memory_space<vmem>>, vector<4x1xf32>
    %53 = vector.broadcast %52 : vector<4x1xf32> to vector<4x384xf32>
    %54 = arith.addf %51, %53 : vector<4x384xf32>
    %cst_39 = arith.constant dense<0.000000e+00> : vector<4x1xf32>
    %55 = tpu.matmul %54, %1, %cst_39 {dimension_numbers = #tpu.dot_dimension_numbers<[1], [0], [0], [1], [0, 0, 1, 1], [], []>} : vector<4x384xf32>, vector<384x1xf32>, vector<4x1xf32> -> vector<4x1xf32>
    %56 = arith.mulf %54, %54 : vector<4x384xf32>
    %cst_40 = arith.constant dense<0.000000e+00> : vector<4x1xf32>
    %57 = tpu.matmul %56, %1, %cst_40 {dimension_numbers = #tpu.dot_dimension_numbers<[1], [0], [0], [1], [0, 0, 1, 1], [], []>} : vector<4x384xf32>, vector<384x1xf32>, vector<4x1xf32> -> vector<4x1xf32>
    %cst_41 = arith.constant 3.906250e-03 : f32
    %58 = vector.broadcast %cst_41 : f32 to vector<4x1xf32>
    %59 = arith.mulf %55, %58 : vector<4x1xf32>
    %cst_42 = arith.constant 3.906250e-03 : f32
    %60 = vector.broadcast %cst_42 : f32 to vector<4x1xf32>
    %61 = arith.mulf %57, %60 : vector<4x1xf32>
    %62 = arith.mulf %59, %59 : vector<4x1xf32>
    %63 = arith.subf %61, %62 : vector<4x1xf32>
    %cst_43 = arith.constant 0.000000e+00 : f32
    %64 = vector.broadcast %cst_43 : f32 to vector<4x1xf32>
    %65 = arith.maximumf %63, %64 : vector<4x1xf32>
    %cst_44 = arith.constant 9.99999974E-6 : f32
    %66 = vector.broadcast %cst_44 : f32 to vector<4x1xf32>
    %67 = arith.addf %65, %66 : vector<4x1xf32>
    %68 = math.rsqrt %67 : vector<4x1xf32>
    %69 = arith.mulf %2, %68 : vector<4x1xf32>
    %cst_45 = arith.constant 1.000000e+00 : f32
    %70 = vector.broadcast %cst_45 : f32 to vector<4x1xf32>
    %71 = arith.select %6, %69, %70 : vector<4x1xi1>, vector<4x1xf32>
    %72 = arith.mulf %69, %59 : vector<4x1xf32>
    %73 = arith.subf %3, %72 : vector<4x1xf32>
    %cst_46 = arith.constant 0.000000e+00 : f32
    %74 = vector.broadcast %cst_46 : f32 to vector<4x1xf32>
    %75 = arith.select %6, %73, %74 : vector<4x1xi1>, vector<4x1xf32>
    %76 = vector.broadcast %71 : vector<4x1xf32> to vector<4x384xf32>
    %77 = arith.mulf %54, %76 : vector<4x384xf32>
    %78 = vector.broadcast %75 : vector<4x1xf32> to vector<4x384xf32>
    %79 = arith.addf %77, %78 : vector<4x384xf32>
    %80 = vector.broadcast %0 : vector<1x384xf32> to vector<4x384xf32>
    %81 = arith.mulf %79, %80 : vector<4x384xf32>
    %cst_47 = arith.constant 1.000000e-01 : f32
    %82 = vector.broadcast %cst_47 : f32 to vector<4x384xf32>
    %83 = arith.mulf %82, %81 : vector<4x384xf32>
    %84 = arith.maximumf %81, %83 : vector<4x384xf32>
    %85 = arith.truncf %84 : vector<4x384xf32> to vector<4x384xbf16>
    %c0_48 = arith.constant 0 : index
    %c0_49 = arith.constant 0 : index
    %c0_50 = arith.constant 0 : index
    %86 = vector.load %arg4[%c0_48, %c0_49, %c0_50] : memref<9x4x4xbf16, #tpu.memory_space<vmem>>, vector<1x4x4xbf16>
    %87 = vector.shape_cast %86 : vector<1x4x4xbf16> to vector<4x4xbf16>
    %cst_51 = arith.constant dense<0.000000e+00> : vector<4x384xf32>
    %88 = tpu.matmul %87, %85, %cst_51 {dimension_numbers = #tpu.dot_dimension_numbers<[1], [0], [0], [1], [0, 0, 1, 1], [], []>} : vector<4x4xbf16>, vector<4x384xbf16>, vector<4x384xf32> -> vector<4x384xf32>
    %c19_i32_52 = arith.constant 19 : i32
    %89 = tpu.dynamic_rotate %88 by %c19_i32_52 dim 1 : vector<4x384xf32>, i32 -> vector<4x384xf32>
    %c1_53 = arith.constant 1 : index
    %c0_54 = arith.constant 0 : index
    %c0_55 = arith.constant 0 : index
    %90 = vector.load %arg4[%c1_53, %c0_54, %c0_55] : memref<9x4x4xbf16, #tpu.memory_space<vmem>>, vector<1x4x4xbf16>
    %91 = vector.shape_cast %90 : vector<1x4x4xbf16> to vector<4x4xbf16>
    %cst_56 = arith.constant dense<0.000000e+00> : vector<4x384xf32>
    %92 = tpu.matmul %91, %85, %cst_56 {dimension_numbers = #tpu.dot_dimension_numbers<[1], [0], [0], [1], [0, 0, 1, 1], [], []>} : vector<4x4xbf16>, vector<4x384xbf16>, vector<4x384xf32> -> vector<4x384xf32>
    %c18_i32_57 = arith.constant 18 : i32
    %93 = tpu.dynamic_rotate %92 by %c18_i32_57 dim 1 : vector<4x384xf32>, i32 -> vector<4x384xf32>
    %94 = arith.addf %89, %93 : vector<4x384xf32>
    %c2_58 = arith.constant 2 : index
    %c0_59 = arith.constant 0 : index
    %c0_60 = arith.constant 0 : index
    %95 = vector.load %arg4[%c2_58, %c0_59, %c0_60] : memref<9x4x4xbf16, #tpu.memory_space<vmem>>, vector<1x4x4xbf16>
    %96 = vector.shape_cast %95 : vector<1x4x4xbf16> to vector<4x4xbf16>
    %cst_61 = arith.constant dense<0.000000e+00> : vector<4x384xf32>
    %97 = tpu.matmul %96, %85, %cst_61 {dimension_numbers = #tpu.dot_dimension_numbers<[1], [0], [0], [1], [0, 0, 1, 1], [], []>} : vector<4x4xbf16>, vector<4x384xbf16>, vector<4x384xf32> -> vector<4x384xf32>
    %c17_i32_62 = arith.constant 17 : i32
    %98 = tpu.dynamic_rotate %97 by %c17_i32_62 dim 1 : vector<4x384xf32>, i32 -> vector<4x384xf32>
    %99 = arith.addf %94, %98 : vector<4x384xf32>
    %c3_63 = arith.constant 3 : index
    %c0_64 = arith.constant 0 : index
    %c0_65 = arith.constant 0 : index
    %100 = vector.load %arg4[%c3_63, %c0_64, %c0_65] : memref<9x4x4xbf16, #tpu.memory_space<vmem>>, vector<1x4x4xbf16>
    %101 = vector.shape_cast %100 : vector<1x4x4xbf16> to vector<4x4xbf16>
    %cst_66 = arith.constant dense<0.000000e+00> : vector<4x384xf32>
    %102 = tpu.matmul %101, %85, %cst_66 {dimension_numbers = #tpu.dot_dimension_numbers<[1], [0], [0], [1], [0, 0, 1, 1], [], []>} : vector<4x4xbf16>, vector<4x384xbf16>, vector<4x384xf32> -> vector<4x384xf32>
    %c1_i32_67 = arith.constant 1 : i32
    %103 = tpu.dynamic_rotate %102 by %c1_i32_67 dim 1 : vector<4x384xf32>, i32 -> vector<4x384xf32>
    %104 = arith.addf %99, %103 : vector<4x384xf32>
    %c4_68 = arith.constant 4 : index
    %c0_69 = arith.constant 0 : index
    %c0_70 = arith.constant 0 : index
    %105 = vector.load %arg4[%c4_68, %c0_69, %c0_70] : memref<9x4x4xbf16, #tpu.memory_space<vmem>>, vector<1x4x4xbf16>
    %106 = vector.shape_cast %105 : vector<1x4x4xbf16> to vector<4x4xbf16>
    %cst_71 = arith.constant dense<0.000000e+00> : vector<4x384xf32>
    %107 = tpu.matmul %106, %85, %cst_71 {dimension_numbers = #tpu.dot_dimension_numbers<[1], [0], [0], [1], [0, 0, 1, 1], [], []>} : vector<4x4xbf16>, vector<4x384xbf16>, vector<4x384xf32> -> vector<4x384xf32>
    %108 = arith.addf %104, %107 : vector<4x384xf32>
    %c5_72 = arith.constant 5 : index
    %c0_73 = arith.constant 0 : index
    %c0_74 = arith.constant 0 : index
    %109 = vector.load %arg4[%c5_72, %c0_73, %c0_74] : memref<9x4x4xbf16, #tpu.memory_space<vmem>>, vector<1x4x4xbf16>
    %110 = vector.shape_cast %109 : vector<1x4x4xbf16> to vector<4x4xbf16>
    %cst_75 = arith.constant dense<0.000000e+00> : vector<4x384xf32>
    %111 = tpu.matmul %110, %85, %cst_75 {dimension_numbers = #tpu.dot_dimension_numbers<[1], [0], [0], [1], [0, 0, 1, 1], [], []>} : vector<4x4xbf16>, vector<4x384xbf16>, vector<4x384xf32> -> vector<4x384xf32>
    %c383_i32_76 = arith.constant 383 : i32
    %112 = tpu.dynamic_rotate %111 by %c383_i32_76 dim 1 : vector<4x384xf32>, i32 -> vector<4x384xf32>
    %113 = arith.addf %108, %112 : vector<4x384xf32>
    %c6_77 = arith.constant 6 : index
    %c0_78 = arith.constant 0 : index
    %c0_79 = arith.constant 0 : index
    %114 = vector.load %arg4[%c6_77, %c0_78, %c0_79] : memref<9x4x4xbf16, #tpu.memory_space<vmem>>, vector<1x4x4xbf16>
    %115 = vector.shape_cast %114 : vector<1x4x4xbf16> to vector<4x4xbf16>
    %cst_80 = arith.constant dense<0.000000e+00> : vector<4x384xf32>
    %116 = tpu.matmul %115, %85, %cst_80 {dimension_numbers = #tpu.dot_dimension_numbers<[1], [0], [0], [1], [0, 0, 1, 1], [], []>} : vector<4x4xbf16>, vector<4x384xbf16>, vector<4x384xf32> -> vector<4x384xf32>
    %c367_i32_81 = arith.constant 367 : i32
    %117 = tpu.dynamic_rotate %116 by %c367_i32_81 dim 1 : vector<4x384xf32>, i32 -> vector<4x384xf32>
    %118 = arith.addf %113, %117 : vector<4x384xf32>
    %c7_82 = arith.constant 7 : index
    %c0_83 = arith.constant 0 : index
    %c0_84 = arith.constant 0 : index
    %119 = vector.load %arg4[%c7_82, %c0_83, %c0_84] : memref<9x4x4xbf16, #tpu.memory_space<vmem>>, vector<1x4x4xbf16>
    %120 = vector.shape_cast %119 : vector<1x4x4xbf16> to vector<4x4xbf16>
    %cst_85 = arith.constant dense<0.000000e+00> : vector<4x384xf32>
    %121 = tpu.matmul %120, %85, %cst_85 {dimension_numbers = #tpu.dot_dimension_numbers<[1], [0], [0], [1], [0, 0, 1, 1], [], []>} : vector<4x4xbf16>, vector<4x384xbf16>, vector<4x384xf32> -> vector<4x384xf32>
    %c366_i32_86 = arith.constant 366 : i32
    %122 = tpu.dynamic_rotate %121 by %c366_i32_86 dim 1 : vector<4x384xf32>, i32 -> vector<4x384xf32>
    %123 = arith.addf %118, %122 : vector<4x384xf32>
    %c8_87 = arith.constant 8 : index
    %c0_88 = arith.constant 0 : index
    %c0_89 = arith.constant 0 : index
    %124 = vector.load %arg4[%c8_87, %c0_88, %c0_89] : memref<9x4x4xbf16, #tpu.memory_space<vmem>>, vector<1x4x4xbf16>
    %125 = vector.shape_cast %124 : vector<1x4x4xbf16> to vector<4x4xbf16>
    %cst_90 = arith.constant dense<0.000000e+00> : vector<4x384xf32>
    %126 = tpu.matmul %125, %85, %cst_90 {dimension_numbers = #tpu.dot_dimension_numbers<[1], [0], [0], [1], [0, 0, 1, 1], [], []>} : vector<4x4xbf16>, vector<4x384xbf16>, vector<4x384xf32> -> vector<4x384xf32>
    %c365_i32_91 = arith.constant 365 : i32
    %127 = tpu.dynamic_rotate %126 by %c365_i32_91 dim 1 : vector<4x384xf32>, i32 -> vector<4x384xf32>
    %128 = arith.addf %123, %127 : vector<4x384xf32>
    %c0_92 = arith.constant 0 : index
    %c0_93 = arith.constant 0 : index
    %129 = vector.load %arg5[%c0_92, %c0_93] : memref<4x1xf32, #tpu.memory_space<vmem>>, vector<4x1xf32>
    %130 = vector.broadcast %129 : vector<4x1xf32> to vector<4x384xf32>
    %131 = arith.addf %128, %130 : vector<4x384xf32>
    %cst_94 = arith.constant 1.000000e-01 : f32
    %132 = vector.broadcast %cst_94 : f32 to vector<4x384xf32>
    %133 = arith.mulf %132, %131 : vector<4x384xf32>
    %134 = arith.maximumf %131, %133 : vector<4x384xf32>
    %c0_95 = arith.constant 0 : index
    %c0_96 = arith.constant 0 : index
    %135 = vector.load %arg6[%c0_95, %c0_96] : memref<4x4xbf16, #tpu.memory_space<vmem>>, vector<4x4xbf16>
    %cst_97 = arith.constant dense<0.000000e+00> : vector<4x384xf32>
    %136 = tpu.matmul %135, %8, %cst_97 {dimension_numbers = #tpu.dot_dimension_numbers<[1], [0], [0], [1], [0, 0, 1, 1], [], []>} : vector<4x4xbf16>, vector<4x384xbf16>, vector<4x384xf32> -> vector<4x384xf32>
    %c0_98 = arith.constant 0 : index
    %c0_99 = arith.constant 0 : index
    %137 = vector.load %arg7[%c0_98, %c0_99] : memref<4x1xf32, #tpu.memory_space<vmem>>, vector<4x1xf32>
    %138 = vector.broadcast %137 : vector<4x1xf32> to vector<4x384xf32>
    %139 = arith.addf %136, %138 : vector<4x384xf32>
    %140 = arith.addf %134, %139 : vector<4x384xf32>
    %c0_100 = arith.constant 0 : index
    %c0_101 = arith.constant 0 : index
    %c0_102 = arith.constant 0 : index
    %141 = vector.load %arg12[%c0_100, %c0_101, %c0_102] : memref<1x4x384xf32, #tpu.memory_space<vmem>>, vector<1x4x384xf32>
    %142 = vector.shape_cast %141 : vector<1x4x384xf32> to vector<4x384xf32>
    %143 = vector.shape_cast %140 : vector<4x384xf32> to vector<1x4x384xf32>
    tpu.vector_store %arg12[%c0_100, %c0_101, %c0_102], %143 {strides = array<i32>} : memref<1x4x384xf32, #tpu.memory_space<vmem>>, vector<1x4x384xf32>,
    return
  }
  func.func @transform_0(%arg0: i32) -> (i32, i32, i32) {
    %c0_i32 = arith.constant 0 : i32
    %c0_i32_0 = arith.constant 0 : i32
    %c0_i32_1 = arith.constant 0 : i32
    return %arg0, %c0_i32, %c0_i32_0 : i32, i32, i32
  }
  func.func @transform_1(%arg0: i32) -> (i32, i32, i32) {
    %c0_i32 = arith.constant 0 : i32
    %c0_i32_0 = arith.constant 0 : i32
    %c0_i32_1 = arith.constant 0 : i32
    %c0_i32_2 = arith.constant 0 : i32
    return %c0_i32, %c0_i32_0, %c0_i32_1 : i32, i32, i32
  }
  func.func @transform_2(%arg0: i32) -> (i32, i32) {
    %c0_i32 = arith.constant 0 : i32
    %c0_i32_0 = arith.constant 0 : i32
    %c0_i32_1 = arith.constant 0 : i32
    return %c0_i32, %c0_i32_0 : i32, i32
  }
  func.func @transform_3(%arg0: i32) -> (i32, i32, i32) {
    %c0_i32 = arith.constant 0 : i32
    %c0_i32_0 = arith.constant 0 : i32
    %c0_i32_1 = arith.constant 0 : i32
    %c0_i32_2 = arith.constant 0 : i32
    return %c0_i32, %c0_i32_0, %c0_i32_1 : i32, i32, i32
  }
  func.func @transform_4(%arg0: i32) -> (i32, i32) {
    %c0_i32 = arith.constant 0 : i32
    %c0_i32_0 = arith.constant 0 : i32
    %c0_i32_1 = arith.constant 0 : i32
    return %c0_i32, %c0_i32_0 : i32, i32
  }
  func.func @transform_5(%arg0: i32) -> (i32, i32) {
    %c0_i32 = arith.constant 0 : i32
    %c0_i32_0 = arith.constant 0 : i32
    %c0_i32_1 = arith.constant 0 : i32
    return %c0_i32, %c0_i32_0 : i32, i32
  }
  func.func @transform_6(%arg0: i32) -> (i32, i32) {
    %c0_i32 = arith.constant 0 : i32
    %c0_i32_0 = arith.constant 0 : i32
    %c0_i32_1 = arith.constant 0 : i32
    return %c0_i32, %c0_i32_0 : i32, i32
  }
  func.func @transform_7(%arg0: i32) -> (i32, i32) {
    %c0_i32 = arith.constant 0 : i32
    %c0_i32_0 = arith.constant 0 : i32
    %c0_i32_1 = arith.constant 0 : i32
    return %c0_i32, %c0_i32_0 : i32, i32
  }
  func.func @transform_8(%arg0: i32) -> (i32, i32) {
    %c0_i32 = arith.constant 0 : i32
    %c0_i32_0 = arith.constant 0 : i32
    %c0_i32_1 = arith.constant 0 : i32
    return %c0_i32, %c0_i32_0 : i32, i32
  }
  func.func @transform_9(%arg0: i32) -> (i32, i32) {
    %c0_i32 = arith.constant 0 : i32
    %c0_i32_0 = arith.constant 0 : i32
    %c0_i32_1 = arith.constant 0 : i32
    return %c0_i32, %c0_i32_0 : i32, i32
  }
  func.func @transform_10(%arg0: i32) -> (i32, i32) {
    %c0_i32 = arith.constant 0 : i32
    %c0_i32_0 = arith.constant 0 : i32
    %c0_i32_1 = arith.constant 0 : i32
    return %c0_i32, %c0_i32_0 : i32, i32
  }
  func.func @transform_11(%arg0: i32) -> (i32, i32, i32) {
    %c0_i32 = arith.constant 0 : i32
    %c0_i32_0 = arith.constant 0 : i32
    %c0_i32_1 = arith.constant 0 : i32
    return %arg0, %c0_i32, %c0_i32_0 : i32, i32, i32
  }
}

</mosaic_0001>

<llo_original>
// kernel: tpu_custom_call.1
$region0: #{tpu_custom_call.1}
  #allocation0 [shape = 'u32[]', space=smem, size = 0x4, offset = 0x4, fixed_abs, tag = 'smem constant byte address 0x4 - core index']
  #allocation1 [shape = 'u32[144,128]{1,0:T(1,128)}', space=vmem, size = 0x12000, scoped, tag = 'internal scratch']
  %s0 = inlined_call_operand.vmem [shape: bf16[2,4,384], index: 0, kind: input, shape index: {}]
  %s1 = inlined_call_operand.vmem [shape: bf16[9,4,4], index: 1, kind: input, shape index: {}]
  %s2 = inlined_call_operand.vmem [shape: f32[4,1], index: 2, kind: input, shape index: {}]
  %s3 = inlined_call_operand.vmem [shape: bf16[9,4,4], index: 3, kind: input, shape index: {}]
  %s4 = inlined_call_operand.vmem [shape: f32[4,1], index: 4, kind: input, shape index: {}]
  %s5 = inlined_call_operand.vmem [shape: bf16[4,4], index: 5, kind: input, shape index: {}]
  %s6 = inlined_call_operand.vmem [shape: f32[4,1], index: 6, kind: input, shape index: {}]
  %s7 = inlined_call_operand.vmem [shape: f32[4,1], index: 7, kind: input, shape index: {}]
  %s8 = inlined_call_operand.vmem [shape: f32[4,1], index: 8, kind: input, shape index: {}]
  %s9 = inlined_call_operand.vmem [shape: f32[1,384], index: 9, kind: input, shape index: {}]
  %s10 = inlined_call_operand.vmem [shape: f32[384,1], index: 10, kind: input, shape index: {}]
  %s11 = inlined_call_operand.hbm [shape: f32[2,4,384], index: 11, kind: output, shape index: {}]
  %s12 = sld [smem:[#allocation0]]
  $region77: #{tpu_custom_call.1} parent=0
    _
  %s14 = ssub.s32 1, %s12
  %s15 = scalar_select 0, %s14, %s12
  $region1: #{tpu_custom_call.1} parent=0
    #allocation2 [shape = 'u8[12288]{0}', space=vmem, size = 0x3000, scoped, tag = 'output window, operand 0']
    #allocation3 [shape = 's32[2]{0}', space=sflag, size = 0x8, scoped, tag = 'scoped memory for tpu_custom_call.1']
    %16 = vsyncpa [#allocation3], 0
    %s17 = scalar_lea.sflag [#allocation3], 1
    %18 = vsyncpa %s17, 0
    loop: start=0, step=1, limit=4
    $region2: #{tpu_custom_call.1} parent=1 // loop_pre_header
      _
    $region3: #{tpu_custom_call.1} parent=1 // loop_header
      %s20 = sphi 0, %s24
      %p21 = scmp.ge.s32.totalorder %s20, 4
      %s30 = sphi 0, %s32
      %s33 = sphi 0, %s30
      %s34 = sphi 0, %s33
      %s50 = sphi 0, %s34
      %s54 = sphi 0, %s54
      %s56 = sphi 0, %s54
      %s57 = sphi 0, %s56
      %s71 = sphi 0, %s57
      %s75 = sphi 0, %s75
      %s77 = sphi 0, %s75
      %s78 = sphi 0, %s77
      %s92 = sphi 0, %s78
      %s96 = sphi 0, %s96
      %s98 = sphi 0, %s96
      %s99 = sphi 0, %s98
      %s113 = sphi 0, %s99
      %s117 = sphi 0, %s117
      %s119 = sphi 0, %s117
      %s120 = sphi 0, %s119
      %s134 = sphi 0, %s120
      %s138 = sphi 0, %s138
      %s140 = sphi 0, %s138
      %s141 = sphi 0, %s140
      %s155 = sphi 0, %s141
      %s159 = sphi 0, %s159
      %s161 = sphi 0, %s159
      %s162 = sphi 0, %s161
      %s176 = sphi 0, %s162
      %s180 = sphi 0, %s180
      %s182 = sphi 0, %s180
      %s183 = sphi 0, %s182
      %s197 = sphi 0, %s183
      %s201 = sphi 0, %s201
      %s203 = sphi 0, %s201
      %s204 = sphi 0, %s203
      %s218 = sphi 0, %s204
      %s222 = sphi 0, %s222
      %s224 = sphi 0, %s222
      %s225 = sphi 0, %s224
      %s239 = sphi 0, %s225
      %s243 = sphi 0, %s243
      %s245 = sphi 0, %s243
      %s246 = sphi 0, %s245
      %s260 = sphi 0, %s246
      %s266 = sphi 0, %s268
      %s269 = sphi 0, %s266
      %s270 = sphi 0, %s269
      %s286 = sphi 0, %s270
    $region4: #{tpu_custom_call.1} parent=1 // loop_header_branch
      %23 = sbr.rel (%p21) target = $region8
    $region5: #{tpu_custom_call.1} parent=1 // loop_body
      %s25 = ssub.s32 %s20, 1
      %s26 = ssub.s32 %s20, 2
      %s27 = sadd.s32 %s20, 1
      %s28 = ssub.s32 %s20, %s27
      %p29 = scmp.eq.s32.totalorder %s28, 0
      %s31 = sadd.s32 %s30, 1
      %s32 = scalar_select %p29, %s30, %s31
      %p35 = pneg %p29
      %p36 = scmp.eq.s32.totalorder %s20, 1
      %p37 = por %p35, %p36
      %p38 = scmp.ne.s32.totalorder %s30, %s33
      %p39 = scmp.eq.s32.totalorder %s20, 0
      %p40 = por %p38, %p39
      %p41 = scmp.ne.s32.totalorder %s30, %s33
      %p42 = scmp.eq.s32.totalorder %s25, 1
      %p43 = por %p41, %p42
      %p44 = scmp.ne.s32.totalorder %s33, %s34
      %p45 = scmp.eq.s32.totalorder %s25, 0
      %p46 = por %p44, %p45
      %p47 = scmp.ne.s32.totalorder %s33, %s34
      %p48 = scmp.eq.s32.totalorder %s26, 1
      %p49 = por %p47, %p48
      %p51 = scmp.ne.s32.totalorder %s34, %s50
      %p52 = scmp.eq.s32.totalorder %s26, 0
      %p53 = por %p51, %p52
      %s55 = sadd.s32 %s54, 1
      %p58 = scmp.eq.s32.totalorder %s20, 1
      %p59 = scmp.ne.s32.totalorder %s54, %s56
      %p60 = scmp.eq.s32.totalorder %s20, 0
      %p61 = por %p59, %p60
      %p62 = scmp.ne.s32.totalorder %s54, %s56
      %p63 = scmp.eq.s32.totalorder %s25, 1
      %p64 = por %p62, %p63
      %p65 = scmp.ne.s32.totalorder %s56, %s57
      %p66 = scmp.eq.s32.totalorder %s25, 0
      %p67 = por %p65, %p66
      %p68 = scmp.ne.s32.totalorder %s56, %s57
      %p69 = scmp.eq.s32.totalorder %s26, 1
      %p70 = por %p68, %p69
      %p72 = scmp.ne.s32.totalorder %s57, %s71
      %p73 = scmp.eq.s32.totalorder %s26, 0
      %p74 = por %p72, %p73
      %s76 = sadd.s32 %s75, 1
      %p79 = scmp.eq.s32.totalorder %s20, 1
      %p80 = scmp.ne.s32.totalorder %s75, %s77
      %p81 = scmp.eq.s32.totalorder %s20, 0
      %p82 = por %p80, %p81
      %p83 = scmp.ne.s32.totalorder %s75, %s77
      %p84 = scmp.eq.s32.totalorder %s25, 1
      %p85 = por %p83, %p84
      %p86 = scmp.ne.s32.totalorder %s77, %s78
      %p87 = scmp.eq.s32.totalorder %s25, 0
      %p88 = por %p86, %p87
      %p89 = scmp.ne.s32.totalorder %s77, %s78
      %p90 = scmp.eq.s32.totalorder %s26, 1
      %p91 = por %p89, %p90
      %p93 = scmp.ne.s32.totalorder %s78, %s92
      %p94 = scmp.eq.s32.totalorder %s26, 0
      %p95 = por %p93, %p94
      %s97 = sadd.s32 %s96, 1
      %p100 = scmp.eq.s32.totalorder %s20, 1
      %p101 = scmp.ne.s32.totalorder %s96, %s98
      %p102 = scmp.eq.s32.totalorder %s20, 0
      %p103 = por %p101, %p102
      %p104 = scmp.ne.s32.totalorder %s96, %s98
      %p105 = scmp.eq.s32.totalorder %s25, 1
      %p106 = por %p104, %p105
      %p107 = scmp.ne.s32.totalorder %s98, %s99
      %p108 = scmp.eq.s32.totalorder %s25, 0
      %p109 = por %p107, %p108
      %p110 = scmp.ne.s32.totalorder %s98, %s99
      %p111 = scmp.eq.s32.totalorder %s26, 1
      %p112 = por %p110, %p111
      %p114 = scmp.ne.s32.totalorder %s99, %s113
      %p115 = scmp.eq.s32.totalorder %s26, 0
      %p116 = por %p114, %p115
      %s118 = sadd.s32 %s117, 1
      %p121 = scmp.eq.s32.totalorder %s20, 1
      %p122 = scmp.ne.s32.totalorder %s117, %s119
      %p123 = scmp.eq.s32.totalorder %s20, 0
      %p124 = por %p122, %p123
      %p125 = scmp.ne.s32.totalorder %s117, %s119
      %p126 = scmp.eq.s32.totalorder %s25, 1
      %p127 = por %p125, %p126
      %p128 = scmp.ne.s32.totalorder %s119, %s120
      %p129 = scmp.eq.s32.totalorder %s25, 0
      %p130 = por %p128, %p129
      %p131 = scmp.ne.s32.totalorder %s119, %s120
      %p132 = scmp.eq.s32.totalorder %s26, 1
      %p133 = por %p131, %p132
      %p135 = scmp.ne.s32.totalorder %s120, %s134
      %p136 = scmp.eq.s32.totalorder %s26, 0
      %p137 = por %p135, %p136
      %s139 = sadd.s32 %s138, 1
      %p142 = scmp.eq.s32.totalorder %s20, 1
      %p143 = scmp.ne.s32.totalorder %s138, %s140
      %p144 = scmp.eq.s32.totalorder %s20, 0
      %p145 = por %p143, %p144
      %p146 = scmp.ne.s32.totalorder %s138, %s140
      %p147 = scmp.eq.s32.totalorder %s25, 1
      %p148 = por %p146, %p147
      %p149 = scmp.ne.s32.totalorder %s140, %s141
      %p150 = scmp.eq.s32.totalorder %s25, 0
      %p151 = por %p149, %p150
      %p152 = scmp.ne.s32.totalorder %s140, %s141
      %p153 = scmp.eq.s32.totalorder %s26, 1
      %p154 = por %p152, %p153
      %p156 = scmp.ne.s32.totalorder %s141, %s155
      %p157 = scmp.eq.s32.totalorder %s26, 0
      %p158 = por %p156, %p157
      %s160 = sadd.s32 %s159, 1
      %p163 = scmp.eq.s32.totalorder %s20, 1
      %p164 = scmp.ne.s32.totalorder %s159, %s161
      %p165 = scmp.eq.s32.totalorder %s20, 0
      %p166 = por %p164, %p165
      %p167 = scmp.ne.s32.totalorder %s159, %s161
      %p168 = scmp.eq.s32.totalorder %s25, 1
      %p169 = por %p167, %p168
      %p170 = scmp.ne.s32.totalorder %s161, %s162
      %p171 = scmp.eq.s32.totalorder %s25, 0
      %p172 = por %p170, %p171
      %p173 = scmp.ne.s32.totalorder %s161, %s162
      %p174 = scmp.eq.s32.totalorder %s26, 1
      %p175 = por %p173, %p174
      %p177 = scmp.ne.s32.totalorder %s162, %s176
      %p178 = scmp.eq.s32.totalorder %s26, 0
      %p179 = por %p177, %p178
      %s181 = sadd.s32 %s180, 1
      %p184 = scmp.eq.s32.totalorder %s20, 1
      %p185 = scmp.ne.s32.totalorder %s180, %s182
      %p186 = scmp.eq.s32.totalorder %s20, 0
      %p187 = por %p185, %p186
      %p188 = scmp.ne.s32.totalorder %s180, %s182
      %p189 = scmp.eq.s32.totalorder %s25, 1
      %p190 = por %p188, %p189
      %p191 = scmp.ne.s32.totalorder %s182, %s183
      %p192 = scmp.eq.s32.totalorder %s25, 0
      %p193 = por %p191, %p192
      %p194 = scmp.ne.s32.totalorder %s182, %s183
      %p195 = scmp.eq.s32.totalorder %s26, 1
      %p196 = por %p194, %p195
      %p198 = scmp.ne.s32.totalorder %s183, %s197
      %p199 = scmp.eq.s32.totalorder %s26, 0
      %p200 = por %p198, %p199
      %s202 = sadd.s32 %s201, 1
      %p205 = scmp.eq.s32.totalorder %s20, 1
      %p206 = scmp.ne.s32.totalorder %s201, %s203
      %p207 = scmp.eq.s32.totalorder %s20, 0
      %p208 = por %p206, %p207
      %p209 = scmp.ne.s32.totalorder %s201, %s203
      %p210 = scmp.eq.s32.totalorder %s25, 1
      %p211 = por %p209, %p210
      %p212 = scmp.ne.s32.totalorder %s203, %s204
      %p213 = scmp.eq.s32.totalorder %s25, 0
      %p214 = por %p212, %p213
      %p215 = scmp.ne.s32.totalorder %s203, %s204
      %p216 = scmp.eq.s32.totalorder %s26, 1
      %p217 = por %p215, %p216
      %p219 = scmp.ne.s32.totalorder %s204, %s218
      %p220 = scmp.eq.s32.totalorder %s26, 0
      %p221 = por %p219, %p220
      %s223 = sadd.s32 %s222, 1
      %p226 = scmp.eq.s32.totalorder %s20, 1
      %p227 = scmp.ne.s32.totalorder %s222, %s224
      %p228 = scmp.eq.s32.totalorder %s20, 0
      %p229 = por %p227, %p228
      %p230 = scmp.ne.s32.totalorder %s222, %s224
      %p231 = scmp.eq.s32.totalorder %s25, 1
      %p232 = por %p230, %p231
      %p233 = scmp.ne.s32.totalorder %s224, %s225
      %p234 = scmp.eq.s32.totalorder %s25, 0
      %p235 = por %p233, %p234
      %p236 = scmp.ne.s32.totalorder %s224, %s225
      %p237 = scmp.eq.s32.totalorder %s26, 1
      %p238 = por %p236, %p237
      %p240 = scmp.ne.s32.totalorder %s225, %s239
      %p241 = scmp.eq.s32.totalorder %s26, 0
      %p242 = por %p240, %p241
      %s244 = sadd.s32 %s243, 1
      %p247 = scmp.eq.s32.totalorder %s20, 1
      %p248 = scmp.ne.s32.totalorder %s243, %s245
      %p249 = scmp.eq.s32.totalorder %s20, 0
      %p250 = por %p248, %p249
      %p251 = scmp.ne.s32.totalorder %s243, %s245
      %p252 = scmp.eq.s32.totalorder %s25, 1
      %p253 = por %p251, %p252
      %p254 = scmp.ne.s32.totalorder %s245, %s246
      %p255 = scmp.eq.s32.totalorder %s25, 0
      %p256 = por %p254, %p255
      %p257 = scmp.ne.s32.totalorder %s245, %s246
      %p258 = scmp.eq.s32.totalorder %s26, 1
      %p259 = por %p257, %p258
      %p261 = scmp.ne.s32.totalorder %s246, %s260
      %p262 = scmp.eq.s32.totalorder %s26, 0
      %p263 = por %p261, %p262
      %s264 = ssub.s32 %s20, %s27
      %p265 = scmp.eq.s32.totalorder %s264, 0
      %s267 = sadd.s32 %s266, 1
      %s268 = scalar_select %p265, %s266, %s267
      %p271 = pneg %p265
      %p272 = scmp.eq.s32.totalorder %s20, 1
      %p273 = por %p271, %p272
      %p274 = scmp.ne.s32.totalorder %s266, %s269
      %p275 = scmp.eq.s32.totalorder %s20, 0
      %p276 = por %p274, %p275
      %p277 = scmp.ne.s32.totalorder %s266, %s269
      %p278 = scmp.eq.s32.totalorder %s25, 1
      %p279 = por %p277, %p278
      %p280 = scmp.ne.s32.totalorder %s269, %s270
      %p281 = scmp.eq.s32.totalorder %s25, 0
      %p282 = por %p280, %p281
      %p283 = scmp.ne.s32.totalorder %s269, %s270
      %p284 = scmp.eq.s32.totalorder %s26, 1
      %p285 = por %p283, %p284
      %p287 = scmp.ne.s32.totalorder %s270, %s286
      %p288 = scmp.eq.s32.totalorder %s26, 0
      %p289 = por %p287, %p288
      %p290 = scmp.le.s32.totalorder 1, %s20
      %p291 = scmp.lt.s32.totalorder %s20, 3
      %p292 = pnand %p290, %p291
      %p293 = pneg %p292
      // Predicated region
      $region9: #{tpu_custom_call.1} parent=5 // pred_check
        _
      $region10: #{tpu_custom_call.1} parent=5 // pred_check_branch
        %295 = sbr.rel (%p292) target = $region12
      $region11: #{tpu_custom_call.1} parent=5 // pred_region
        %s296 = ssub.s32 %s20, 1
        // Predicated region
        $region13: #{tpu_custom_call.1} parent=11 // pred_check
          %p297 = pneg %p67
        $region14: #{tpu_custom_call.1} parent=11 // pred_check_branch
          %299 = sbr.rel (%p297) target = $region16
        $region15: #{tpu_custom_call.1} parent=11 // pred_region
          _
        $region16: #{tpu_custom_call.1} parent=11 // pred_fallthru
          _
        // Predicated region
        $region17: #{tpu_custom_call.1} parent=11 // pred_check
          %p300 = pneg %p88
        $region18: #{tpu_custom_call.1} parent=11 // pred_check_branch
          %302 = sbr.rel (%p300) target = $region20
        $region19: #{tpu_custom_call.1} parent=11 // pred_region
          _
        $region20: #{tpu_custom_call.1} parent=11 // pred_fallthru
          _
        // Predicated region
        $region21: #{tpu_custom_call.1} parent=11 // pred_check
          %p303 = pneg %p109
        $region22: #{tpu_custom_call.1} parent=11 // pred_check_branch
          %305 = sbr.rel (%p303) target = $region24
        $region23: #{tpu_custom_call.1} parent=11 // pred_region
          _
        $region24: #{tpu_custom_call.1} parent=11 // pred_fallthru
          _
        // Predicated region
        $region25: #{tpu_custom_call.1} parent=11 // pred_check
          %p306 = pneg %p130
        $region26: #{tpu_custom_call.1} parent=11 // pred_check_branch
          %308 = sbr.rel (%p306) target = $region28
        $region27: #{tpu_custom_call.1} parent=11 // pred_region
          _
        $region28: #{tpu_custom_call.1} parent=11 // pred_fallthru
          _
        // Predicated region
        $region29: #{tpu_custom_call.1} parent=11 // pred_check
          %p309 = pneg %p151
        $region30: #{tpu_custom_call.1} parent=11 // pred_check_branch
          %311 = sbr.rel (%p309) target = $region32
        $region31: #{tpu_custom_call.1} parent=11 // pred_region
          _
        $region32: #{tpu_custom_call.1} parent=11 // pred_fallthru
          _
        // Predicated region
        $region33: #{tpu_custom_call.1} parent=11 // pred_check
          %p312 = pneg %p172
        $region34: #{tpu_custom_call.1} parent=11 // pred_check_branch
          %314 = sbr.rel (%p312) target = $region36
        $region35: #{tpu_custom_call.1} parent=11 // pred_region
          _
        $region36: #{tpu_custom_call.1} parent=11 // pred_fallthru
          _
        // Predicated region
        $region37: #{tpu_custom_call.1} parent=11 // pred_check
          %p315 = pneg %p193
        $region38: #{tpu_custom_call.1} parent=11 // pred_check_branch
          %317 = sbr.rel (%p315) target = $region40
        $region39: #{tpu_custom_call.1} parent=11 // pred_region
          _
        $region40: #{tpu_custom_call.1} parent=11 // pred_fallthru
          _
        // Predicated region
        $region41: #{tpu_custom_call.1} parent=11 // pred_check
          %p318 = pneg %p214
        $region42: #{tpu_custom_call.1} parent=11 // pred_check_branch
          %320 = sbr.rel (%p318) target = $region44
        $region43: #{tpu_custom_call.1} parent=11 // pred_region
          _
        $region44: #{tpu_custom_call.1} parent=11 // pred_fallthru
          _
        // Predicated region
        $region45: #{tpu_custom_call.1} parent=11 // pred_check
          %p321 = pneg %p235
        $region46: #{tpu_custom_call.1} parent=11 // pred_check_branch
          %323 = sbr.rel (%p321) target = $region48
        $region47: #{tpu_custom_call.1} parent=11 // pred_region
          _
        $region48: #{tpu_custom_call.1} parent=11 // pred_fallthru
          _
        // Predicated region
        $region49: #{tpu_custom_call.1} parent=11 // pred_check
          %p324 = pneg %p256
        $region50: #{tpu_custom_call.1} parent=11 // pred_check_branch
          %326 = sbr.rel (%p324) target = $region52
        $region51: #{tpu_custom_call.1} parent=11 // pred_region
          _
        $region52: #{tpu_custom_call.1} parent=11 // pred_fallthru
          _
      $region12: #{tpu_custom_call.1} parent=5 // pred_fallthru
        _
      %p327 = scmp.lt.s32.totalorder %s20, 2
      // Predicated region
      $region53: #{tpu_custom_call.1} parent=5 // pred_check
        %p328 = pneg %p327
      $region54: #{tpu_custom_call.1} parent=5 // pred_check_branch
        %330 = sbr.rel (%p328) target = $region56
      $region55: #{tpu_custom_call.1} parent=5 // pred_region
        // Predicated region
        $region57: #{tpu_custom_call.1} parent=55 // pred_check
          %p331 = pneg %p40
        $region58: #{tpu_custom_call.1} parent=55 // pred_check_branch
          %333 = sbr.rel (%p331) target = $region60
        $region59: #{tpu_custom_call.1} parent=55 // pred_region
          %p334 = scmp.lt.s32.totalorder %s20, 1
          %s335 = scalar_select %p334, %s20, 1
          %s336 = smul.addr %s335, 3
          %s337 = smul.addr %s336, 2
          %s338 = scalar_lea.vmem %s0, %s337
        $region60: #{tpu_custom_call.1} parent=55 // pred_fallthru
          _
      $region56: #{tpu_custom_call.1} parent=5 // pred_fallthru
        _
      %p339 = scmp.le.s32.totalorder 1, %s20
      %p340 = scmp.lt.s32.totalorder %s20, 3
      %p341 = pnand %p339, %p340
      %p342 = pneg %p341
      // Predicated region
      $region61: #{tpu_custom_call.1} parent=5 // pred_check
        _
      $region62: #{tpu_custom_call.1} parent=5 // pred_check_branch
        %344 = sbr.rel (%p341) target = $region64
      $region63: #{tpu_custom_call.1} parent=5 // pred_region
        %s345 = ssub.s32 %s20, 1
        %p346 = scmp.lt.s32.totalorder %s25, 1
        %s347 = scalar_select %p346, %s25, 1
        %s348 = smul.addr %s347, 3
        %s349 = smul.addr %s348, 2
        %s350 = scalar_lea.vmem %s0, %s349
        %p351 = pneg %p46
        %p352 = pneg %p43
        %p353 = pneg %p67
        %p354 = pneg %p64
        %p355 = pneg %p88
        %p356 = pneg %p85
        %p357 = pneg %p109
        %p358 = pneg %p106
        %p359 = pneg %p130
        %p360 = pneg %p127
        %p361 = pneg %p151
        %p362 = pneg %p148
        %p363 = pneg %p172
        %p364 = pneg %p169
        %p365 = pneg %p193
        %p366 = pneg %p190
        %p367 = pneg %p214
        %p368 = pneg %p211
        %p369 = pneg %p235
        %p370 = pneg %p232
        %p371 = pneg %p256
        %p372 = pneg %p253
        %p373 = pneg %p282
        %p374 = pneg %p279
        %s375 = sand.u32 %s269, 1
        %s376 = scalar_lea.sflag [#allocation3], %s375
        %s377 = sand.u32 %s269, 1
        %s378 = smul.addr %s377, 12
        %s379 = scalar_lea.vmem [#allocation2], %s378
        %p380 = scmp.lt.s32.totalorder %s25, 1
        %s381 = scalar_select %p380, %s25, 1
        %s382 = smul.addr %s381, 3
        %s383 = smul.addr %s382, 2
        %s384 = scalar_lea.vmem %s0, %s383
        %v386 = vld [vmem:[%s9] sm:$0x7]
        %v387 = vld [vmem:[%s10] sm:$0xff]
        %v388 = vld [vmem:[%s10 + $0x8] sm:$0xff]
        %v389 = vld [vmem:[%s10 + $0x10] sm:$0xff]
        %v390 = vld [vmem:[%s10 + $0x18] sm:$0xff]
        %v391 = vld [vmem:[%s10 + $0x20] sm:$0xff]
        %v392 = vld [vmem:[%s10 + $0x28] sm:$0xff]
        %v393 = vld [vmem:[%s10 + $0x30] sm:$0xff]
        %v394 = vld [vmem:[%s10 + $0x38] sm:$0xff]
        %v395 = vld [vmem:[%s10 + $0x40] sm:$0xff]
        %v396 = vld [vmem:[%s10 + $0x48] sm:$0xff]
        %v397 = vld [vmem:[%s10 + $0x50] sm:$0xff]
        %v398 = vld [vmem:[%s10 + $0x58] sm:$0xff]
        %v399 = vld [vmem:[%s10 + $0x60] sm:$0xff]
        %v400 = vld [vmem:[%s10 + $0x68] sm:$0xff]
        %v401 = vld [vmem:[%s10 + $0x70] sm:$0xff]
        %v402 = vld [vmem:[%s10 + $0x78] sm:$0xff]
        %v403 = vld [vmem:[%s10 + $0x80] sm:$0xff]
        %v404 = vld [vmem:[%s10 + $0x88] sm:$0xff]
        %v405 = vld [vmem:[%s10 + $0x90] sm:$0xff]
        %v406 = vld [vmem:[%s10 + $0x98] sm:$0xff]
        %v407 = vld [vmem:[%s10 + $0xa0] sm:$0xff]
        %v408 = vld [vmem:[%s10 + $0xa8] sm:$0xff]
        %v409 = vld [vmem:[%s10 + $0xb0] sm:$0xff]
        %v410 = vld [vmem:[%s10 + $0xb8] sm:$0xff]
        %v411 = vld [vmem:[%s10 + $0xc0] sm:$0xff]
        %v412 = vld [vmem:[%s10 + $0xc8] sm:$0xff]
        %v413 = vld [vmem:[%s10 + $0xd0] sm:$0xff]
        %v414 = vld [vmem:[%s10 + $0xd8] sm:$0xff]
        %v415 = vld [vmem:[%s10 + $0xe0] sm:$0xff]
        %v416 = vld [vmem:[%s10 + $0xe8] sm:$0xff]
        %v417 = vld [vmem:[%s10 + $0xf0] sm:$0xff]
        %v418 = vld [vmem:[%s10 + $0xf8] sm:$0xff]
        %v419 = vld [vmem:[%s10 + $0x100] sm:$0xff]
        %v420 = vld [vmem:[%s10 + $0x108] sm:$0xff]
        %v421 = vld [vmem:[%s10 + $0x110] sm:$0xff]
        %v422 = vld [vmem:[%s10 + $0x118] sm:$0xff]
        %v423 = vld [vmem:[%s10 + $0x120] sm:$0xff]
        %v424 = vld [vmem:[%s10 + $0x128] sm:$0xff]
        %v425 = vld [vmem:[%s10 + $0x130] sm:$0xff]
        %v426 = vld [vmem:[%s10 + $0x138] sm:$0xff]
        %v427 = vld [vmem:[%s10 + $0x140] sm:$0xff]
        %v428 = vld [vmem:[%s10 + $0x148] sm:$0xff]
        %v429 = vld [vmem:[%s10 + $0x150] sm:$0xff]
        %v430 = vld [vmem:[%s10 + $0x158] sm:$0xff]
        %v431 = vld [vmem:[%s10 + $0x160] sm:$0xff]
        %v432 = vld [vmem:[%s10 + $0x168] sm:$0xff]
        %v433 = vld [vmem:[%s10 + $0x170] sm:$0xff]
        %v434 = vld [vmem:[%s10 + $0x178] sm:$0xff]
        %v435 = vld [vmem:[%s7] sm:$0xf]
        %v436 = vld [vmem:[%s8] sm:$0xf]
        %v437 = vlaneseq
        %v438 = vshrl.u32 %v437, 7
        %vm439 = vcmp.lt.s32.totalorder %v438, 2
        %v440 = vld [vmem:[%s384] sm:$0x3f]
        %v441 = vld [vmem:[%s1] sm:$0x3]
        %v443 = vcombine.high %v440, %v440
        %v445 = vunpack.c.l.s4 1983009808
        %v446 = vunpack.c.0.s8 %v445
        %v447 = vlaneseq
        %v448 = vshrl.u32 %v447, 7
        %v449 = vsub.s32 %v446, %v448
        %v450 = vrot.slane %v440, %v449
        %v452 = vunpack.c.l.s4 1983009808
        %v453 = vunpack.c.0.s8 %v452
        %v454 = vlaneseq
        %v455 = vshrl.u32 %v454, 7
        %v456 = vsub.s32 %v453, %v455
        %v457 = vrot.slane %v443, %v456
        %v458 = vcombine.high %v450, %v450
        %vm459 = vcmask 31744
        %v461 = vsel %vm459, %v441, 0
        %vm463 = vcmask 1041408
        %v465 = vsel %vm463, %v450, 0
        %v468 = vsel %vm463, %v458, 0
        %v471 = vsel %vm463, %v457, 0
        %473 = vmatprep.subr.bf16.mxu0 %v468
        %474 = vmatpush1.bf16.msra.mxu0 %v465
        %475 = vmatprep.subr.bf16.mxu0 0
        %476 = vmatpush1.bf16.msra.mxu0 0
        %477 = vmatprep.subr.bf16.mxu0 0
        %478 = vmatpush1.bf16.msra.mxu0 0
        %479 = vmatprep.subr.bf16.mxu0 0
        %480 = vmatpush1.bf16.msra.mxu0 0
        %481 = vmatprep.subr.bf16.mxu0 0
        %482 = vmatpush1.bf16.msra.mxu0 0
        %483 = vmatprep.subr.bf16.mxu0 0
        %484 = vmatpush1.bf16.msra.mxu0 0
        %485 = vmatprep.subr.bf16.mxu0 0
        %486 = vmatpush1.bf16.msra.mxu0 0
        %487 = vmatprep.subr.bf16.mxu0 0
        %488 = vmatpush1.bf16.msra.mxu0 0
        %489 = vmatprep.subr.bf16.mxu0 0
        %490 = vmatpush1.bf16.msra.mxu0 0
        %491 = vmatprep.subr.bf16.mxu0 0
        %492 = vmatpush1.bf16.msra.mxu0 0
        %493 = vmatprep.subr.bf16.mxu0 0
        %494 = vmatpush1.bf16.msra.mxu0 0
        %495 = vmatprep.subr.bf16.mxu0 0
        %496 = vmatpush1.bf16.msra.mxu0 0
        %497 = vmatprep.subr.bf16.mxu0 0
        %498 = vmatpush1.bf16.msra.mxu0 0
        %499 = vmatprep.subr.bf16.mxu0 0
        %500 = vmatpush1.bf16.msra.mxu0 0
        %501 = vmatprep.subr.bf16.mxu0 0
        %502 = vmatpush1.bf16.msra.mxu0 0
        %503 = vmatprep.subr.bf16.mxu0 0
        %504 = vmatpush1.bf16.msra.mxu0 0
        %505 = vmatprep.mubr.bf16.mxu0 0
        %506 = vmatmul.mubr.bf16.gmra.mrb[0].mxu0 %v461
        %v507 = vpop.f32.mrb[0].mxu0
        %v508 = vadd.f32 0.0, %v507
        %v509 = vpop.f32.mrb[0].mxu0
        %v510 = vadd.f32 0.0, %v509
        %v511 = vpop.f32.mrb[0].mxu0
        %v512 = vpop.f32.mrb[0].mxu0
        %513 = vdwg.mxu0
        %514 = vmatprep.subr.bf16.mxu0 0
        %515 = vmatpush1.bf16.msra.mxu0 %v471
        %516 = vmatprep.subr.bf16.mxu0 0
        %517 = vmatpush1.bf16.msra.mxu0 0
        %518 = vmatprep.subr.bf16.mxu0 0
        %519 = vmatpush1.bf16.msra.mxu0 0
        %520 = vmatprep.subr.bf16.mxu0 0
        %521 = vmatpush1.bf16.msra.mxu0 0
        %522 = vmatprep.subr.bf16.mxu0 0
        %523 = vmatpush1.bf16.msra.mxu0 0
        %524 = vmatprep.subr.bf16.mxu0 0
        %525 = vmatpush1.bf16.msra.mxu0 0
        %526 = vmatprep.subr.bf16.mxu0 0
        %527 = vmatpush1.bf16.msra.mxu0 0
        %528 = vmatprep.subr.bf16.mxu0 0
        %529 = vmatpush1.bf16.msra.mxu0 0
        %530 = vmatprep.subr.bf16.mxu0 0
        %531 = vmatpush1.bf16.msra.mxu0 0
        %532 = vmatprep.subr.bf16.mxu0 0
        %533 = vmatpush1.bf16.msra.mxu0 0
        %534 = vmatprep.subr.bf16.mxu0 0
        %535 = vmatpush1.bf16.msra.mxu0 0
        %536 = vmatprep.subr.bf16.mxu0 0
        %537 = vmatpush1.bf16.msra.mxu0 0
        %538 = vmatprep.subr.bf16.mxu0 0
        %539 = vmatpush1.bf16.msra.mxu0 0
        %540 = vmatprep.subr.bf16.mxu0 0
        %541 = vmatpush1.bf16.msra.mxu0 0
        %542 = vmatprep.subr.bf16.mxu0 0
        %543 = vmatpush1.bf16.msra.mxu0 0
        %544 = vmatprep.subr.bf16.mxu0 0
        %545 = vmatpush1.bf16.msra.mxu0 0
        %546 = vmatprep.mubr.bf16.mxu0 0
        %547 = vmatmul.mubr.bf16.gmra.mrb[0].mxu0 %v461
        %v548 = vpop.f32.mrb[0].mxu0
        %v549 = vadd.f32 0.0, %v548
        %v550 = vpop.f32.mrb[0].mxu0
        %v551 = vpop.f32.mrb[0].mxu0
        %v552 = vpop.f32.mrb[0].mxu0
        %553 = vdwg.mxu0
        %554 = vrot.lane.b32.xlu0 %v508, 19
        %v555 = vpop.permute.xlu0 %554
        %556 = vrot.lane.b32.xlu0 %v510, 19
        %v557 = vpop.permute.xlu0 %556
        %558 = vrot.lane.b32.xlu0 %v549, 19
        %v559 = vpop.permute.xlu0 %558
        %v560 = vlaneseq
        %v561 = vand.u32 %v560, 127
        %vm562 = vcmp.lt.s32.totalorder %v561, 19
        %v563 = vsel %vm562, %v557, %v559
        %v564 = vsel %vm562, %v555, %v557
        %v565 = vsel %vm562, %v559, %v555
        %s566 = scalar_lea.vmem %s1, 2
        %v567 = vld [vmem:[%s566] sm:$0x3]
        %v569 = vsel %vm459, %v567, 0
        %571 = vmatprep.subr.bf16.mxu0 %v468
        %572 = vmatpush1.bf16.msra.mxu0 %v465
        %573 = vmatprep.subr.bf16.mxu0 0
        %574 = vmatpush1.bf16.msra.mxu0 0
        %575 = vmatprep.subr.bf16.mxu0 0
        %576 = vmatpush1.bf16.msra.mxu0 0
        %577 = vmatprep.subr.bf16.mxu0 0
        %578 = vmatpush1.bf16.msra.mxu0 0
        %579 = vmatprep.subr.bf16.mxu0 0
        %580 = vmatpush1.bf16.msra.mxu0 0
        %581 = vmatprep.subr.bf16.mxu0 0
        %582 = vmatpush1.bf16.msra.mxu0 0
        %583 = vmatprep.subr.bf16.mxu0 0
        %584 = vmatpush1.bf16.msra.mxu0 0
        %585 = vmatprep.subr.bf16.mxu0 0
        %586 = vmatpush1.bf16.msra.mxu0 0
        %587 = vmatprep.subr.bf16.mxu0 0
        %588 = vmatpush1.bf16.msra.mxu0 0
        %589 = vmatprep.subr.bf16.mxu0 0
        %590 = vmatpush1.bf16.msra.mxu0 0
        %591 = vmatprep.subr.bf16.mxu0 0
        %592 = vmatpush1.bf16.msra.mxu0 0
        %593 = vmatprep.subr.bf16.mxu0 0
        %594 = vmatpush1.bf16.msra.mxu0 0
        %595 = vmatprep.subr.bf16.mxu0 0
        %596 = vmatpush1.bf16.msra.mxu0 0
        %597 = vmatprep.subr.bf16.mxu0 0
        %598 = vmatpush1.bf16.msra.mxu0 0
        %599 = vmatprep.subr.bf16.mxu0 0
        %600 = vmatpush1.bf16.msra.mxu0 0
        %601 = vmatprep.subr.bf16.mxu0 0
        %602 = vmatpush1.bf16.msra.mxu0 0
        %603 = vmatprep.mubr.bf16.mxu0 0
        %604 = vmatmul.mubr.bf16.gmra.mrb[0].mxu0 %v569
        %v605 = vpop.f32.mrb[0].mxu0
        %v606 = vadd.f32 0.0, %v605
        %v607 = vpop.f32.mrb[0].mxu0
        %v608 = vadd.f32 0.0, %v607
        %v609 = vpop.f32.mrb[0].mxu0
        %v610 = vpop.f32.mrb[0].mxu0
        %611 = vdwg.mxu0
        %612 = vmatprep.subr.bf16.mxu0 0
        %613 = vmatpush1.bf16.msra.mxu0 %v471
        %614 = vmatprep.subr.bf16.mxu0 0
        %615 = vmatpush1.bf16.msra.mxu0 0
        %616 = vmatprep.subr.bf16.mxu0 0
        %617 = vmatpush1.bf16.msra.mxu0 0
        %618 = vmatprep.subr.bf16.mxu0 0
        %619 = vmatpush1.bf16.msra.mxu0 0
        %620 = vmatprep.subr.bf16.mxu0 0
        %621 = vmatpush1.bf16.msra.mxu0 0
        %622 = vmatprep.subr.bf16.mxu0 0
        %623 = vmatpush1.bf16.msra.mxu0 0
        %624 = vmatprep.subr.bf16.mxu0 0
        %625 = vmatpush1.bf16.msra.mxu0 0
        %626 = vmatprep.subr.bf16.mxu0 0
        %627 = vmatpush1.bf16.msra.mxu0 0
        %628 = vmatprep.subr.bf16.mxu0 0
        %629 = vmatpush1.bf16.msra.mxu0 0
        %630 = vmatprep.subr.bf16.mxu0 0
        %631 = vmatpush1.bf16.msra.mxu0 0
        %632 = vmatprep.subr.bf16.mxu0 0
        %633 = vmatpush1.bf16.msra.mxu0 0
        %634 = vmatprep.subr.bf16.mxu0 0
        %635 = vmatpush1.bf16.msra.mxu0 0
        %636 = vmatprep.subr.bf16.mxu0 0
        %637 = vmatpush1.bf16.msra.mxu0 0
        %638 = vmatprep.subr.bf16.mxu0 0
        %639 = vmatpush1.bf16.msra.mxu0 0
        %640 = vmatprep.subr.bf16.mxu0 0
        %641 = vmatpush1.bf16.msra.mxu0 0
        %642 = vmatprep.subr.bf16.mxu0 0
        %643 = vmatpush1.bf16.msra.mxu0 0
        %644 = vmatprep.mubr.bf16.mxu0 0
        %645 = vmatmul.mubr.bf16.gmra.mrb[0].mxu0 %v569
        %v646 = vpop.f32.mrb[0].mxu0
        %v647 = vadd.f32 0.0, %v646
        %v648 = vpop.f32.mrb[0].mxu0
        %v649 = vpop.f32.mrb[0].mxu0
        %v650 = vpop.f32.mrb[0].mxu0
        %651 = vdwg.mxu0
        %652 = vrot.lane.b32.xlu0 %v606, 18
        %v653 = vpop.permute.xlu0 %652
        %654 = vrot.lane.b32.xlu0 %v608, 18
        %v655 = vpop.permute.xlu0 %654
        %656 = vrot.lane.b32.xlu0 %v647, 18
        %v657 = vpop.permute.xlu0 %656
        %vm658 = vcmp.lt.s32.totalorder %v561, 18
        %v659 = vsel %vm658, %v655, %v657
        %v660 = vsel %vm658, %v653, %v655
        %v661 = vsel %vm658, %v657, %v653
        %v662 = vadd.f32 %v565, %v661
        %v663 = vadd.f32 %v564, %v660
        %v664 = vadd.f32 %v563, %v659
        %s665 = scalar_lea.vmem %s1, 4
        %v666 = vld [vmem:[%s665] sm:$0x3]
        %v668 = vsel %vm459, %v666, 0
        %670 = vmatprep.subr.bf16.mxu0 %v468
        %671 = vmatpush1.bf16.msra.mxu0 %v465
        %672 = vmatprep.subr.bf16.mxu0 0
        %673 = vmatpush1.bf16.msra.mxu0 0
        %674 = vmatprep.subr.bf16.mxu0 0
        %675 = vmatpush1.bf16.msra.mxu0 0
        %676 = vmatprep.subr.bf16.mxu0 0
        %677 = vmatpush1.bf16.msra.mxu0 0
        %678 = vmatprep.subr.bf16.mxu0 0
        %679 = vmatpush1.bf16.msra.mxu0 0
        %680 = vmatprep.subr.bf16.mxu0 0
        %681 = vmatpush1.bf16.msra.mxu0 0
        %682 = vmatprep.subr.bf16.mxu0 0
        %683 = vmatpush1.bf16.msra.mxu0 0
        %684 = vmatprep.subr.bf16.mxu0 0
        %685 = vmatpush1.bf16.msra.mxu0 0
        %686 = vmatprep.subr.bf16.mxu0 0
        %687 = vmatpush1.bf16.msra.mxu0 0
        %688 = vmatprep.subr.bf16.mxu0 0
        %689 = vmatpush1.bf16.msra.mxu0 0
        %690 = vmatprep.subr.bf16.mxu0 0
        %691 = vmatpush1.bf16.msra.mxu0 0
        %692 = vmatprep.subr.bf16.mxu0 0
        %693 = vmatpush1.bf16.msra.mxu0 0
        %694 = vmatprep.subr.bf16.mxu0 0
        %695 = vmatpush1.bf16.msra.mxu0 0
        %696 = vmatprep.subr.bf16.mxu0 0
        %697 = vmatpush1.bf16.msra.mxu0 0
        %698 = vmatprep.subr.bf16.mxu0 0
        %699 = vmatpush1.bf16.msra.mxu0 0
        %700 = vmatprep.subr.bf16.mxu0 0
        %701 = vmatpush1.bf16.msra.mxu0 0
        %702 = vmatprep.mubr.bf16.mxu0 0
        %703 = vmatmul.mubr.bf16.gmra.mrb[0].mxu0 %v668
        %v704 = vpop.f32.mrb[0].mxu0
        %v705 = vadd.f32 0.0, %v704
        %v706 = vpop.f32.mrb[0].mxu0
        %v707 = vadd.f32 0.0, %v706
        %v708 = vpop.f32.mrb[0].mxu0
        %v709 = vpop.f32.mrb[0].mxu0
        %710 = vdwg.mxu0
        %711 = vmatprep.subr.bf16.mxu0 0
        %712 = vmatpush1.bf16.msra.mxu0 %v471
        %713 = vmatprep.subr.bf16.mxu0 0
        %714 = vmatpush1.bf16.msra.mxu0 0
        %715 = vmatprep.subr.bf16.mxu0 0
        %716 = vmatpush1.bf16.msra.mxu0 0
        %717 = vmatprep.subr.bf16.mxu0 0
        %718 = vmatpush1.bf16.msra.mxu0 0
        %719 = vmatprep.subr.bf16.mxu0 0
        %720 = vmatpush1.bf16.msra.mxu0 0
        %721 = vmatprep.subr.bf16.mxu0 0
        %722 = vmatpush1.bf16.msra.mxu0 0
        %723 = vmatprep.subr.bf16.mxu0 0
        %724 = vmatpush1.bf16.msra.mxu0 0
        %725 = vmatprep.subr.bf16.mxu0 0
        %726 = vmatpush1.bf16.msra.mxu0 0
        %727 = vmatprep.subr.bf16.mxu0 0
        %728 = vmatpush1.bf16.msra.mxu0 0
        %729 = vmatprep.subr.bf16.mxu0 0
        %730 = vmatpush1.bf16.msra.mxu0 0
        %731 = vmatprep.subr.bf16.mxu0 0
        %732 = vmatpush1.bf16.msra.mxu0 0
        %733 = vmatprep.subr.bf16.mxu0 0
        %734 = vmatpush1.bf16.msra.mxu0 0
        %735 = vmatprep.subr.bf16.mxu0 0
        %736 = vmatpush1.bf16.msra.mxu0 0
        %737 = vmatprep.subr.bf16.mxu0 0
        %738 = vmatpush1.bf16.msra.mxu0 0
        %739 = vmatprep.subr.bf16.mxu0 0
        %740 = vmatpush1.bf16.msra.mxu0 0
        %741 = vmatprep.subr.bf16.mxu0 0
        %742 = vmatpush1.bf16.msra.mxu0 0
        %743 = vmatprep.mubr.bf16.mxu0 0
        %744 = vmatmul.mubr.bf16.gmra.mrb[0].mxu0 %v668
        %v745 = vpop.f32.mrb[0].mxu0
        %v746 = vadd.f32 0.0, %v745
        %v747 = vpop.f32.mrb[0].mxu0
        %v748 = vpop.f32.mrb[0].mxu0
        %v749 = vpop.f32.mrb[0].mxu0
        %750 = vdwg.mxu0
        %751 = vrot.lane.b32.xlu0 %v705, 17
        %v752 = vpop.permute.xlu0 %751
        %753 = vrot.lane.b32.xlu0 %v707, 17
        %v754 = vpop.permute.xlu0 %753
        %755 = vrot.lane.b32.xlu0 %v746, 17
        %v756 = vpop.permute.xlu0 %755
        %vm757 = vcmp.lt.s32.totalorder %v561, 17
        %v758 = vsel %vm757, %v754, %v756
        %v759 = vsel %vm757, %v752, %v754
        %v760 = vsel %vm757, %v756, %v752
        %v761 = vadd.f32 %v662, %v760
        %v762 = vadd.f32 %v663, %v759
        %v763 = vadd.f32 %v664, %v758
        %s764 = scalar_lea.vmem %s1, 6
        %v765 = vld [vmem:[%s764] sm:$0x3]
        %v767 = vsel %vm459, %v765, 0
        %769 = vmatprep.subr.bf16.mxu0 %v468
        %770 = vmatpush1.bf16.msra.mxu0 %v465
        %771 = vmatprep.subr.bf16.mxu0 0
        %772 = vmatpush1.bf16.msra.mxu0 0
        %773 = vmatprep.subr.bf16.mxu0 0
        %774 = vmatpush1.bf16.msra.mxu0 0
        %775 = vmatprep.subr.bf16.mxu0 0
        %776 = vmatpush1.bf16.msra.mxu0 0
        %777 = vmatprep.subr.bf16.mxu0 0
        %778 = vmatpush1.bf16.msra.mxu0 0
        %779 = vmatprep.subr.bf16.mxu0 0
        %780 = vmatpush1.bf16.msra.mxu0 0
        %781 = vmatprep.subr.bf16.mxu0 0
        %782 = vmatpush1.bf16.msra.mxu0 0
        %783 = vmatprep.subr.bf16.mxu0 0
        %784 = vmatpush1.bf16.msra.mxu0 0
        %785 = vmatprep.subr.bf16.mxu0 0
        %786 = vmatpush1.bf16.msra.mxu0 0
        %787 = vmatprep.subr.bf16.mxu0 0
        %788 = vmatpush1.bf16.msra.mxu0 0
        %789 = vmatprep.subr.bf16.mxu0 0
        %790 = vmatpush1.bf16.msra.mxu0 0
        %791 = vmatprep.subr.bf16.mxu0 0
        %792 = vmatpush1.bf16.msra.mxu0 0
        %793 = vmatprep.subr.bf16.mxu0 0
        %794 = vmatpush1.bf16.msra.mxu0 0
        %795 = vmatprep.subr.bf16.mxu0 0
        %796 = vmatpush1.bf16.msra.mxu0 0
        %797 = vmatprep.subr.bf16.mxu0 0
        %798 = vmatpush1.bf16.msra.mxu0 0
        %799 = vmatprep.subr.bf16.mxu0 0
        %800 = vmatpush1.bf16.msra.mxu0 0
        %801 = vmatprep.mubr.bf16.mxu0 0
        %802 = vmatmul.mubr.bf16.gmra.mrb[0].mxu0 %v767
        %v803 = vpop.f32.mrb[0].mxu0
        %v804 = vadd.f32 0.0, %v803
        %v805 = vpop.f32.mrb[0].mxu0
        %v806 = vadd.f32 0.0, %v805
        %v807 = vpop.f32.mrb[0].mxu0
        %v808 = vpop.f32.mrb[0].mxu0
        %809 = vdwg.mxu0
        %810 = vmatprep.subr.bf16.mxu0 0
        %811 = vmatpush1.bf16.msra.mxu0 %v471
        %812 = vmatprep.subr.bf16.mxu0 0
        %813 = vmatpush1.bf16.msra.mxu0 0
        %814 = vmatprep.subr.bf16.mxu0 0
        %815 = vmatpush1.bf16.msra.mxu0 0
        %816 = vmatprep.subr.bf16.mxu0 0
        %817 = vmatpush1.bf16.msra.mxu0 0
        %818 = vmatprep.subr.bf16.mxu0 0
        %819 = vmatpush1.bf16.msra.mxu0 0
        %820 = vmatprep.subr.bf16.mxu0 0
        %821 = vmatpush1.bf16.msra.mxu0 0
        %822 = vmatprep.subr.bf16.mxu0 0
        %823 = vmatpush1.bf16.msra.mxu0 0
        %824 = vmatprep.subr.bf16.mxu0 0
        %825 = vmatpush1.bf16.msra.mxu0 0
        %826 = vmatprep.subr.bf16.mxu0 0
        %827 = vmatpush1.bf16.msra.mxu0 0
        %828 = vmatprep.subr.bf16.mxu0 0
        %829 = vmatpush1.bf16.msra.mxu0 0
        %830 = vmatprep.subr.bf16.mxu0 0
        %831 = vmatpush1.bf16.msra.mxu0 0
        %832 = vmatprep.subr.bf16.mxu0 0
        %833 = vmatpush1.bf16.msra.mxu0 0
        %834 = vmatprep.subr.bf16.mxu0 0
        %835 = vmatpush1.bf16.msra.mxu0 0
        %836 = vmatprep.subr.bf16.mxu0 0
        %837 = vmatpush1.bf16.msra.mxu0 0
        %838 = vmatprep.subr.bf16.mxu0 0
        %839 = vmatpush1.bf16.msra.mxu0 0
        %840 = vmatprep.subr.bf16.mxu0 0
        %841 = vmatpush1.bf16.msra.mxu0 0
        %842 = vmatprep.mubr.bf16.mxu0 0
        %843 = vmatmul.mubr.bf16.gmra.mrb[0].mxu0 %v767
        %v844 = vpop.f32.mrb[0].mxu0
        %v845 = vadd.f32 0.0, %v844
        %v846 = vpop.f32.mrb[0].mxu0
        %v847 = vpop.f32.mrb[0].mxu0
        %v848 = vpop.f32.mrb[0].mxu0
        %849 = vdwg.mxu0
        %850 = vrot.lane.b32.xlu0 %v804, 1
        %v851 = vpop.permute.xlu0 %850
        %852 = vrot.lane.b32.xlu0 %v806, 1
        %v853 = vpop.permute.xlu0 %852
        %854 = vrot.lane.b32.xlu0 %v845, 1
        %v855 = vpop.permute.xlu0 %854
        %vm856 = vcmp.lt.s32.totalorder %v561, 1
        %v857 = vsel %vm856, %v853, %v855
        %v858 = vsel %vm856, %v851, %v853
        %v859 = vsel %vm856, %v855, %v851
        %v860 = vadd.f32 %v761, %v859
        %v861 = vadd.f32 %v762, %v858
        %v862 = vadd.f32 %v763, %v857
        %s863 = scalar_lea.vmem %s1, 8
        %v864 = vld [vmem:[%s863] sm:$0x3]
        %v866 = vsel %vm459, %v864, 0
        %868 = vmatprep.subr.bf16.mxu0 %v468
        %869 = vmatpush1.bf16.msra.mxu0 %v465
        %870 = vmatprep.subr.bf16.mxu0 0
        %871 = vmatpush1.bf16.msra.mxu0 0
        %872 = vmatprep.subr.bf16.mxu0 0
        %873 = vmatpush1.bf16.msra.mxu0 0
        %874 = vmatprep.subr.bf16.mxu0 0
        %875 = vmatpush1.bf16.msra.mxu0 0
        %876 = vmatprep.subr.bf16.mxu0 0
        %877 = vmatpush1.bf16.msra.mxu0 0
        %878 = vmatprep.subr.bf16.mxu0 0
        %879 = vmatpush1.bf16.msra.mxu0 0
        %880 = vmatprep.subr.bf16.mxu0 0
        %881 = vmatpush1.bf16.msra.mxu0 0
        %882 = vmatprep.subr.bf16.mxu0 0
        %883 = vmatpush1.bf16.msra.mxu0 0
        %884 = vmatprep.subr.bf16.mxu0 0
        %885 = vmatpush1.bf16.msra.mxu0 0
        %886 = vmatprep.subr.bf16.mxu0 0
        %887 = vmatpush1.bf16.msra.mxu0 0
        %888 = vmatprep.subr.bf16.mxu0 0
        %889 = vmatpush1.bf16.msra.mxu0 0
        %890 = vmatprep.subr.bf16.mxu0 0
        %891 = vmatpush1.bf16.msra.mxu0 0
        %892 = vmatprep.subr.bf16.mxu0 0
        %893 = vmatpush1.bf16.msra.mxu0 0
        %894 = vmatprep.subr.bf16.mxu0 0
        %895 = vmatpush1.bf16.msra.mxu0 0
        %896 = vmatprep.subr.bf16.mxu0 0
        %897 = vmatpush1.bf16.msra.mxu0 0
        %898 = vmatprep.subr.bf16.mxu0 0
        %899 = vmatpush1.bf16.msra.mxu0 0
        %900 = vmatprep.mubr.bf16.mxu0 0
        %901 = vmatmul.mubr.bf16.gmra.mrb[0].mxu0 %v866
        %v902 = vpop.f32.mrb[0].mxu0
        %v903 = vadd.f32 0.0, %v902
        %v904 = vpop.f32.mrb[0].mxu0
        %v905 = vadd.f32 0.0, %v904
        %v906 = vpop.f32.mrb[0].mxu0
        %v907 = vpop.f32.mrb[0].mxu0
        %908 = vdwg.mxu0
        %909 = vmatprep.subr.bf16.mxu0 0
        %910 = vmatpush1.bf16.msra.mxu0 %v471
        %911 = vmatprep.subr.bf16.mxu0 0
        %912 = vmatpush1.bf16.msra.mxu0 0
        %913 = vmatprep.subr.bf16.mxu0 0
        %914 = vmatpush1.bf16.msra.mxu0 0
        %915 = vmatprep.subr.bf16.mxu0 0
        %916 = vmatpush1.bf16.msra.mxu0 0
        %917 = vmatprep.subr.bf16.mxu0 0
        %918 = vmatpush1.bf16.msra.mxu0 0
        %919 = vmatprep.subr.bf16.mxu0 0
        %920 = vmatpush1.bf16.msra.mxu0 0
        %921 = vmatprep.subr.bf16.mxu0 0
        %922 = vmatpush1.bf16.msra.mxu0 0
        %923 = vmatprep.subr.bf16.mxu0 0
        %924 = vmatpush1.bf16.msra.mxu0 0
        %925 = vmatprep.subr.bf16.mxu0 0
        %926 = vmatpush1.bf16.msra.mxu0 0
        %927 = vmatprep.subr.bf16.mxu0 0
        %928 = vmatpush1.bf16.msra.mxu0 0
        %929 = vmatprep.subr.bf16.mxu0 0
        %930 = vmatpush1.bf16.msra.mxu0 0
        %931 = vmatprep.subr.bf16.mxu0 0
        %932 = vmatpush1.bf16.msra.mxu0 0
        %933 = vmatprep.subr.bf16.mxu0 0
        %934 = vmatpush1.bf16.msra.mxu0 0
        %935 = vmatprep.subr.bf16.mxu0 0
        %936 = vmatpush1.bf16.msra.mxu0 0
        %937 = vmatprep.subr.bf16.mxu0 0
        %938 = vmatpush1.bf16.msra.mxu0 0
        %939 = vmatprep.subr.bf16.mxu0 0
        %940 = vmatpush1.bf16.msra.mxu0 0
        %941 = vmatprep.mubr.bf16.mxu0 0
        %942 = vmatmul.mubr.bf16.gmra.mrb[0].mxu0 %v866
        %v943 = vpop.f32.mrb[0].mxu0
        %v944 = vadd.f32 0.0, %v943
        %v945 = vpop.f32.mrb[0].mxu0
        %v946 = vpop.f32.mrb[0].mxu0
        %v947 = vpop.f32.mrb[0].mxu0
        %948 = vdwg.mxu0
        %v949 = vadd.f32 %v860, %v903
        %v950 = vadd.f32 %v861, %v905
        %v951 = vadd.f32 %v862, %v944
        %s952 = scalar_lea.vmem %s1, 10
        %v953 = vld [vmem:[%s952] sm:$0x3]
        %v955 = vsel %vm459, %v953, 0
        %957 = vmatprep.subr.bf16.mxu0 %v468
        %958 = vmatpush1.bf16.msra.mxu0 %v465
        %959 = vmatprep.subr.bf16.mxu0 0
        %960 = vmatpush1.bf16.msra.mxu0 0
        %961 = vmatprep.subr.bf16.mxu0 0
        %962 = vmatpush1.bf16.msra.mxu0 0
        %963 = vmatprep.subr.bf16.mxu0 0
        %964 = vmatpush1.bf16.msra.mxu0 0
        %965 = vmatprep.subr.bf16.mxu0 0
        %966 = vmatpush1.bf16.msra.mxu0 0
        %967 = vmatprep.subr.bf16.mxu0 0
        %968 = vmatpush1.bf16.msra.mxu0 0
        %969 = vmatprep.subr.bf16.mxu0 0
        %970 = vmatpush1.bf16.msra.mxu0 0
        %971 = vmatprep.subr.bf16.mxu0 0
        %972 = vmatpush1.bf16.msra.mxu0 0
        %973 = vmatprep.subr.bf16.mxu0 0
        %974 = vmatpush1.bf16.msra.mxu0 0
        %975 = vmatprep.subr.bf16.mxu0 0
        %976 = vmatpush1.bf16.msra.mxu0 0
        %977 = vmatprep.subr.bf16.mxu0 0
        %978 = vmatpush1.bf16.msra.mxu0 0
        %979 = vmatprep.subr.bf16.mxu0 0
        %980 = vmatpush1.bf16.msra.mxu0 0
        %981 = vmatprep.subr.bf16.mxu0 0
        %982 = vmatpush1.bf16.msra.mxu0 0
        %983 = vmatprep.subr.bf16.mxu0 0
        %984 = vmatpush1.bf16.msra.mxu0 0
        %985 = vmatprep.subr.bf16.mxu0 0
        %986 = vmatpush1.bf16.msra.mxu0 0
        %987 = vmatprep.subr.bf16.mxu0 0
        %988 = vmatpush1.bf16.msra.mxu0 0
        %989 = vmatprep.mubr.bf16.mxu0 0
        %990 = vmatmul.mubr.bf16.gmra.mrb[0].mxu0 %v955
        %v991 = vpop.f32.mrb[0].mxu0
        %v992 = vadd.f32 0.0, %v991
        %v993 = vpop.f32.mrb[0].mxu0
        %v994 = vadd.f32 0.0, %v993
        %v995 = vpop.f32.mrb[0].mxu0
        %v996 = vpop.f32.mrb[0].mxu0
        %997 = vdwg.mxu0
        %998 = vmatprep.subr.bf16.mxu0 0
        %999 = vmatpush1.bf16.msra.mxu0 %v471
        %1000 = vmatprep.subr.bf16.mxu0 0
        %1001 = vmatpush1.bf16.msra.mxu0 0
        %1002 = vmatprep.subr.bf16.mxu0 0
        %1003 = vmatpush1.bf16.msra.mxu0 0
        %1004 = vmatprep.subr.bf16.mxu0 0
        %1005 = vmatpush1.bf16.msra.mxu0 0
        %1006 = vmatprep.subr.bf16.mxu0 0
        %1007 = vmatpush1.bf16.msra.mxu0 0
        %1008 = vmatprep.subr.bf16.mxu0 0
        %1009 = vmatpush1.bf16.msra.mxu0 0
        %1010 = vmatprep.subr.bf16.mxu0 0
        %1011 = vmatpush1.bf16.msra.mxu0 0
        %1012 = vmatprep.subr.bf16.mxu0 0
        %1013 = vmatpush1.bf16.msra.mxu0 0
        %1014 = vmatprep.subr.bf16.mxu0 0
        %1015 = vmatpush1.bf16.msra.mxu0 0
        %1016 = vmatprep.subr.bf16.mxu0 0
        %1017 = vmatpush1.bf16.msra.mxu0 0
        %1018 = vmatprep.subr.bf16.mxu0 0
        %1019 = vmatpush1.bf16.msra.mxu0 0
        %1020 = vmatprep.subr.bf16.mxu0 0
        %1021 = vmatpush1.bf16.msra.mxu0 0
        %1022 = vmatprep.subr.bf16.mxu0 0
        %1023 = vmatpush1.bf16.msra.mxu0 0
        %1024 = vmatprep.subr.bf16.mxu0 0
        %1025 = vmatpush1.bf16.msra.mxu0 0
        %1026 = vmatprep.subr.bf16.mxu0 0
        %1027 = vmatpush1.bf16.msra.mxu0 0
        %1028 = vmatprep.subr.bf16.mxu0 0
        %1029 = vmatpush1.bf16.msra.mxu0 0
        %1030 = vmatprep.mubr.bf16.mxu0 0
        %1031 = vmatmul.mubr.bf16.gmra.mrb[0].mxu0 %v955
        %v1032 = vpop.f32.mrb[0].mxu0
        %v1033 = vadd.f32 0.0, %v1032
        %v1034 = vpop.f32.mrb[0].mxu0
        %v1035 = vpop.f32.mrb[0].mxu0
        %v1036 = vpop.f32.mrb[0].mxu0
        %1037 = vdwg.mxu0
        %1038 = vrot.lane.b32.xlu0 %v992, 127
        %v1039 = vpop.permute.xlu0 %1038
        %1040 = vrot.lane.b32.xlu0 %v994, 127
        %v1041 = vpop.permute.xlu0 %1040
        %1042 = vrot.lane.b32.xlu0 %v1033, 127
        %v1043 = vpop.permute.xlu0 %1042
        %vm1044 = vcmp.lt.s32.totalorder %v561, 127
        %v1045 = vsel %vm1044, %v1041, %v1043
        %v1046 = vsel %vm1044, %v1039, %v1041
        %v1047 = vsel %vm1044, %v1043, %v1039
        %v1048 = vadd.f32 %v949, %v1046
        %v1049 = vadd.f32 %v950, %v1045
        %v1050 = vadd.f32 %v951, %v1047
        %s1051 = scalar_lea.vmem %s1, 12
        %v1052 = vld [vmem:[%s1051] sm:$0x3]
        %v1054 = vsel %vm459, %v1052, 0
        %1056 = vmatprep.subr.bf16.mxu0 %v468
        %1057 = vmatpush1.bf16.msra.mxu0 %v465
        %1058 = vmatprep.subr.bf16.mxu0 0
        %1059 = vmatpush1.bf16.msra.mxu0 0
        %1060 = vmatprep.subr.bf16.mxu0 0
        %1061 = vmatpush1.bf16.msra.mxu0 0
        %1062 = vmatprep.subr.bf16.mxu0 0
        %1063 = vmatpush1.bf16.msra.mxu0 0
        %1064 = vmatprep.subr.bf16.mxu0 0
        %1065 = vmatpush1.bf16.msra.mxu0 0
        %1066 = vmatprep.subr.bf16.mxu0 0
        %1067 = vmatpush1.bf16.msra.mxu0 0
        %1068 = vmatprep.subr.bf16.mxu0 0
        %1069 = vmatpush1.bf16.msra.mxu0 0
        %1070 = vmatprep.subr.bf16.mxu0 0
        %1071 = vmatpush1.bf16.msra.mxu0 0
        %1072 = vmatprep.subr.bf16.mxu0 0
        %1073 = vmatpush1.bf16.msra.mxu0 0
        %1074 = vmatprep.subr.bf16.mxu0 0
        %1075 = vmatpush1.bf16.msra.mxu0 0
        %1076 = vmatprep.subr.bf16.mxu0 0
        %1077 = vmatpush1.bf16.msra.mxu0 0
        %1078 = vmatprep.subr.bf16.mxu0 0
        %1079 = vmatpush1.bf16.msra.mxu0 0
        %1080 = vmatprep.subr.bf16.mxu0 0
        %1081 = vmatpush1.bf16.msra.mxu0 0
        %1082 = vmatprep.subr.bf16.mxu0 0
        %1083 = vmatpush1.bf16.msra.mxu0 0
        %1084 = vmatprep.subr.bf16.mxu0 0
        %1085 = vmatpush1.bf16.msra.mxu0 0
        %1086 = vmatprep.subr.bf16.mxu0 0
        %1087 = vmatpush1.bf16.msra.mxu0 0
        %1088 = vmatprep.mubr.bf16.mxu0 0
        %1089 = vmatmul.mubr.bf16.gmra.mrb[0].mxu0 %v1054
        %v1090 = vpop.f32.mrb[0].mxu0
        %v1091 = vadd.f32 0.0, %v1090
        %v1092 = vpop.f32.mrb[0].mxu0
        %v1093 = vadd.f32 0.0, %v1092
        %v1094 = vpop.f32.mrb[0].mxu0
        %v1095 = vpop.f32.mrb[0].mxu0
        %1096 = vdwg.mxu0
        %1097 = vmatprep.subr.bf16.mxu0 0
        %1098 = vmatpush1.bf16.msra.mxu0 %v471
        %1099 = vmatprep.subr.bf16.mxu0 0
        %1100 = vmatpush1.bf16.msra.mxu0 0
        %1101 = vmatprep.subr.bf16.mxu0 0
        %1102 = vmatpush1.bf16.msra.mxu0 0
        %1103 = vmatprep.subr.bf16.mxu0 0
        %1104 = vmatpush1.bf16.msra.mxu0 0
        %1105 = vmatprep.subr.bf16.mxu0 0
        %1106 = vmatpush1.bf16.msra.mxu0 0
        %1107 = vmatprep.subr.bf16.mxu0 0
        %1108 = vmatpush1.bf16.msra.mxu0 0
        %1109 = vmatprep.subr.bf16.mxu0 0
        %1110 = vmatpush1.bf16.msra.mxu0 0
        %1111 = vmatprep.subr.bf16.mxu0 0
        %1112 = vmatpush1.bf16.msra.mxu0 0
        %1113 = vmatprep.subr.bf16.mxu0 0
        %1114 = vmatpush1.bf16.msra.mxu0 0
        %1115 = vmatprep.subr.bf16.mxu0 0
        %1116 = vmatpush1.bf16.msra.mxu0 0
        %1117 = vmatprep.subr.bf16.mxu0 0
        %1118 = vmatpush1.bf16.msra.mxu0 0
        %1119 = vmatprep.subr.bf16.mxu0 0
        %1120 = vmatpush1.bf16.msra.mxu0 0
        %1121 = vmatprep.subr.bf16.mxu0 0
        %1122 = vmatpush1.bf16.msra.mxu0 0
        %1123 = vmatprep.subr.bf16.mxu0 0
        %1124 = vmatpush1.bf16.msra.mxu0 0
        %1125 = vmatprep.subr.bf16.mxu0 0
        %1126 = vmatpush1.bf16.msra.mxu0 0
        %1127 = vmatprep.subr.bf16.mxu0 0
        %1128 = vmatpush1.bf16.msra.mxu0 0
        %1129 = vmatprep.mubr.bf16.mxu0 0
        %1130 = vmatmul.mubr.bf16.gmra.mrb[0].mxu0 %v1054
        %v1131 = vpop.f32.mrb[0].mxu0
        %v1132 = vadd.f32 0.0, %v1131
        %v1133 = vpop.f32.mrb[0].mxu0
        %v1134 = vpop.f32.mrb[0].mxu0
        %v1135 = vpop.f32.mrb[0].mxu0
        %1136 = vdwg.mxu0
        %1137 = vrot.lane.b32.xlu0 %v1091, 111
        %v1138 = vpop.permute.xlu0 %1137
        %1139 = vrot.lane.b32.xlu0 %v1093, 111
        %v1140 = vpop.permute.xlu0 %1139
        %1141 = vrot.lane.b32.xlu0 %v1132, 111
        %v1142 = vpop.permute.xlu0 %1141
        %vm1143 = vcmp.lt.s32.totalorder %v561, 111
        %v1144 = vsel %vm1143, %v1140, %v1142
        %v1145 = vsel %vm1143, %v1138, %v1140
        %v1146 = vsel %vm1143, %v1142, %v1138
        %v1147 = vadd.f32 %v1048, %v1145
        %v1148 = vadd.f32 %v1049, %v1144
        %v1149 = vadd.f32 %v1050, %v1146
        %s1150 = scalar_lea.vmem %s1, 14
        %v1151 = vld [vmem:[%s1150] sm:$0x3]
        %v1153 = vsel %vm459, %v1151, 0
        %1155 = vmatprep.subr.bf16.mxu0 %v468
        %1156 = vmatpush1.bf16.msra.mxu0 %v465
        %1157 = vmatprep.subr.bf16.mxu0 0
        %1158 = vmatpush1.bf16.msra.mxu0 0
        %1159 = vmatprep.subr.bf16.mxu0 0
        %1160 = vmatpush1.bf16.msra.mxu0 0
        %1161 = vmatprep.subr.bf16.mxu0 0
        %1162 = vmatpush1.bf16.msra.mxu0 0
        %1163 = vmatprep.subr.bf16.mxu0 0
        %1164 = vmatpush1.bf16.msra.mxu0 0
        %1165 = vmatprep.subr.bf16.mxu0 0
        %1166 = vmatpush1.bf16.msra.mxu0 0
        %1167 = vmatprep.subr.bf16.mxu0 0
        %1168 = vmatpush1.bf16.msra.mxu0 0
        %1169 = vmatprep.subr.bf16.mxu0 0
        %1170 = vmatpush1.bf16.msra.mxu0 0
        %1171 = vmatprep.subr.bf16.mxu0 0
        %1172 = vmatpush1.bf16.msra.mxu0 0
        %1173 = vmatprep.subr.bf16.mxu0 0
        %1174 = vmatpush1.bf16.msra.mxu0 0
        %1175 = vmatprep.subr.bf16.mxu0 0
        %1176 = vmatpush1.bf16.msra.mxu0 0
        %1177 = vmatprep.subr.bf16.mxu0 0
        %1178 = vmatpush1.bf16.msra.mxu0 0
        %1179 = vmatprep.subr.bf16.mxu0 0
        %1180 = vmatpush1.bf16.msra.mxu0 0
        %1181 = vmatprep.subr.bf16.mxu0 0
        %1182 = vmatpush1.bf16.msra.mxu0 0
        %1183 = vmatprep.subr.bf16.mxu0 0
        %1184 = vmatpush1.bf16.msra.mxu0 0
        %1185 = vmatprep.subr.bf16.mxu0 0
        %1186 = vmatpush1.bf16.msra.mxu0 0
        %1187 = vmatprep.mubr.bf16.mxu0 0
        %1188 = vmatmul.mubr.bf16.gmra.mrb[0].mxu0 %v1153
        %v1189 = vpop.f32.mrb[0].mxu0
        %v1190 = vadd.f32 0.0, %v1189
        %v1191 = vpop.f32.mrb[0].mxu0
        %v1192 = vadd.f32 0.0, %v1191
        %v1193 = vpop.f32.mrb[0].mxu0
        %v1194 = vpop.f32.mrb[0].mxu0
        %1195 = vdwg.mxu0
        %1196 = vmatprep.subr.bf16.mxu0 0
        %1197 = vmatpush1.bf16.msra.mxu0 %v471
        %1198 = vmatprep.subr.bf16.mxu0 0
        %1199 = vmatpush1.bf16.msra.mxu0 0
        %1200 = vmatprep.subr.bf16.mxu0 0
        %1201 = vmatpush1.bf16.msra.mxu0 0
        %1202 = vmatprep.subr.bf16.mxu0 0
        %1203 = vmatpush1.bf16.msra.mxu0 0
        %1204 = vmatprep.subr.bf16.mxu0 0
        %1205 = vmatpush1.bf16.msra.mxu0 0
        %1206 = vmatprep.subr.bf16.mxu0 0
        %1207 = vmatpush1.bf16.msra.mxu0 0
        %1208 = vmatprep.subr.bf16.mxu0 0
        %1209 = vmatpush1.bf16.msra.mxu0 0
        %1210 = vmatprep.subr.bf16.mxu0 0
        %1211 = vmatpush1.bf16.msra.mxu0 0
        %1212 = vmatprep.subr.bf16.mxu0 0
        %1213 = vmatpush1.bf16.msra.mxu0 0
        %1214 = vmatprep.subr.bf16.mxu0 0
        %1215 = vmatpush1.bf16.msra.mxu0 0
        %1216 = vmatprep.subr.bf16.mxu0 0
        %1217 = vmatpush1.bf16.msra.mxu0 0
        %1218 = vmatprep.subr.bf16.mxu0 0
        %1219 = vmatpush1.bf16.msra.mxu0 0
        %1220 = vmatprep.subr.bf16.mxu0 0
        %1221 = vmatpush1.bf16.msra.mxu0 0
        %1222 = vmatprep.subr.bf16.mxu0 0
        %1223 = vmatpush1.bf16.msra.mxu0 0
        %1224 = vmatprep.subr.bf16.mxu0 0
        %1225 = vmatpush1.bf16.msra.mxu0 0
        %1226 = vmatprep.subr.bf16.mxu0 0
        %1227 = vmatpush1.bf16.msra.mxu0 0
        %1228 = vmatprep.mubr.bf16.mxu0 0
        %1229 = vmatmul.mubr.bf16.gmra.mrb[0].mxu0 %v1153
        %v1230 = vpop.f32.mrb[0].mxu0
        %v1231 = vadd.f32 0.0, %v1230
        %v1232 = vpop.f32.mrb[0].mxu0
        %v1233 = vpop.f32.mrb[0].mxu0
        %v1234 = vpop.f32.mrb[0].mxu0
        %1235 = vdwg.mxu0
        %1236 = vrot.lane.b32.xlu0 %v1190, 110
        %v1237 = vpop.permute.xlu0 %1236
        %1238 = vrot.lane.b32.xlu0 %v1192, 110
        %v1239 = vpop.permute.xlu0 %1238
        %1240 = vrot.lane.b32.xlu0 %v1231, 110
        %v1241 = vpop.permute.xlu0 %1240
        %vm1242 = vcmp.lt.s32.totalorder %v561, 110
        %v1243 = vsel %vm1242, %v1239, %v1241
        %v1244 = vsel %vm1242, %v1237, %v1239
        %v1245 = vsel %vm1242, %v1241, %v1237
        %v1246 = vadd.f32 %v1147, %v1244
        %v1247 = vadd.f32 %v1148, %v1243
        %v1248 = vadd.f32 %v1149, %v1245
        %s1249 = scalar_lea.vmem %s1, 16
        %v1250 = vld [vmem:[%s1249] sm:$0x3]
        %v1252 = vsel %vm459, %v1250, 0
        %1254 = vmatprep.subr.bf16.mxu0 %v468
        %1255 = vmatpush1.bf16.msra.mxu0 %v465
        %1256 = vmatprep.subr.bf16.mxu0 0
        %1257 = vmatpush1.bf16.msra.mxu0 0
        %1258 = vmatprep.subr.bf16.mxu0 0
        %1259 = vmatpush1.bf16.msra.mxu0 0
        %1260 = vmatprep.subr.bf16.mxu0 0
        %1261 = vmatpush1.bf16.msra.mxu0 0
        %1262 = vmatprep.subr.bf16.mxu0 0
        %1263 = vmatpush1.bf16.msra.mxu0 0
        %1264 = vmatprep.subr.bf16.mxu0 0
        %1265 = vmatpush1.bf16.msra.mxu0 0
        %1266 = vmatprep.subr.bf16.mxu0 0
        %1267 = vmatpush1.bf16.msra.mxu0 0
        %1268 = vmatprep.subr.bf16.mxu0 0
        %1269 = vmatpush1.bf16.msra.mxu0 0
        %1270 = vmatprep.subr.bf16.mxu0 0
        %1271 = vmatpush1.bf16.msra.mxu0 0
        %1272 = vmatprep.subr.bf16.mxu0 0
        %1273 = vmatpush1.bf16.msra.mxu0 0
        %1274 = vmatprep.subr.bf16.mxu0 0
        %1275 = vmatpush1.bf16.msra.mxu0 0
        %1276 = vmatprep.subr.bf16.mxu0 0
        %1277 = vmatpush1.bf16.msra.mxu0 0
        %1278 = vmatprep.subr.bf16.mxu0 0
        %1279 = vmatpush1.bf16.msra.mxu0 0
        %1280 = vmatprep.subr.bf16.mxu0 0
        %1281 = vmatpush1.bf16.msra.mxu0 0
        %1282 = vmatprep.subr.bf16.mxu0 0
        %1283 = vmatpush1.bf16.msra.mxu0 0
        %1284 = vmatprep.subr.bf16.mxu0 0
        %1285 = vmatpush1.bf16.msra.mxu0 0
        %1286 = vmatprep.mubr.bf16.mxu0 0
        %1287 = vmatmul.mubr.bf16.gmra.mrb[0].mxu0 %v1252
        %v1288 = vpop.f32.mrb[0].mxu0
        %v1289 = vadd.f32 0.0, %v1288
        %v1290 = vpop.f32.mrb[0].mxu0
        %v1291 = vadd.f32 0.0, %v1290
        %v1292 = vpop.f32.mrb[0].mxu0
        %v1293 = vpop.f32.mrb[0].mxu0
        %1294 = vdwg.mxu0
        %1295 = vmatprep.subr.bf16.mxu0 0
        %1296 = vmatpush1.bf16.msra.mxu0 %v471
        %1297 = vmatprep.subr.bf16.mxu0 0
        %1298 = vmatpush1.bf16.msra.mxu0 0
        %1299 = vmatprep.subr.bf16.mxu0 0
        %1300 = vmatpush1.bf16.msra.mxu0 0
        %1301 = vmatprep.subr.bf16.mxu0 0
        %1302 = vmatpush1.bf16.msra.mxu0 0
        %1303 = vmatprep.subr.bf16.mxu0 0
        %1304 = vmatpush1.bf16.msra.mxu0 0
        %1305 = vmatprep.subr.bf16.mxu0 0
        %1306 = vmatpush1.bf16.msra.mxu0 0
        %1307 = vmatprep.subr.bf16.mxu0 0
        %1308 = vmatpush1.bf16.msra.mxu0 0
        %1309 = vmatprep.subr.bf16.mxu0 0
        %1310 = vmatpush1.bf16.msra.mxu0 0
        %1311 = vmatprep.subr.bf16.mxu0 0
        %1312 = vmatpush1.bf16.msra.mxu0 0
        %1313 = vmatprep.subr.bf16.mxu0 0
        %1314 = vmatpush1.bf16.msra.mxu0 0
        %1315 = vmatprep.subr.bf16.mxu0 0
        %1316 = vmatpush1.bf16.msra.mxu0 0
        %1317 = vmatprep.subr.bf16.mxu0 0
        %1318 = vmatpush1.bf16.msra.mxu0 0
        %1319 = vmatprep.subr.bf16.mxu0 0
        %1320 = vmatpush1.bf16.msra.mxu0 0
        %1321 = vmatprep.subr.bf16.mxu0 0
        %1322 = vmatpush1.bf16.msra.mxu0 0
        %1323 = vmatprep.subr.bf16.mxu0 0
        %1324 = vmatpush1.bf16.msra.mxu0 0
        %1325 = vmatprep.subr.bf16.mxu0 0
        %1326 = vmatpush1.bf16.msra.mxu0 0
        %1327 = vmatprep.mubr.bf16.mxu0 0
        %1328 = vmatmul.mubr.bf16.gmra.mrb[0].mxu0 %v1252
        %v1329 = vpop.f32.mrb[0].mxu0
        %v1330 = vadd.f32 0.0, %v1329
        %v1331 = vpop.f32.mrb[0].mxu0
        %v1332 = vpop.f32.mrb[0].mxu0
        %v1333 = vpop.f32.mrb[0].mxu0
        %1334 = vdwg.mxu0
        %1335 = vrot.lane.b32.xlu0 %v1289, 109
        %v1336 = vpop.permute.xlu0 %1335
        %1337 = vrot.lane.b32.xlu0 %v1291, 109
        %v1338 = vpop.permute.xlu0 %1337
        %1339 = vrot.lane.b32.xlu0 %v1330, 109
        %v1340 = vpop.permute.xlu0 %1339
        %vm1341 = vcmp.lt.s32.totalorder %v561, 109
        %v1342 = vsel %vm1341, %v1338, %v1340
        %v1343 = vsel %vm1341, %v1336, %v1338
        %v1344 = vsel %vm1341, %v1340, %v1336
        %v1345 = vadd.f32 %v1246, %v1343
        %v1346 = vadd.f32 %v1247, %v1342
        %v1347 = vadd.f32 %v1248, %v1344
        %v1348 = vld [vmem:[%s2] sm:$0xf]
        %1350 = vset.pattern.permute.xlu0 0
        %1351 = vperm.xlu0 %1350, %v1348
        %v1352 = vpop.permute.xlu0 %1351
        %v1354 = vadd.f32 %v1345, %v1352
        %v1355 = vadd.f32 %v1346, %v1352
        %v1356 = vadd.f32 %v1347, %v1352
        %1357 = vmatprep.subr.mxu0 0.0
        %1358 = vmatpush1.msra.mxu0 %v387
        %1359 = vmatprep.subr.mxu0 0.0
        %1360 = vmatpush1.msra.mxu0 %v388
        %1361 = vmatprep.subr.mxu0 0.0
        %1362 = vmatpush1.msra.mxu0 %v389
        %1363 = vmatprep.subr.mxu0 0.0
        %1364 = vmatpush1.msra.mxu0 %v390
        %1365 = vmatprep.subr.mxu0 0.0
        %1366 = vmatpush1.msra.mxu0 %v391
        %1367 = vmatprep.subr.mxu0 0.0
        %1368 = vmatpush1.msra.mxu0 %v392
        %1369 = vmatprep.subr.mxu0 0.0
        %1370 = vmatpush1.msra.mxu0 %v393
        %1371 = vmatprep.subr.mxu0 0.0
        %1372 = vmatpush1.msra.mxu0 %v394
        %1373 = vmatprep.subr.mxu0 0.0
        %1374 = vmatpush1.msra.mxu0 %v395
        %1375 = vmatprep.subr.mxu0 0.0
        %1376 = vmatpush1.msra.mxu0 %v396
        %1377 = vmatprep.subr.mxu0 0.0
        %1378 = vmatpush1.msra.mxu0 %v397
        %1379 = vmatprep.subr.mxu0 0.0
        %1380 = vmatpush1.msra.mxu0 %v398
        %1381 = vmatprep.subr.mxu0 0.0
        %1382 = vmatpush1.msra.mxu0 %v399
        %1383 = vmatprep.subr.mxu0 0.0
        %1384 = vmatpush1.msra.mxu0 %v400
        %1385 = vmatprep.subr.mxu0 0.0
        %1386 = vmatpush1.msra.mxu0 %v401
        %1387 = vmatprep.subr.mxu0 0.0
        %1388 = vmatpush1.msra.mxu0 %v402
        %1389 = vmatprep.subr.mxu0 0.0
        %1390 = vmatpush1.msra.mxu0 %v403
        %1391 = vmatprep.subr.mxu0 0.0
        %1392 = vmatpush1.msra.mxu0 %v404
        %1393 = vmatprep.subr.mxu0 0.0
        %1394 = vmatpush1.msra.mxu0 %v405
        %1395 = vmatprep.subr.mxu0 0.0
        %1396 = vmatpush1.msra.mxu0 %v406
        %1397 = vmatprep.subr.mxu0 0.0
        %1398 = vmatpush1.msra.mxu0 %v407
        %1399 = vmatprep.subr.mxu0 0.0
        %1400 = vmatpush1.msra.mxu0 %v408
        %1401 = vmatprep.subr.mxu0 0.0
        %1402 = vmatpush1.msra.mxu0 %v409
        %1403 = vmatprep.subr.mxu0 0.0
        %1404 = vmatpush1.msra.mxu0 %v410
        %1405 = vmatprep.subr.mxu0 0.0
        %1406 = vmatpush1.msra.mxu0 %v411
        %1407 = vmatprep.subr.mxu0 0.0
        %1408 = vmatpush1.msra.mxu0 %v412
        %1409 = vmatprep.subr.mxu0 0.0
        %1410 = vmatpush1.msra.mxu0 %v413
        %1411 = vmatprep.subr.mxu0 0.0
        %1412 = vmatpush1.msra.mxu0 %v414
        %1413 = vmatprep.subr.mxu0 0.0
        %1414 = vmatpush1.msra.mxu0 %v415
        %1415 = vmatprep.subr.mxu0 0.0
        %1416 = vmatpush1.msra.mxu0 %v416
        %1417 = vmatprep.subr.mxu0 0.0
        %1418 = vmatpush1.msra.mxu0 %v417
        %1419 = vmatprep.subr.mxu0 0.0
        %1420 = vmatpush1.msra.mxu0 %v418
        %1421 = vmatprep.mubr.f32.mxu0 %v1355
        %1422 = vmatmul.mubr.f32.gmra.mrb[0].mxu0 %v1354
        %v1423 = vpop.f32.mrb[0].mxu0
        %v1424 = vadd.f32 0.0, %v1423
        %v1425 = vpop.f32.mrb[0].mxu0
        %1426 = vdwg.mxu0
        %1427 = vmatprep.subr.mxu0 0.0
        %1428 = vmatpush1.msra.mxu0 %v419
        %1429 = vmatprep.subr.mxu0 0.0
        %1430 = vmatpush1.msra.mxu0 %v420
        %1431 = vmatprep.subr.mxu0 0.0
        %1432 = vmatpush1.msra.mxu0 %v421
        %1433 = vmatprep.subr.mxu0 0.0
        %1434 = vmatpush1.msra.mxu0 %v422
        %1435 = vmatprep.subr.mxu0 0.0
        %1436 = vmatpush1.msra.mxu0 %v423
        %1437 = vmatprep.subr.mxu0 0.0
        %1438 = vmatpush1.msra.mxu0 %v424
        %1439 = vmatprep.subr.mxu0 0.0
        %1440 = vmatpush1.msra.mxu0 %v425
        %1441 = vmatprep.subr.mxu0 0.0
        %1442 = vmatpush1.msra.mxu0 %v426
        %1443 = vmatprep.subr.mxu0 0.0
        %1444 = vmatpush1.msra.mxu0 %v427
        %1445 = vmatprep.subr.mxu0 0.0
        %1446 = vmatpush1.msra.mxu0 %v428
        %1447 = vmatprep.subr.mxu0 0.0
        %1448 = vmatpush1.msra.mxu0 %v429
        %1449 = vmatprep.subr.mxu0 0.0
        %1450 = vmatpush1.msra.mxu0 %v430
        %1451 = vmatprep.subr.mxu0 0.0
        %1452 = vmatpush1.msra.mxu0 %v431
        %1453 = vmatprep.subr.mxu0 0.0
        %1454 = vmatpush1.msra.mxu0 %v432
        %1455 = vmatprep.subr.mxu0 0.0
        %1456 = vmatpush1.msra.mxu0 %v433
        %1457 = vmatprep.subr.mxu0 0.0
        %1458 = vmatpush1.msra.mxu0 %v434
        %1459 = vmatprep.subr.mxu0 0.0
        %1460 = vmatpush1.msra.mxu0 0.0
        %1461 = vmatprep.subr.mxu0 0.0
        %1462 = vmatpush1.msra.mxu0 0.0
        %1463 = vmatprep.subr.mxu0 0.0
        %1464 = vmatpush1.msra.mxu0 0.0
        %1465 = vmatprep.subr.mxu0 0.0
        %1466 = vmatpush1.msra.mxu0 0.0
        %1467 = vmatprep.subr.mxu0 0.0
        %1468 = vmatpush1.msra.mxu0 0.0
        %1469 = vmatprep.subr.mxu0 0.0
        %1470 = vmatpush1.msra.mxu0 0.0
        %1471 = vmatprep.subr.mxu0 0.0
        %1472 = vmatpush1.msra.mxu0 0.0
        %1473 = vmatprep.subr.mxu0 0.0
        %1474 = vmatpush1.msra.mxu0 0.0
        %1475 = vmatprep.subr.mxu0 0.0
        %1476 = vmatpush1.msra.mxu0 0.0
        %1477 = vmatprep.subr.mxu0 0.0
        %1478 = vmatpush1.msra.mxu0 0.0
        %1479 = vmatprep.subr.mxu0 0.0
        %1480 = vmatpush1.msra.mxu0 0.0
        %1481 = vmatprep.subr.mxu0 0.0
        %1482 = vmatpush1.msra.mxu0 0.0
        %1483 = vmatprep.subr.mxu0 0.0
        %1484 = vmatpush1.msra.mxu0 0.0
        %1485 = vmatprep.subr.mxu0 0.0
        %1486 = vmatpush1.msra.mxu0 0.0
        %1487 = vmatprep.subr.mxu0 0.0
        %1488 = vmatpush1.msra.mxu0 0.0
        %1489 = vmatprep.subr.mxu0 0.0
        %1490 = vmatpush1.msra.mxu0 0.0
        %1491 = vmatprep.mubr.f32.mxu0 0.0
        %1492 = vmatmul.mubr.f32.gmra.mrb[0].mxu0 %v1356
        %v1493 = vpop.f32.mrb[0].mxu0
        %v1494 = vadd.f32 %v1424, %v1493
        %v1495 = vpop.f32.mrb[0].mxu0
        %1496 = vdwg.mxu0
        %v1497 = vmul.f32 %v1354, %v1354
        %v1498 = vmul.f32 %v1355, %v1355
        %v1499 = vmul.f32 %v1356, %v1356
        %1500 = vmatprep.subr.mxu0 0.0
        %1501 = vmatpush1.msra.mxu0 %v387
        %1502 = vmatprep.subr.mxu0 0.0
        %1503 = vmatpush1.msra.mxu0 %v388
        %1504 = vmatprep.subr.mxu0 0.0
        %1505 = vmatpush1.msra.mxu0 %v389
        %1506 = vmatprep.subr.mxu0 0.0
        %1507 = vmatpush1.msra.mxu0 %v390
        %1508 = vmatprep.subr.mxu0 0.0
        %1509 = vmatpush1.msra.mxu0 %v391
        %1510 = vmatprep.subr.mxu0 0.0
        %1511 = vmatpush1.msra.mxu0 %v392
        %1512 = vmatprep.subr.mxu0 0.0
        %1513 = vmatpush1.msra.mxu0 %v393
        %1514 = vmatprep.subr.mxu0 0.0
        %1515 = vmatpush1.msra.mxu0 %v394
        %1516 = vmatprep.subr.mxu0 0.0
        %1517 = vmatpush1.msra.mxu0 %v395
        %1518 = vmatprep.subr.mxu0 0.0
        %1519 = vmatpush1.msra.mxu0 %v396
        %1520 = vmatprep.subr.mxu0 0.0
        %1521 = vmatpush1.msra.mxu0 %v397
        %1522 = vmatprep.subr.mxu0 0.0
        %1523 = vmatpush1.msra.mxu0 %v398
        %1524 = vmatprep.subr.mxu0 0.0
        %1525 = vmatpush1.msra.mxu0 %v399
        %1526 = vmatprep.subr.mxu0 0.0
        %1527 = vmatpush1.msra.mxu0 %v400
        %1528 = vmatprep.subr.mxu0 0.0
        %1529 = vmatpush1.msra.mxu0 %v401
        %1530 = vmatprep.subr.mxu0 0.0
        %1531 = vmatpush1.msra.mxu0 %v402
        %1532 = vmatprep.subr.mxu0 0.0
        %1533 = vmatpush1.msra.mxu0 %v403
        %1534 = vmatprep.subr.mxu0 0.0
        %1535 = vmatpush1.msra.mxu0 %v404
        %1536 = vmatprep.subr.mxu0 0.0
        %1537 = vmatpush1.msra.mxu0 %v405
        %1538 = vmatprep.subr.mxu0 0.0
        %1539 = vmatpush1.msra.mxu0 %v406
        %1540 = vmatprep.subr.mxu0 0.0
        %1541 = vmatpush1.msra.mxu0 %v407
        %1542 = vmatprep.subr.mxu0 0.0
        %1543 = vmatpush1.msra.mxu0 %v408
        %1544 = vmatprep.subr.mxu0 0.0
        %1545 = vmatpush1.msra.mxu0 %v409
        %1546 = vmatprep.subr.mxu0 0.0
        %1547 = vmatpush1.msra.mxu0 %v410
        %1548 = vmatprep.subr.mxu0 0.0
        %1549 = vmatpush1.msra.mxu0 %v411
        %1550 = vmatprep.subr.mxu0 0.0
        %1551 = vmatpush1.msra.mxu0 %v412
        %1552 = vmatprep.subr.mxu0 0.0
        %1553 = vmatpush1.msra.mxu0 %v413
        %1554 = vmatprep.subr.mxu0 0.0
        %1555 = vmatpush1.msra.mxu0 %v414
        %1556 = vmatprep.subr.mxu0 0.0
        %1557 = vmatpush1.msra.mxu0 %v415
        %1558 = vmatprep.subr.mxu0 0.0
        %1559 = vmatpush1.msra.mxu0 %v416
        %1560 = vmatprep.subr.mxu0 0.0
        %1561 = vmatpush1.msra.mxu0 %v417
        %1562 = vmatprep.subr.mxu0 0.0
        %1563 = vmatpush1.msra.mxu0 %v418
        %1564 = vmatprep.mubr.f32.mxu0 %v1498
        %1565 = vmatmul.mubr.f32.gmra.mrb[0].mxu0 %v1497
        %v1566 = vpop.f32.mrb[0].mxu0
        %v1567 = vadd.f32 0.0, %v1566
        %v1568 = vpop.f32.mrb[0].mxu0
        %1569 = vdwg.mxu0
        %1570 = vmatprep.subr.mxu0 0.0
        %1571 = vmatpush1.msra.mxu0 %v419
        %1572 = vmatprep.subr.mxu0 0.0
        %1573 = vmatpush1.msra.mxu0 %v420
        %1574 = vmatprep.subr.mxu0 0.0
        %1575 = vmatpush1.msra.mxu0 %v421
        %1576 = vmatprep.subr.mxu0 0.0
        %1577 = vmatpush1.msra.mxu0 %v422
        %1578 = vmatprep.subr.mxu0 0.0
        %1579 = vmatpush1.msra.mxu0 %v423
        %1580 = vmatprep.subr.mxu0 0.0
        %1581 = vmatpush1.msra.mxu0 %v424
        %1582 = vmatprep.subr.mxu0 0.0
        %1583 = vmatpush1.msra.mxu0 %v425
        %1584 = vmatprep.subr.mxu0 0.0
        %1585 = vmatpush1.msra.mxu0 %v426
        %1586 = vmatprep.subr.mxu0 0.0
        %1587 = vmatpush1.msra.mxu0 %v427
        %1588 = vmatprep.subr.mxu0 0.0
        %1589 = vmatpush1.msra.mxu0 %v428
        %1590 = vmatprep.subr.mxu0 0.0
        %1591 = vmatpush1.msra.mxu0 %v429
        %1592 = vmatprep.subr.mxu0 0.0
        %1593 = vmatpush1.msra.mxu0 %v430
        %1594 = vmatprep.subr.mxu0 0.0
        %1595 = vmatpush1.msra.mxu0 %v431
        %1596 = vmatprep.subr.mxu0 0.0
        %1597 = vmatpush1.msra.mxu0 %v432
        %1598 = vmatprep.subr.mxu0 0.0
        %1599 = vmatpush1.msra.mxu0 %v433
        %1600 = vmatprep.subr.mxu0 0.0
        %1601 = vmatpush1.msra.mxu0 %v434
        %1602 = vmatprep.subr.mxu0 0.0
        %1603 = vmatpush1.msra.mxu0 0.0
        %1604 = vmatprep.subr.mxu0 0.0
        %1605 = vmatpush1.msra.mxu0 0.0
        %1606 = vmatprep.subr.mxu0 0.0
        %1607 = vmatpush1.msra.mxu0 0.0
        %1608 = vmatprep.subr.mxu0 0.0
        %1609 = vmatpush1.msra.mxu0 0.0
        %1610 = vmatprep.subr.mxu0 0.0
        %1611 = vmatpush1.msra.mxu0 0.0
        %1612 = vmatprep.subr.mxu0 0.0
        %1613 = vmatpush1.msra.mxu0 0.0
        %1614 = vmatprep.subr.mxu0 0.0
        %1615 = vmatpush1.msra.mxu0 0.0
        %1616 = vmatprep.subr.mxu0 0.0
        %1617 = vmatpush1.msra.mxu0 0.0
        %1618 = vmatprep.subr.mxu0 0.0
        %1619 = vmatpush1.msra.mxu0 0.0
        %1620 = vmatprep.subr.mxu0 0.0
        %1621 = vmatpush1.msra.mxu0 0.0
        %1622 = vmatprep.subr.mxu0 0.0
        %1623 = vmatpush1.msra.mxu0 0.0
        %1624 = vmatprep.subr.mxu0 0.0
        %1625 = vmatpush1.msra.mxu0 0.0
        %1626 = vmatprep.subr.mxu0 0.0
        %1627 = vmatpush1.msra.mxu0 0.0
        %1628 = vmatprep.subr.mxu0 0.0
        %1629 = vmatpush1.msra.mxu0 0.0
        %1630 = vmatprep.subr.mxu0 0.0
        %1631 = vmatpush1.msra.mxu0 0.0
        %1632 = vmatprep.subr.mxu0 0.0
        %1633 = vmatpush1.msra.mxu0 0.0
        %1634 = vmatprep.mubr.f32.mxu0 0.0
        %1635 = vmatmul.mubr.f32.gmra.mrb[0].mxu0 %v1499
        %v1636 = vpop.f32.mrb[0].mxu0
        %v1637 = vadd.f32 %v1567, %v1636
        %v1638 = vpop.f32.mrb[0].mxu0
        %1639 = vdwg.mxu0
        %v1640 = vmul.f32 %v1494, 0.00390625
        %v1641 = vmul.f32 %v1637, 0.00390625
        %v1642 = vmul.f32 %v1640, %v1640
        %v1643 = vsub.f32 %v1641, %v1642
        %v1644 = vmax.f32 %v1643, 0.0
        %v1645 = vadd.f32 %v1644, 1e-05
        %v1646 = vrsqrt.pop %v1645
        %v1647 = vmul.f32 %v435, %v1646
        %v1648 = vsel %vm439, %v1647, 1.0
        %v1649 = vmul.f32 %v1647, %v1640
        %v1650 = vsub.f32 %v436, %v1649
        %v1651 = vsel %vm439, %v1650, 0.0
        %1653 = vset.pattern.permute.xlu0 0
        %1654 = vperm.xlu0 %1653, %v1648
        %v1655 = vpop.permute.xlu0 %1654
        %v1657 = vmul.f32 %v1354, %v1655
        %v1658 = vmul.f32 %v1355, %v1655
        %v1659 = vmul.f32 %v1356, %v1655
        %1661 = vset.pattern.permute.xlu0 0
        %1662 = vperm.xlu0 %1661, %v1651
        %v1663 = vpop.permute.xlu0 %1662
        %v1665 = vadd.f32 %v1657, %v1663
        %v1666 = vadd.f32 %v1658, %v1663
        %v1667 = vadd.f32 %v1659, %v1663
        %v1669 = vlaneseq
        %v1670 = vshrl.u32 %v1669, 7
        %v1671 = vsub.s32 0, %v1670
        %v1672 = vrot.slane %v386, %v1671
        %v1673 = vlaneseq
        %v1674 = vshrl.u32 %v1673, 7
        %v1675 = vsub.s32 1, %v1674
        %v1676 = vrot.slane %v386, %v1675
        %v1677 = vlaneseq
        %v1678 = vshrl.u32 %v1677, 7
        %v1679 = vsub.s32 2, %v1678
        %v1680 = vrot.slane %v386, %v1679
        %v1684 = vmul.f32 %v1665, %v1672
        %v1685 = vmul.f32 %v1666, %v1676
        %v1686 = vmul.f32 %v1667, %v1680
        %v1687 = vmul.f32 %v1684, 0.1
        %v1688 = vmul.f32 %v1685, 0.1
        %v1689 = vmul.f32 %v1686, 0.1
        %v1690 = vmax.f32 %v1684, %v1687
        %v1691 = vmax.f32 %v1685, %v1688
        %v1692 = vmax.f32 %v1686, %v1689
        %v1693 = vpack.c.bf16 %v1690, %v1690
        %v1694 = vpack.c.bf16 %v1691, %v1691
        %v1695 = vpack.c.bf16 %v1692, %v1692
        %v1696 = vld [vmem:[%s3] sm:$0x3]
        %v1698 = vsel %vm459, %v1696, 0
        %v1701 = vsel %vm463, %v1693, 0
        %v1704 = vsel %vm463, %v1694, 0
        %v1707 = vsel %vm463, %v1695, 0
        %1709 = vmatprep.subr.bf16.mxu0 %v1704
        %1710 = vmatpush1.bf16.msra.mxu0 %v1701
        %1711 = vmatprep.subr.bf16.mxu0 0
        %1712 = vmatpush1.bf16.msra.mxu0 0
        %1713 = vmatprep.subr.bf16.mxu0 0
        %1714 = vmatpush1.bf16.msra.mxu0 0
        %1715 = vmatprep.subr.bf16.mxu0 0
        %1716 = vmatpush1.bf16.msra.mxu0 0
        %1717 = vmatprep.subr.bf16.mxu0 0
        %1718 = vmatpush1.bf16.msra.mxu0 0
        %1719 = vmatprep.subr.bf16.mxu0 0
        %1720 = vmatpush1.bf16.msra.mxu0 0
        %1721 = vmatprep.subr.bf16.mxu0 0
        %1722 = vmatpush1.bf16.msra.mxu0 0
        %1723 = vmatprep.subr.bf16.mxu0 0
        %1724 = vmatpush1.bf16.msra.mxu0 0
        %1725 = vmatprep.subr.bf16.mxu0 0
        %1726 = vmatpush1.bf16.msra.mxu0 0
        %1727 = vmatprep.subr.bf16.mxu0 0
        %1728 = vmatpush1.bf16.msra.mxu0 0
        %1729 = vmatprep.subr.bf16.mxu0 0
        %1730 = vmatpush1.bf16.msra.mxu0 0
        %1731 = vmatprep.subr.bf16.mxu0 0
        %1732 = vmatpush1.bf16.msra.mxu0 0
        %1733 = vmatprep.subr.bf16.mxu0 0
        %1734 = vmatpush1.bf16.msra.mxu0 0
        %1735 = vmatprep.subr.bf16.mxu0 0
        %1736 = vmatpush1.bf16.msra.mxu0 0
        %1737 = vmatprep.subr.bf16.mxu0 0
        %1738 = vmatpush1.bf16.msra.mxu0 0
        %1739 = vmatprep.subr.bf16.mxu0 0
        %1740 = vmatpush1.bf16.msra.mxu0 0
        %1741 = vmatprep.mubr.bf16.mxu0 0
        %1742 = vmatmul.mubr.bf16.gmra.mrb[0].mxu0 %v1698
        %v1743 = vpop.f32.mrb[0].mxu0
        %v1744 = vadd.f32 0.0, %v1743
        %v1745 = vpop.f32.mrb[0].mxu0
        %v1746 = vadd.f32 0.0, %v1745
        %v1747 = vpop.f32.mrb[0].mxu0
        %v1748 = vpop.f32.mrb[0].mxu0
        %1749 = vdwg.mxu0
        %1750 = vmatprep.subr.bf16.mxu0 0
        %1751 = vmatpush1.bf16.msra.mxu0 %v1707
        %1752 = vmatprep.subr.bf16.mxu0 0
        %1753 = vmatpush1.bf16.msra.mxu0 0
        %1754 = vmatprep.subr.bf16.mxu0 0
        %1755 = vmatpush1.bf16.msra.mxu0 0
        %1756 = vmatprep.subr.bf16.mxu0 0
        %1757 = vmatpush1.bf16.msra.mxu0 0
        %1758 = vmatprep.subr.bf16.mxu0 0
        %1759 = vmatpush1.bf16.msra.mxu0 0
        %1760 = vmatprep.subr.bf16.mxu0 0
        %1761 = vmatpush1.bf16.msra.mxu0 0
        %1762 = vmatprep.subr.bf16.mxu0 0
        %1763 = vmatpush1.bf16.msra.mxu0 0
        %1764 = vmatprep.subr.bf16.mxu0 0
        %1765 = vmatpush1.bf16.msra.mxu0 0
        %1766 = vmatprep.subr.bf16.mxu0 0
        %1767 = vmatpush1.bf16.msra.mxu0 0
        %1768 = vmatprep.subr.bf16.mxu0 0
        %1769 = vmatpush1.bf16.msra.mxu0 0
        %1770 = vmatprep.subr.bf16.mxu0 0
        %1771 = vmatpush1.bf16.msra.mxu0 0
        %1772 = vmatprep.subr.bf16.mxu0 0
        %1773 = vmatpush1.bf16.msra.mxu0 0
        %1774 = vmatprep.subr.bf16.mxu0 0
        %1775 = vmatpush1.bf16.msra.mxu0 0
        %1776 = vmatprep.subr.bf16.mxu0 0
        %1777 = vmatpush1.bf16.msra.mxu0 0
        %1778 = vmatprep.subr.bf16.mxu0 0
        %1779 = vmatpush1.bf16.msra.mxu0 0
        %1780 = vmatprep.subr.bf16.mxu0 0
        %1781 = vmatpush1.bf16.msra.mxu0 0
        %1782 = vmatprep.mubr.bf16.mxu0 0
        %1783 = vmatmul.mubr.bf16.gmra.mrb[0].mxu0 %v1698
        %v1784 = vpop.f32.mrb[0].mxu0
        %v1785 = vadd.f32 0.0, %v1784
        %v1786 = vpop.f32.mrb[0].mxu0
        %v1787 = vpop.f32.mrb[0].mxu0
        %v1788 = vpop.f32.mrb[0].mxu0
        %1789 = vdwg.mxu0
        %1790 = vrot.lane.b32.xlu0 %v1744, 19
        %v1791 = vpop.permute.xlu0 %1790
        %1792 = vrot.lane.b32.xlu0 %v1746, 19
        %v1793 = vpop.permute.xlu0 %1792
        %1794 = vrot.lane.b32.xlu0 %v1785, 19
        %v1795 = vpop.permute.xlu0 %1794
        %v1796 = vsel %vm562, %v1793, %v1795
        %v1797 = vsel %vm562, %v1791, %v1793
        %v1798 = vsel %vm562, %v1795, %v1791
        %s1799 = scalar_lea.vmem %s3, 2
        %v1800 = vld [vmem:[%s1799] sm:$0x3]
        %v1802 = vsel %vm459, %v1800, 0
        %1804 = vmatprep.subr.bf16.mxu0 %v1704
        %1805 = vmatpush1.bf16.msra.mxu0 %v1701
        %1806 = vmatprep.subr.bf16.mxu0 0
        %1807 = vmatpush1.bf16.msra.mxu0 0
        %1808 = vmatprep.subr.bf16.mxu0 0
        %1809 = vmatpush1.bf16.msra.mxu0 0
        %1810 = vmatprep.subr.bf16.mxu0 0
        %1811 = vmatpush1.bf16.msra.mxu0 0
        %1812 = vmatprep.subr.bf16.mxu0 0
        %1813 = vmatpush1.bf16.msra.mxu0 0
        %1814 = vmatprep.subr.bf16.mxu0 0
        %1815 = vmatpush1.bf16.msra.mxu0 0
        %1816 = vmatprep.subr.bf16.mxu0 0
        %1817 = vmatpush1.bf16.msra.mxu0 0
        %1818 = vmatprep.subr.bf16.mxu0 0
        %1819 = vmatpush1.bf16.msra.mxu0 0
        %1820 = vmatprep.subr.bf16.mxu0 0
        %1821 = vmatpush1.bf16.msra.mxu0 0
        %1822 = vmatprep.subr.bf16.mxu0 0
        %1823 = vmatpush1.bf16.msra.mxu0 0
        %1824 = vmatprep.subr.bf16.mxu0 0
        %1825 = vmatpush1.bf16.msra.mxu0 0
        %1826 = vmatprep.subr.bf16.mxu0 0
        %1827 = vmatpush1.bf16.msra.mxu0 0
        %1828 = vmatprep.subr.bf16.mxu0 0
        %1829 = vmatpush1.bf16.msra.mxu0 0
        %1830 = vmatprep.subr.bf16.mxu0 0
        %1831 = vmatpush1.bf16.msra.mxu0 0
        %1832 = vmatprep.subr.bf16.mxu0 0
        %1833 = vmatpush1.bf16.msra.mxu0 0
        %1834 = vmatprep.subr.bf16.mxu0 0
        %1835 = vmatpush1.bf16.msra.mxu0 0
        %1836 = vmatprep.mubr.bf16.mxu0 0
        %1837 = vmatmul.mubr.bf16.gmra.mrb[0].mxu0 %v1802
        %v1838 = vpop.f32.mrb[0].mxu0
        %v1839 = vadd.f32 0.0, %v1838
        %v1840 = vpop.f32.mrb[0].mxu0
        %v1841 = vadd.f32 0.0, %v1840
        %v1842 = vpop.f32.mrb[0].mxu0
        %v1843 = vpop.f32.mrb[0].mxu0
        %1844 = vdwg.mxu0
        %1845 = vmatprep.subr.bf16.mxu0 0
        %1846 = vmatpush1.bf16.msra.mxu0 %v1707
        %1847 = vmatprep.subr.bf16.mxu0 0
        %1848 = vmatpush1.bf16.msra.mxu0 0
        %1849 = vmatprep.subr.bf16.mxu0 0
        %1850 = vmatpush1.bf16.msra.mxu0 0
        %1851 = vmatprep.subr.bf16.mxu0 0
        %1852 = vmatpush1.bf16.msra.mxu0 0
        %1853 = vmatprep.subr.bf16.mxu0 0
        %1854 = vmatpush1.bf16.msra.mxu0 0
        %1855 = vmatprep.subr.bf16.mxu0 0
        %1856 = vmatpush1.bf16.msra.mxu0 0
        %1857 = vmatprep.subr.bf16.mxu0 0
        %1858 = vmatpush1.bf16.msra.mxu0 0
        %1859 = vmatprep.subr.bf16.mxu0 0
        %1860 = vmatpush1.bf16.msra.mxu0 0
        %1861 = vmatprep.subr.bf16.mxu0 0
        %1862 = vmatpush1.bf16.msra.mxu0 0
        %1863 = vmatprep.subr.bf16.mxu0 0
        %1864 = vmatpush1.bf16.msra.mxu0 0
        %1865 = vmatprep.subr.bf16.mxu0 0
        %1866 = vmatpush1.bf16.msra.mxu0 0
        %1867 = vmatprep.subr.bf16.mxu0 0
        %1868 = vmatpush1.bf16.msra.mxu0 0
        %1869 = vmatprep.subr.bf16.mxu0 0
        %1870 = vmatpush1.bf16.msra.mxu0 0
        %1871 = vmatprep.subr.bf16.mxu0 0
        %1872 = vmatpush1.bf16.msra.mxu0 0
        %1873 = vmatprep.subr.bf16.mxu0 0
        %1874 = vmatpush1.bf16.msra.mxu0 0
        %1875 = vmatprep.subr.bf16.mxu0 0
        %1876 = vmatpush1.bf16.msra.mxu0 0
        %1877 = vmatprep.mubr.bf16.mxu0 0
        %1878 = vmatmul.mubr.bf16.gmra.mrb[0].mxu0 %v1802
        %v1879 = vpop.f32.mrb[0].mxu0
        %v1880 = vadd.f32 0.0, %v1879
        %v1881 = vpop.f32.mrb[0].mxu0
        %v1882 = vpop.f32.mrb[0].mxu0
        %v1883 = vpop.f32.mrb[0].mxu0
        %1884 = vdwg.mxu0
        %1885 = vrot.lane.b32.xlu0 %v1839, 18
        %v1886 = vpop.permute.xlu0 %1885
        %1887 = vrot.lane.b32.xlu0 %v1841, 18
        %v1888 = vpop.permute.xlu0 %1887
        %1889 = vrot.lane.b32.xlu0 %v1880, 18
        %v1890 = vpop.permute.xlu0 %1889
        %v1891 = vsel %vm658, %v1888, %v1890
        %v1892 = vsel %vm658, %v1886, %v1888
        %v1893 = vsel %vm658, %v1890, %v1886
        %v1894 = vadd.f32 %v1798, %v1893
        %v1895 = vadd.f32 %v1797, %v1892
        %v1896 = vadd.f32 %v1796, %v1891
        %s1897 = scalar_lea.vmem %s3, 4
        %v1898 = vld [vmem:[%s1897] sm:$0x3]
        %v1900 = vsel %vm459, %v1898, 0
        %1902 = vmatprep.subr.bf16.mxu0 %v1704
        %1903 = vmatpush1.bf16.msra.mxu0 %v1701
        %1904 = vmatprep.subr.bf16.mxu0 0
        %1905 = vmatpush1.bf16.msra.mxu0 0
        %1906 = vmatprep.subr.bf16.mxu0 0
        %1907 = vmatpush1.bf16.msra.mxu0 0
        %1908 = vmatprep.subr.bf16.mxu0 0
        %1909 = vmatpush1.bf16.msra.mxu0 0
        %1910 = vmatprep.subr.bf16.mxu0 0
        %1911 = vmatpush1.bf16.msra.mxu0 0
        %1912 = vmatprep.subr.bf16.mxu0 0
        %1913 = vmatpush1.bf16.msra.mxu0 0
        %1914 = vmatprep.subr.bf16.mxu0 0
        %1915 = vmatpush1.bf16.msra.mxu0 0
        %1916 = vmatprep.subr.bf16.mxu0 0
        %1917 = vmatpush1.bf16.msra.mxu0 0
        %1918 = vmatprep.subr.bf16.mxu0 0
        %1919 = vmatpush1.bf16.msra.mxu0 0
        %1920 = vmatprep.subr.bf16.mxu0 0
        %1921 = vmatpush1.bf16.msra.mxu0 0
        %1922 = vmatprep.subr.bf16.mxu0 0
        %1923 = vmatpush1.bf16.msra.mxu0 0
        %1924 = vmatprep.subr.bf16.mxu0 0
        %1925 = vmatpush1.bf16.msra.mxu0 0
        %1926 = vmatprep.subr.bf16.mxu0 0
        %1927 = vmatpush1.bf16.msra.mxu0 0
        %1928 = vmatprep.subr.bf16.mxu0 0
        %1929 = vmatpush1.bf16.msra.mxu0 0
        %1930 = vmatprep.subr.bf16.mxu0 0
        %1931 = vmatpush1.bf16.msra.mxu0 0
        %1932 = vmatprep.subr.bf16.mxu0 0
        %1933 = vmatpush1.bf16.msra.mxu0 0
        %1934 = vmatprep.mubr.bf16.mxu0 0
        %1935 = vmatmul.mubr.bf16.gmra.mrb[0].mxu0 %v1900
        %v1936 = vpop.f32.mrb[0].mxu0
        %v1937 = vadd.f32 0.0, %v1936
        %v1938 = vpop.f32.mrb[0].mxu0
        %v1939 = vadd.f32 0.0, %v1938
        %v1940 = vpop.f32.mrb[0].mxu0
        %v1941 = vpop.f32.mrb[0].mxu0
        %1942 = vdwg.mxu0
        %1943 = vmatprep.subr.bf16.mxu0 0
        %1944 = vmatpush1.bf16.msra.mxu0 %v1707
        %1945 = vmatprep.subr.bf16.mxu0 0
        %1946 = vmatpush1.bf16.msra.mxu0 0
        %1947 = vmatprep.subr.bf16.mxu0 0
        %1948 = vmatpush1.bf16.msra.mxu0 0
        %1949 = vmatprep.subr.bf16.mxu0 0
        %1950 = vmatpush1.bf16.msra.mxu0 0
        %1951 = vmatprep.subr.bf16.mxu0 0
        %1952 = vmatpush1.bf16.msra.mxu0 0
        %1953 = vmatprep.subr.bf16.mxu0 0
        %1954 = vmatpush1.bf16.msra.mxu0 0
        %1955 = vmatprep.subr.bf16.mxu0 0
        %1956 = vmatpush1.bf16.msra.mxu0 0
        %1957 = vmatprep.subr.bf16.mxu0 0
        %1958 = vmatpush1.bf16.msra.mxu0 0
        %1959 = vmatprep.subr.bf16.mxu0 0
        %1960 = vmatpush1.bf16.msra.mxu0 0
        %1961 = vmatprep.subr.bf16.mxu0 0
        %1962 = vmatpush1.bf16.msra.mxu0 0
        %1963 = vmatprep.subr.bf16.mxu0 0
        %1964 = vmatpush1.bf16.msra.mxu0 0
        %1965 = vmatprep.subr.bf16.mxu0 0
        %1966 = vmatpush1.bf16.msra.mxu0 0
        %1967 = vmatprep.subr.bf16.mxu0 0
        %1968 = vmatpush1.bf16.msra.mxu0 0
        %1969 = vmatprep.subr.bf16.mxu0 0
        %1970 = vmatpush1.bf16.msra.mxu0 0
        %1971 = vmatprep.subr.bf16.mxu0 0
        %1972 = vmatpush1.bf16.msra.mxu0 0
        %1973 = vmatprep.subr.bf16.mxu0 0
        %1974 = vmatpush1.bf16.msra.mxu0 0
        %1975 = vmatprep.mubr.bf16.mxu0 0
        %1976 = vmatmul.mubr.bf16.gmra.mrb[0].mxu0 %v1900
        %v1977 = vpop.f32.mrb[0].mxu0
        %v1978 = vadd.f32 0.0, %v1977
        %v1979 = vpop.f32.mrb[0].mxu0
        %v1980 = vpop.f32.mrb[0].mxu0
        %v1981 = vpop.f32.mrb[0].mxu0
        %1982 = vdwg.mxu0
        %1983 = vrot.lane.b32.xlu0 %v1937, 17
        %v1984 = vpop.permute.xlu0 %1983
        %1985 = vrot.lane.b32.xlu0 %v1939, 17
        %v1986 = vpop.permute.xlu0 %1985
        %1987 = vrot.lane.b32.xlu0 %v1978, 17
        %v1988 = vpop.permute.xlu0 %1987
        %v1989 = vsel %vm757, %v1986, %v1988
        %v1990 = vsel %vm757, %v1984, %v1986
        %v1991 = vsel %vm757, %v1988, %v1984
        %v1992 = vadd.f32 %v1894, %v1991
        %v1993 = vadd.f32 %v1895, %v1990
        %v1994 = vadd.f32 %v1896, %v1989
        %s1995 = scalar_lea.vmem %s3, 6
        %v1996 = vld [vmem:[%s1995] sm:$0x3]
        %v1998 = vsel %vm459, %v1996, 0
        %2000 = vmatprep.subr.bf16.mxu0 %v1704
        %2001 = vmatpush1.bf16.msra.mxu0 %v1701
        %2002 = vmatprep.subr.bf16.mxu0 0
        %2003 = vmatpush1.bf16.msra.mxu0 0
        %2004 = vmatprep.subr.bf16.mxu0 0
        %2005 = vmatpush1.bf16.msra.mxu0 0
        %2006 = vmatprep.subr.bf16.mxu0 0
        %2007 = vmatpush1.bf16.msra.mxu0 0
        %2008 = vmatprep.subr.bf16.mxu0 0
        %2009 = vmatpush1.bf16.msra.mxu0 0
        %2010 = vmatprep.subr.bf16.mxu0 0
        %2011 = vmatpush1.bf16.msra.mxu0 0
        %2012 = vmatprep.subr.bf16.mxu0 0
        %2013 = vmatpush1.bf16.msra.mxu0 0
        %2014 = vmatprep.subr.bf16.mxu0 0
        %2015 = vmatpush1.bf16.msra.mxu0 0
        %2016 = vmatprep.subr.bf16.mxu0 0
        %2017 = vmatpush1.bf16.msra.mxu0 0
        %2018 = vmatprep.subr.bf16.mxu0 0
        %2019 = vmatpush1.bf16.msra.mxu0 0
        %2020 = vmatprep.subr.bf16.mxu0 0
        %2021 = vmatpush1.bf16.msra.mxu0 0
        %2022 = vmatprep.subr.bf16.mxu0 0
        %2023 = vmatpush1.bf16.msra.mxu0 0
        %2024 = vmatprep.subr.bf16.mxu0 0
        %2025 = vmatpush1.bf16.msra.mxu0 0
        %2026 = vmatprep.subr.bf16.mxu0 0
        %2027 = vmatpush1.bf16.msra.mxu0 0
        %2028 = vmatprep.subr.bf16.mxu0 0
        %2029 = vmatpush1.bf16.msra.mxu0 0
        %2030 = vmatprep.subr.bf16.mxu0 0
        %2031 = vmatpush1.bf16.msra.mxu0 0
        %2032 = vmatprep.mubr.bf16.mxu0 0
        %2033 = vmatmul.mubr.bf16.gmra.mrb[0].mxu0 %v1998
        %v2034 = vpop.f32.mrb[0].mxu0
        %v2035 = vadd.f32 0.0, %v2034
        %v2036 = vpop.f32.mrb[0].mxu0
        %v2037 = vadd.f32 0.0, %v2036
        %v2038 = vpop.f32.mrb[0].mxu0
        %v2039 = vpop.f32.mrb[0].mxu0
        %2040 = vdwg.mxu0
        %2041 = vmatprep.subr.bf16.mxu0 0
        %2042 = vmatpush1.bf16.msra.mxu0 %v1707
        %2043 = vmatprep.subr.bf16.mxu0 0
        %2044 = vmatpush1.bf16.msra.mxu0 0
        %2045 = vmatprep.subr.bf16.mxu0 0
        %2046 = vmatpush1.bf16.msra.mxu0 0
        %2047 = vmatprep.subr.bf16.mxu0 0
        %2048 = vmatpush1.bf16.msra.mxu0 0
        %2049 = vmatprep.subr.bf16.mxu0 0
        %2050 = vmatpush1.bf16.msra.mxu0 0
        %2051 = vmatprep.subr.bf16.mxu0 0
        %2052 = vmatpush1.bf16.msra.mxu0 0
        %2053 = vmatprep.subr.bf16.mxu0 0
        %2054 = vmatpush1.bf16.msra.mxu0 0
        %2055 = vmatprep.subr.bf16.mxu0 0
        %2056 = vmatpush1.bf16.msra.mxu0 0
        %2057 = vmatprep.subr.bf16.mxu0 0
        %2058 = vmatpush1.bf16.msra.mxu0 0
        %2059 = vmatprep.subr.bf16.mxu0 0
        %2060 = vmatpush1.bf16.msra.mxu0 0
        %2061 = vmatprep.subr.bf16.mxu0 0
        %2062 = vmatpush1.bf16.msra.mxu0 0
        %2063 = vmatprep.subr.bf16.mxu0 0
        %2064 = vmatpush1.bf16.msra.mxu0 0
        %2065 = vmatprep.subr.bf16.mxu0 0
        %2066 = vmatpush1.bf16.msra.mxu0 0
        %2067 = vmatprep.subr.bf16.mxu0 0
        %2068 = vmatpush1.bf16.msra.mxu0 0
        %2069 = vmatprep.subr.bf16.mxu0 0
        %2070 = vmatpush1.bf16.msra.mxu0 0
        %2071 = vmatprep.subr.bf16.mxu0 0
        %2072 = vmatpush1.bf16.msra.mxu0 0
        %2073 = vmatprep.mubr.bf16.mxu0 0
        %2074 = vmatmul.mubr.bf16.gmra.mrb[0].mxu0 %v1998
        %v2075 = vpop.f32.mrb[0].mxu0
        %v2076 = vadd.f32 0.0, %v2075
        %v2077 = vpop.f32.mrb[0].mxu0
        %v2078 = vpop.f32.mrb[0].mxu0
        %v2079 = vpop.f32.mrb[0].mxu0
        %2080 = vdwg.mxu0
        %2081 = vrot.lane.b32.xlu0 %v2035, 1
        %v2082 = vpop.permute.xlu0 %2081
        %2083 = vrot.lane.b32.xlu0 %v2037, 1
        %v2084 = vpop.permute.xlu0 %2083
        %2085 = vrot.lane.b32.xlu0 %v2076, 1
        %v2086 = vpop.permute.xlu0 %2085
        %v2087 = vsel %vm856, %v2084, %v2086
        %v2088 = vsel %vm856, %v2082, %v2084
        %v2089 = vsel %vm856, %v2086, %v2082
        %v2090 = vadd.f32 %v1992, %v2089
        %v2091 = vadd.f32 %v1993, %v2088
        %v2092 = vadd.f32 %v1994, %v2087
        %s2093 = scalar_lea.vmem %s3, 8
        %v2094 = vld [vmem:[%s2093] sm:$0x3]
        %v2096 = vsel %vm459, %v2094, 0
        %2098 = vmatprep.subr.bf16.mxu0 %v1704
        %2099 = vmatpush1.bf16.msra.mxu0 %v1701
        %2100 = vmatprep.subr.bf16.mxu0 0
        %2101 = vmatpush1.bf16.msra.mxu0 0
        %2102 = vmatprep.subr.bf16.mxu0 0
        %2103 = vmatpush1.bf16.msra.mxu0 0
        %2104 = vmatprep.subr.bf16.mxu0 0
        %2105 = vmatpush1.bf16.msra.mxu0 0
        %2106 = vmatprep.subr.bf16.mxu0 0
        %2107 = vmatpush1.bf16.msra.mxu0 0
        %2108 = vmatprep.subr.bf16.mxu0 0
        %2109 = vmatpush1.bf16.msra.mxu0 0
        %2110 = vmatprep.subr.bf16.mxu0 0
        %2111 = vmatpush1.bf16.msra.mxu0 0
        %2112 = vmatprep.subr.bf16.mxu0 0
        %2113 = vmatpush1.bf16.msra.mxu0 0
        %2114 = vmatprep.subr.bf16.mxu0 0
        %2115 = vmatpush1.bf16.msra.mxu0 0
        %2116 = vmatprep.subr.bf16.mxu0 0
        %2117 = vmatpush1.bf16.msra.mxu0 0
        %2118 = vmatprep.subr.bf16.mxu0 0
        %2119 = vmatpush1.bf16.msra.mxu0 0
        %2120 = vmatprep.subr.bf16.mxu0 0
        %2121 = vmatpush1.bf16.msra.mxu0 0
        %2122 = vmatprep.subr.bf16.mxu0 0
        %2123 = vmatpush1.bf16.msra.mxu0 0
        %2124 = vmatprep.subr.bf16.mxu0 0
        %2125 = vmatpush1.bf16.msra.mxu0 0
        %2126 = vmatprep.subr.bf16.mxu0 0
        %2127 = vmatpush1.bf16.msra.mxu0 0
        %2128 = vmatprep.subr.bf16.mxu0 0
        %2129 = vmatpush1.bf16.msra.mxu0 0
        %2130 = vmatprep.mubr.bf16.mxu0 0
        %2131 = vmatmul.mubr.bf16.gmra.mrb[0].mxu0 %v2096
        %v2132 = vpop.f32.mrb[0].mxu0
        %v2133 = vadd.f32 0.0, %v2132
        %v2134 = vpop.f32.mrb[0].mxu0
        %v2135 = vadd.f32 0.0, %v2134
        %v2136 = vpop.f32.mrb[0].mxu0
        %v2137 = vpop.f32.mrb[0].mxu0
        %2138 = vdwg.mxu0
        %2139 = vmatprep.subr.bf16.mxu0 0
        %2140 = vmatpush1.bf16.msra.mxu0 %v1707
        %2141 = vmatprep.subr.bf16.mxu0 0
        %2142 = vmatpush1.bf16.msra.mxu0 0
        %2143 = vmatprep.subr.bf16.mxu0 0
        %2144 = vmatpush1.bf16.msra.mxu0 0
        %2145 = vmatprep.subr.bf16.mxu0 0
        %2146 = vmatpush1.bf16.msra.mxu0 0
        %2147 = vmatprep.subr.bf16.mxu0 0
        %2148 = vmatpush1.bf16.msra.mxu0 0
        %2149 = vmatprep.subr.bf16.mxu0 0
        %2150 = vmatpush1.bf16.msra.mxu0 0
        %2151 = vmatprep.subr.bf16.mxu0 0
        %2152 = vmatpush1.bf16.msra.mxu0 0
        %2153 = vmatprep.subr.bf16.mxu0 0
        %2154 = vmatpush1.bf16.msra.mxu0 0
        %2155 = vmatprep.subr.bf16.mxu0 0
        %2156 = vmatpush1.bf16.msra.mxu0 0
        %2157 = vmatprep.subr.bf16.mxu0 0
        %2158 = vmatpush1.bf16.msra.mxu0 0
        %2159 = vmatprep.subr.bf16.mxu0 0
        %2160 = vmatpush1.bf16.msra.mxu0 0
        %2161 = vmatprep.subr.bf16.mxu0 0
        %2162 = vmatpush1.bf16.msra.mxu0 0
        %2163 = vmatprep.subr.bf16.mxu0 0
        %2164 = vmatpush1.bf16.msra.mxu0 0
        %2165 = vmatprep.subr.bf16.mxu0 0
        %2166 = vmatpush1.bf16.msra.mxu0 0
        %2167 = vmatprep.subr.bf16.mxu0 0
        %2168 = vmatpush1.bf16.msra.mxu0 0
        %2169 = vmatprep.subr.bf16.mxu0 0
        %2170 = vmatpush1.bf16.msra.mxu0 0
        %2171 = vmatprep.mubr.bf16.mxu0 0
        %2172 = vmatmul.mubr.bf16.gmra.mrb[0].mxu0 %v2096
        %v2173 = vpop.f32.mrb[0].mxu0
        %v2174 = vadd.f32 0.0, %v2173
        %v2175 = vpop.f32.mrb[0].mxu0
        %v2176 = vpop.f32.mrb[0].mxu0
        %v2177 = vpop.f32.mrb[0].mxu0
        %2178 = vdwg.mxu0
        %v2179 = vadd.f32 %v2090, %v2133
        %v2180 = vadd.f32 %v2091, %v2135
        %v2181 = vadd.f32 %v2092, %v2174
        %s2182 = scalar_lea.vmem %s3, 10
        %v2183 = vld [vmem:[%s2182] sm:$0x3]
        %v2185 = vsel %vm459, %v2183, 0
        %2187 = vmatprep.subr.bf16.mxu0 %v1704
        %2188 = vmatpush1.bf16.msra.mxu0 %v1701
        %2189 = vmatprep.subr.bf16.mxu0 0
        %2190 = vmatpush1.bf16.msra.mxu0 0
        %2191 = vmatprep.subr.bf16.mxu0 0
        %2192 = vmatpush1.bf16.msra.mxu0 0
        %2193 = vmatprep.subr.bf16.mxu0 0
        %2194 = vmatpush1.bf16.msra.mxu0 0
        %2195 = vmatprep.subr.bf16.mxu0 0
        %2196 = vmatpush1.bf16.msra.mxu0 0
        %2197 = vmatprep.subr.bf16.mxu0 0
        %2198 = vmatpush1.bf16.msra.mxu0 0
        %2199 = vmatprep.subr.bf16.mxu0 0
        %2200 = vmatpush1.bf16.msra.mxu0 0
        %2201 = vmatprep.subr.bf16.mxu0 0
        %2202 = vmatpush1.bf16.msra.mxu0 0
        %2203 = vmatprep.subr.bf16.mxu0 0
        %2204 = vmatpush1.bf16.msra.mxu0 0
        %2205 = vmatprep.subr.bf16.mxu0 0
        %2206 = vmatpush1.bf16.msra.mxu0 0
        %2207 = vmatprep.subr.bf16.mxu0 0
        %2208 = vmatpush1.bf16.msra.mxu0 0
        %2209 = vmatprep.subr.bf16.mxu0 0
        %2210 = vmatpush1.bf16.msra.mxu0 0
        %2211 = vmatprep.subr.bf16.mxu0 0
        %2212 = vmatpush1.bf16.msra.mxu0 0
        %2213 = vmatprep.subr.bf16.mxu0 0
        %2214 = vmatpush1.bf16.msra.mxu0 0
        %2215 = vmatprep.subr.bf16.mxu0 0
        %2216 = vmatpush1.bf16.msra.mxu0 0
        %2217 = vmatprep.subr.bf16.mxu0 0
        %2218 = vmatpush1.bf16.msra.mxu0 0
        %2219 = vmatprep.mubr.bf16.mxu0 0
        %2220 = vmatmul.mubr.bf16.gmra.mrb[0].mxu0 %v2185
        %v2221 = vpop.f32.mrb[0].mxu0
        %v2222 = vadd.f32 0.0, %v2221
        %v2223 = vpop.f32.mrb[0].mxu0
        %v2224 = vadd.f32 0.0, %v2223
        %v2225 = vpop.f32.mrb[0].mxu0
        %v2226 = vpop.f32.mrb[0].mxu0
        %2227 = vdwg.mxu0
        %2228 = vmatprep.subr.bf16.mxu0 0
        %2229 = vmatpush1.bf16.msra.mxu0 %v1707
        %2230 = vmatprep.subr.bf16.mxu0 0
        %2231 = vmatpush1.bf16.msra.mxu0 0
        %2232 = vmatprep.subr.bf16.mxu0 0
        %2233 = vmatpush1.bf16.msra.mxu0 0
        %2234 = vmatprep.subr.bf16.mxu0 0
        %2235 = vmatpush1.bf16.msra.mxu0 0
        %2236 = vmatprep.subr.bf16.mxu0 0
        %2237 = vmatpush1.bf16.msra.mxu0 0
        %2238 = vmatprep.subr.bf16.mxu0 0
        %2239 = vmatpush1.bf16.msra.mxu0 0
        %2240 = vmatprep.subr.bf16.mxu0 0
        %2241 = vmatpush1.bf16.msra.mxu0 0
        %2242 = vmatprep.subr.bf16.mxu0 0
        %2243 = vmatpush1.bf16.msra.mxu0 0
        %2244 = vmatprep.subr.bf16.mxu0 0
        %2245 = vmatpush1.bf16.msra.mxu0 0
        %2246 = vmatprep.subr.bf16.mxu0 0
        %2247 = vmatpush1.bf16.msra.mxu0 0
        %2248 = vmatprep.subr.bf16.mxu0 0
        %2249 = vmatpush1.bf16.msra.mxu0 0
        %2250 = vmatprep.subr.bf16.mxu0 0
        %2251 = vmatpush1.bf16.msra.mxu0 0
        %2252 = vmatprep.subr.bf16.mxu0 0
        %2253 = vmatpush1.bf16.msra.mxu0 0
        %2254 = vmatprep.subr.bf16.mxu0 0
        %2255 = vmatpush1.bf16.msra.mxu0 0
        %2256 = vmatprep.subr.bf16.mxu0 0
        %2257 = vmatpush1.bf16.msra.mxu0 0
        %2258 = vmatprep.subr.bf16.mxu0 0
        %2259 = vmatpush1.bf16.msra.mxu0 0
        %2260 = vmatprep.mubr.bf16.mxu0 0
        %2261 = vmatmul.mubr.bf16.gmra.mrb[0].mxu0 %v2185
        %v2262 = vpop.f32.mrb[0].mxu0
        %v2263 = vadd.f32 0.0, %v2262
        %v2264 = vpop.f32.mrb[0].mxu0
        %v2265 = vpop.f32.mrb[0].mxu0
        %v2266 = vpop.f32.mrb[0].mxu0
        %2267 = vdwg.mxu0
        %2268 = vrot.lane.b32.xlu0 %v2222, 127
        %v2269 = vpop.permute.xlu0 %2268
        %2270 = vrot.lane.b32.xlu0 %v2224, 127
        %v2271 = vpop.permute.xlu0 %2270
        %2272 = vrot.lane.b32.xlu0 %v2263, 127
        %v2273 = vpop.permute.xlu0 %2272
        %v2274 = vsel %vm1044, %v2271, %v2273
        %v2275 = vsel %vm1044, %v2269, %v2271
        %v2276 = vsel %vm1044, %v2273, %v2269
        %v2277 = vadd.f32 %v2179, %v2275
        %v2278 = vadd.f32 %v2180, %v2274
        %v2279 = vadd.f32 %v2181, %v2276
        %s2280 = scalar_lea.vmem %s3, 12
        %v2281 = vld [vmem:[%s2280] sm:$0x3]
        %v2283 = vsel %vm459, %v2281, 0
        %2285 = vmatprep.subr.bf16.mxu0 %v1704
        %2286 = vmatpush1.bf16.msra.mxu0 %v1701
        %2287 = vmatprep.subr.bf16.mxu0 0
        %2288 = vmatpush1.bf16.msra.mxu0 0
        %2289 = vmatprep.subr.bf16.mxu0 0
        %2290 = vmatpush1.bf16.msra.mxu0 0
        %2291 = vmatprep.subr.bf16.mxu0 0
        %2292 = vmatpush1.bf16.msra.mxu0 0
        %2293 = vmatprep.subr.bf16.mxu0 0
        %2294 = vmatpush1.bf16.msra.mxu0 0
        %2295 = vmatprep.subr.bf16.mxu0 0
        %2296 = vmatpush1.bf16.msra.mxu0 0
        %2297 = vmatprep.subr.bf16.mxu0 0
        %2298 = vmatpush1.bf16.msra.mxu0 0
        %2299 = vmatprep.subr.bf16.mxu0 0
        %2300 = vmatpush1.bf16.msra.mxu0 0
        %2301 = vmatprep.subr.bf16.mxu0 0
        %2302 = vmatpush1.bf16.msra.mxu0 0
        %2303 = vmatprep.subr.bf16.mxu0 0
        %2304 = vmatpush1.bf16.msra.mxu0 0
        %2305 = vmatprep.subr.bf16.mxu0 0
        %2306 = vmatpush1.bf16.msra.mxu0 0
        %2307 = vmatprep.subr.bf16.mxu0 0
        %2308 = vmatpush1.bf16.msra.mxu0 0
        %2309 = vmatprep.subr.bf16.mxu0 0
        %2310 = vmatpush1.bf16.msra.mxu0 0
        %2311 = vmatprep.subr.bf16.mxu0 0
        %2312 = vmatpush1.bf16.msra.mxu0 0
        %2313 = vmatprep.subr.bf16.mxu0 0
        %2314 = vmatpush1.bf16.msra.mxu0 0
        %2315 = vmatprep.subr.bf16.mxu0 0
        %2316 = vmatpush1.bf16.msra.mxu0 0
        %2317 = vmatprep.mubr.bf16.mxu0 0
        %2318 = vmatmul.mubr.bf16.gmra.mrb[0].mxu0 %v2283
        %v2319 = vpop.f32.mrb[0].mxu0
        %v2320 = vadd.f32 0.0, %v2319
        %v2321 = vpop.f32.mrb[0].mxu0
        %v2322 = vadd.f32 0.0, %v2321
        %v2323 = vpop.f32.mrb[0].mxu0
        %v2324 = vpop.f32.mrb[0].mxu0
        %2325 = vdwg.mxu0
        %2326 = vmatprep.subr.bf16.mxu0 0
        %2327 = vmatpush1.bf16.msra.mxu0 %v1707
        %2328 = vmatprep.subr.bf16.mxu0 0
        %2329 = vmatpush1.bf16.msra.mxu0 0
        %2330 = vmatprep.subr.bf16.mxu0 0
        %2331 = vmatpush1.bf16.msra.mxu0 0
        %2332 = vmatprep.subr.bf16.mxu0 0
        %2333 = vmatpush1.bf16.msra.mxu0 0
        %2334 = vmatprep.subr.bf16.mxu0 0
        %2335 = vmatpush1.bf16.msra.mxu0 0
        %2336 = vmatprep.subr.bf16.mxu0 0
        %2337 = vmatpush1.bf16.msra.mxu0 0
        %2338 = vmatprep.subr.bf16.mxu0 0
        %2339 = vmatpush1.bf16.msra.mxu0 0
        %2340 = vmatprep.subr.bf16.mxu0 0
        %2341 = vmatpush1.bf16.msra.mxu0 0
        %2342 = vmatprep.subr.bf16.mxu0 0
        %2343 = vmatpush1.bf16.msra.mxu0 0
        %2344 = vmatprep.subr.bf16.mxu0 0
        %2345 = vmatpush1.bf16.msra.mxu0 0
        %2346 = vmatprep.subr.bf16.mxu0 0
        %2347 = vmatpush1.bf16.msra.mxu0 0
        %2348 = vmatprep.subr.bf16.mxu0 0
        %2349 = vmatpush1.bf16.msra.mxu0 0
        %2350 = vmatprep.subr.bf16.mxu0 0
        %2351 = vmatpush1.bf16.msra.mxu0 0
        %2352 = vmatprep.subr.bf16.mxu0 0
        %2353 = vmatpush1.bf16.msra.mxu0 0
        %2354 = vmatprep.subr.bf16.mxu0 0
        %2355 = vmatpush1.bf16.msra.mxu0 0
        %2356 = vmatprep.subr.bf16.mxu0 0
        %2357 = vmatpush1.bf16.msra.mxu0 0
        %2358 = vmatprep.mubr.bf16.mxu0 0
        %2359 = vmatmul.mubr.bf16.gmra.mrb[0].mxu0 %v2283
        %v2360 = vpop.f32.mrb[0].mxu0
        %v2361 = vadd.f32 0.0, %v2360
        %v2362 = vpop.f32.mrb[0].mxu0
        %v2363 = vpop.f32.mrb[0].mxu0
        %v2364 = vpop.f32.mrb[0].mxu0
        %2365 = vdwg.mxu0
        %2366 = vrot.lane.b32.xlu0 %v2320, 111
        %v2367 = vpop.permute.xlu0 %2366
        %2368 = vrot.lane.b32.xlu0 %v2322, 111
        %v2369 = vpop.permute.xlu0 %2368
        %2370 = vrot.lane.b32.xlu0 %v2361, 111
        %v2371 = vpop.permute.xlu0 %2370
        %v2372 = vsel %vm1143, %v2369, %v2371
        %v2373 = vsel %vm1143, %v2367, %v2369
        %v2374 = vsel %vm1143, %v2371, %v2367
        %v2375 = vadd.f32 %v2277, %v2373
        %v2376 = vadd.f32 %v2278, %v2372
        %v2377 = vadd.f32 %v2279, %v2374
        %s2378 = scalar_lea.vmem %s3, 14
        %v2379 = vld [vmem:[%s2378] sm:$0x3]
        %v2381 = vsel %vm459, %v2379, 0
        %2383 = vmatprep.subr.bf16.mxu0 %v1704
        %2384 = vmatpush1.bf16.msra.mxu0 %v1701
        %2385 = vmatprep.subr.bf16.mxu0 0
        %2386 = vmatpush1.bf16.msra.mxu0 0
        %2387 = vmatprep.subr.bf16.mxu0 0
        %2388 = vmatpush1.bf16.msra.mxu0 0
        %2389 = vmatprep.subr.bf16.mxu0 0
        %2390 = vmatpush1.bf16.msra.mxu0 0
        %2391 = vmatprep.subr.bf16.mxu0 0
        %2392 = vmatpush1.bf16.msra.mxu0 0
        %2393 = vmatprep.subr.bf16.mxu0 0
        %2394 = vmatpush1.bf16.msra.mxu0 0
        %2395 = vmatprep.subr.bf16.mxu0 0
        %2396 = vmatpush1.bf16.msra.mxu0 0
        %2397 = vmatprep.subr.bf16.mxu0 0
        %2398 = vmatpush1.bf16.msra.mxu0 0
        %2399 = vmatprep.subr.bf16.mxu0 0
        %2400 = vmatpush1.bf16.msra.mxu0 0
        %2401 = vmatprep.subr.bf16.mxu0 0
        %2402 = vmatpush1.bf16.msra.mxu0 0
        %2403 = vmatprep.subr.bf16.mxu0 0
        %2404 = vmatpush1.bf16.msra.mxu0 0
        %2405 = vmatprep.subr.bf16.mxu0 0
        %2406 = vmatpush1.bf16.msra.mxu0 0
        %2407 = vmatprep.subr.bf16.mxu0 0
        %2408 = vmatpush1.bf16.msra.mxu0 0
        %2409 = vmatprep.subr.bf16.mxu0 0
        %2410 = vmatpush1.bf16.msra.mxu0 0
        %2411 = vmatprep.subr.bf16.mxu0 0
        %2412 = vmatpush1.bf16.msra.mxu0 0
        %2413 = vmatprep.subr.bf16.mxu0 0
        %2414 = vmatpush1.bf16.msra.mxu0 0
        %2415 = vmatprep.mubr.bf16.mxu0 0
        %2416 = vmatmul.mubr.bf16.gmra.mrb[0].mxu0 %v2381
        %v2417 = vpop.f32.mrb[0].mxu0
        %v2418 = vadd.f32 0.0, %v2417
        %v2419 = vpop.f32.mrb[0].mxu0
        %v2420 = vadd.f32 0.0, %v2419
        %v2421 = vpop.f32.mrb[0].mxu0
        %v2422 = vpop.f32.mrb[0].mxu0
        %2423 = vdwg.mxu0
        %2424 = vmatprep.subr.bf16.mxu0 0
        %2425 = vmatpush1.bf16.msra.mxu0 %v1707
        %2426 = vmatprep.subr.bf16.mxu0 0
        %2427 = vmatpush1.bf16.msra.mxu0 0
        %2428 = vmatprep.subr.bf16.mxu0 0
        %2429 = vmatpush1.bf16.msra.mxu0 0
        %2430 = vmatprep.subr.bf16.mxu0 0
        %2431 = vmatpush1.bf16.msra.mxu0 0
        %2432 = vmatprep.subr.bf16.mxu0 0
        %2433 = vmatpush1.bf16.msra.mxu0 0
        %2434 = vmatprep.subr.bf16.mxu0 0
        %2435 = vmatpush1.bf16.msra.mxu0 0
        %2436 = vmatprep.subr.bf16.mxu0 0
        %2437 = vmatpush1.bf16.msra.mxu0 0
        %2438 = vmatprep.subr.bf16.mxu0 0
        %2439 = vmatpush1.bf16.msra.mxu0 0
        %2440 = vmatprep.subr.bf16.mxu0 0
        %2441 = vmatpush1.bf16.msra.mxu0 0
        %2442 = vmatprep.subr.bf16.mxu0 0
        %2443 = vmatpush1.bf16.msra.mxu0 0
        %2444 = vmatprep.subr.bf16.mxu0 0
        %2445 = vmatpush1.bf16.msra.mxu0 0
        %2446 = vmatprep.subr.bf16.mxu0 0
        %2447 = vmatpush1.bf16.msra.mxu0 0
        %2448 = vmatprep.subr.bf16.mxu0 0
        %2449 = vmatpush1.bf16.msra.mxu0 0
        %2450 = vmatprep.subr.bf16.mxu0 0
        %2451 = vmatpush1.bf16.msra.mxu0 0
        %2452 = vmatprep.subr.bf16.mxu0 0
        %2453 = vmatpush1.bf16.msra.mxu0 0
        %2454 = vmatprep.subr.bf16.mxu0 0
        %2455 = vmatpush1.bf16.msra.mxu0 0
        %2456 = vmatprep.mubr.bf16.mxu0 0
        %2457 = vmatmul.mubr.bf16.gmra.mrb[0].mxu0 %v2381
        %v2458 = vpop.f32.mrb[0].mxu0
        %v2459 = vadd.f32 0.0, %v2458
        %v2460 = vpop.f32.mrb[0].mxu0
        %v2461 = vpop.f32.mrb[0].mxu0
        %v2462 = vpop.f32.mrb[0].mxu0
        %2463 = vdwg.mxu0
        %2464 = vrot.lane.b32.xlu0 %v2418, 110
        %v2465 = vpop.permute.xlu0 %2464
        %2466 = vrot.lane.b32.xlu0 %v2420, 110
        %v2467 = vpop.permute.xlu0 %2466
        %2468 = vrot.lane.b32.xlu0 %v2459, 110
        %v2469 = vpop.permute.xlu0 %2468
        %v2470 = vsel %vm1242, %v2467, %v2469
        %v2471 = vsel %vm1242, %v2465, %v2467
        %v2472 = vsel %vm1242, %v2469, %v2465
        %v2473 = vadd.f32 %v2375, %v2471
        %v2474 = vadd.f32 %v2376, %v2470
        %v2475 = vadd.f32 %v2377, %v2472
        %s2476 = scalar_lea.vmem %s3, 16
        %v2477 = vld [vmem:[%s2476] sm:$0x3]
        %v2479 = vsel %vm459, %v2477, 0
        %2481 = vmatprep.subr.bf16.mxu0 %v1704
        %2482 = vmatpush1.bf16.msra.mxu0 %v1701
        %2483 = vmatprep.subr.bf16.mxu0 0
        %2484 = vmatpush1.bf16.msra.mxu0 0
        %2485 = vmatprep.subr.bf16.mxu0 0
        %2486 = vmatpush1.bf16.msra.mxu0 0
        %2487 = vmatprep.subr.bf16.mxu0 0
        %2488 = vmatpush1.bf16.msra.mxu0 0
        %2489 = vmatprep.subr.bf16.mxu0 0
        %2490 = vmatpush1.bf16.msra.mxu0 0
        %2491 = vmatprep.subr.bf16.mxu0 0
        %2492 = vmatpush1.bf16.msra.mxu0 0
        %2493 = vmatprep.subr.bf16.mxu0 0
        %2494 = vmatpush1.bf16.msra.mxu0 0
        %2495 = vmatprep.subr.bf16.mxu0 0
        %2496 = vmatpush1.bf16.msra.mxu0 0
        %2497 = vmatprep.subr.bf16.mxu0 0
        %2498 = vmatpush1.bf16.msra.mxu0 0
        %2499 = vmatprep.subr.bf16.mxu0 0
        %2500 = vmatpush1.bf16.msra.mxu0 0
        %2501 = vmatprep.subr.bf16.mxu0 0
        %2502 = vmatpush1.bf16.msra.mxu0 0
        %2503 = vmatprep.subr.bf16.mxu0 0
        %2504 = vmatpush1.bf16.msra.mxu0 0
        %2505 = vmatprep.subr.bf16.mxu0 0
        %2506 = vmatpush1.bf16.msra.mxu0 0
        %2507 = vmatprep.subr.bf16.mxu0 0
        %2508 = vmatpush1.bf16.msra.mxu0 0
        %2509 = vmatprep.subr.bf16.mxu0 0
        %2510 = vmatpush1.bf16.msra.mxu0 0
        %2511 = vmatprep.subr.bf16.mxu0 0
        %2512 = vmatpush1.bf16.msra.mxu0 0
        %2513 = vmatprep.mubr.bf16.mxu0 0
        %2514 = vmatmul.mubr.bf16.gmra.mrb[0].mxu0 %v2479
        %v2515 = vpop.f32.mrb[0].mxu0
        %v2516 = vadd.f32 0.0, %v2515
        %v2517 = vpop.f32.mrb[0].mxu0
        %v2518 = vadd.f32 0.0, %v2517
        %v2519 = vpop.f32.mrb[0].mxu0
        %v2520 = vpop.f32.mrb[0].mxu0
        %2521 = vdwg.mxu0
        %2522 = vmatprep.subr.bf16.mxu0 0
        %2523 = vmatpush1.bf16.msra.mxu0 %v1707
        %2524 = vmatprep.subr.bf16.mxu0 0
        %2525 = vmatpush1.bf16.msra.mxu0 0
        %2526 = vmatprep.subr.bf16.mxu0 0
        %2527 = vmatpush1.bf16.msra.mxu0 0
        %2528 = vmatprep.subr.bf16.mxu0 0
        %2529 = vmatpush1.bf16.msra.mxu0 0
        %2530 = vmatprep.subr.bf16.mxu0 0
        %2531 = vmatpush1.bf16.msra.mxu0 0
        %2532 = vmatprep.subr.bf16.mxu0 0
        %2533 = vmatpush1.bf16.msra.mxu0 0
        %2534 = vmatprep.subr.bf16.mxu0 0
        %2535 = vmatpush1.bf16.msra.mxu0 0
        %2536 = vmatprep.subr.bf16.mxu0 0
        %2537 = vmatpush1.bf16.msra.mxu0 0
        %2538 = vmatprep.subr.bf16.mxu0 0
        %2539 = vmatpush1.bf16.msra.mxu0 0
        %2540 = vmatprep.subr.bf16.mxu0 0
        %2541 = vmatpush1.bf16.msra.mxu0 0
        %2542 = vmatprep.subr.bf16.mxu0 0
        %2543 = vmatpush1.bf16.msra.mxu0 0
        %2544 = vmatprep.subr.bf16.mxu0 0
        %2545 = vmatpush1.bf16.msra.mxu0 0
        %2546 = vmatprep.subr.bf16.mxu0 0
        %2547 = vmatpush1.bf16.msra.mxu0 0
        %2548 = vmatprep.subr.bf16.mxu0 0
        %2549 = vmatpush1.bf16.msra.mxu0 0
        %2550 = vmatprep.subr.bf16.mxu0 0
        %2551 = vmatpush1.bf16.msra.mxu0 0
        %2552 = vmatprep.subr.bf16.mxu0 0
        %2553 = vmatpush1.bf16.msra.mxu0 0
        %2554 = vmatprep.mubr.bf16.mxu0 0
        %2555 = vmatmul.mubr.bf16.gmra.mrb[0].mxu0 %v2479
        %v2556 = vpop.f32.mrb[0].mxu0
        %v2557 = vadd.f32 0.0, %v2556
        %v2558 = vpop.f32.mrb[0].mxu0
        %v2559 = vpop.f32.mrb[0].mxu0
        %v2560 = vpop.f32.mrb[0].mxu0
        %2561 = vdwg.mxu0
        %2562 = vrot.lane.b32.xlu0 %v2516, 109
        %v2563 = vpop.permute.xlu0 %2562
        %2564 = vrot.lane.b32.xlu0 %v2518, 109
        %v2565 = vpop.permute.xlu0 %2564
        %2566 = vrot.lane.b32.xlu0 %v2557, 109
        %v2567 = vpop.permute.xlu0 %2566
        %v2568 = vsel %vm1341, %v2565, %v2567
        %v2569 = vsel %vm1341, %v2563, %v2565
        %v2570 = vsel %vm1341, %v2567, %v2563
        %v2571 = vadd.f32 %v2473, %v2569
        %v2572 = vadd.f32 %v2474, %v2568
        %v2573 = vadd.f32 %v2475, %v2570
        %v2574 = vld [vmem:[%s4] sm:$0xf]
        %2576 = vset.pattern.permute.xlu0 0
        %2577 = vperm.xlu0 %2576, %v2574
        %v2578 = vpop.permute.xlu0 %2577
        %v2580 = vadd.f32 %v2571, %v2578
        %v2581 = vadd.f32 %v2572, %v2578
        %v2582 = vadd.f32 %v2573, %v2578
        %v2583 = vmul.f32 %v2580, 0.1
        %v2584 = vmul.f32 %v2581, 0.1
        %v2585 = vmul.f32 %v2582, 0.1
        %v2586 = vmax.f32 %v2580, %v2583
        %v2587 = vmax.f32 %v2581, %v2584
        %v2588 = vmax.f32 %v2582, %v2585
        %v2589 = vld [vmem:[%s5] sm:$0x3]
        %v2590 = vld [vmem:[%s6] sm:$0xf]
        %2592 = vset.pattern.permute.xlu0 0
        %2593 = vperm.xlu0 %2592, %v2590
        %v2594 = vpop.permute.xlu0 %2593
        %v2597 = vsel %vm459, %v2589, 0
        %2599 = vmatprep.subr.bf16.mxu0 %v468
        %2600 = vmatpush1.bf16.msra.mxu0 %v465
        %2601 = vmatprep.subr.bf16.mxu0 0
        %2602 = vmatpush1.bf16.msra.mxu0 0
        %2603 = vmatprep.subr.bf16.mxu0 0
        %2604 = vmatpush1.bf16.msra.mxu0 0
        %2605 = vmatprep.subr.bf16.mxu0 0
        %2606 = vmatpush1.bf16.msra.mxu0 0
        %2607 = vmatprep.subr.bf16.mxu0 0
        %2608 = vmatpush1.bf16.msra.mxu0 0
        %2609 = vmatprep.subr.bf16.mxu0 0
        %2610 = vmatpush1.bf16.msra.mxu0 0
        %2611 = vmatprep.subr.bf16.mxu0 0
        %2612 = vmatpush1.bf16.msra.mxu0 0
        %2613 = vmatprep.subr.bf16.mxu0 0
        %2614 = vmatpush1.bf16.msra.mxu0 0
        %2615 = vmatprep.subr.bf16.mxu0 0
        %2616 = vmatpush1.bf16.msra.mxu0 0
        %2617 = vmatprep.subr.bf16.mxu0 0
        %2618 = vmatpush1.bf16.msra.mxu0 0
        %2619 = vmatprep.subr.bf16.mxu0 0
        %2620 = vmatpush1.bf16.msra.mxu0 0
        %2621 = vmatprep.subr.bf16.mxu0 0
        %2622 = vmatpush1.bf16.msra.mxu0 0
        %2623 = vmatprep.subr.bf16.mxu0 0
        %2624 = vmatpush1.bf16.msra.mxu0 0
        %2625 = vmatprep.subr.bf16.mxu0 0
        %2626 = vmatpush1.bf16.msra.mxu0 0
        %2627 = vmatprep.subr.bf16.mxu0 0
        %2628 = vmatpush1.bf16.msra.mxu0 0
        %2629 = vmatprep.subr.bf16.mxu0 0
        %2630 = vmatpush1.bf16.msra.mxu0 0
        %2631 = vmatprep.mubr.bf16.mxu0 0
        %2632 = vmatmul.mubr.bf16.gmra.mrb[0].mxu0 %v2597
        %v2633 = vpop.f32.mrb[0].mxu0
        %v2634 = vadd.f32 %v2594, %v2633
        %v2635 = vpop.f32.mrb[0].mxu0
        %v2636 = vadd.f32 %v2594, %v2635
        %v2637 = vpop.f32.mrb[0].mxu0
        %v2638 = vpop.f32.mrb[0].mxu0
        %2639 = vdwg.mxu0
        %2640 = vmatprep.subr.bf16.mxu0 0
        %2641 = vmatpush1.bf16.msra.mxu0 %v471
        %2642 = vmatprep.subr.bf16.mxu0 0
        %2643 = vmatpush1.bf16.msra.mxu0 0
        %2644 = vmatprep.subr.bf16.mxu0 0
        %2645 = vmatpush1.bf16.msra.mxu0 0
        %2646 = vmatprep.subr.bf16.mxu0 0
        %2647 = vmatpush1.bf16.msra.mxu0 0
        %2648 = vmatprep.subr.bf16.mxu0 0
        %2649 = vmatpush1.bf16.msra.mxu0 0
        %2650 = vmatprep.subr.bf16.mxu0 0
        %2651 = vmatpush1.bf16.msra.mxu0 0
        %2652 = vmatprep.subr.bf16.mxu0 0
        %2653 = vmatpush1.bf16.msra.mxu0 0
        %2654 = vmatprep.subr.bf16.mxu0 0
        %2655 = vmatpush1.bf16.msra.mxu0 0
        %2656 = vmatprep.subr.bf16.mxu0 0
        %2657 = vmatpush1.bf16.msra.mxu0 0
        %2658 = vmatprep.subr.bf16.mxu0 0
        %2659 = vmatpush1.bf16.msra.mxu0 0
        %2660 = vmatprep.subr.bf16.mxu0 0
        %2661 = vmatpush1.bf16.msra.mxu0 0
        %2662 = vmatprep.subr.bf16.mxu0 0
        %2663 = vmatpush1.bf16.msra.mxu0 0
        %2664 = vmatprep.subr.bf16.mxu0 0
        %2665 = vmatpush1.bf16.msra.mxu0 0
        %2666 = vmatprep.subr.bf16.mxu0 0
        %2667 = vmatpush1.bf16.msra.mxu0 0
        %2668 = vmatprep.subr.bf16.mxu0 0
        %2669 = vmatpush1.bf16.msra.mxu0 0
        %2670 = vmatprep.subr.bf16.mxu0 0
        %2671 = vmatpush1.bf16.msra.mxu0 0
        %2672 = vmatprep.mubr.bf16.mxu0 0
        %2673 = vmatmul.mubr.bf16.gmra.mrb[0].mxu0 %v2597
        %v2674 = vpop.f32.mrb[0].mxu0
        %v2675 = vadd.f32 %v2594, %v2674
        %v2676 = vpop.f32.mrb[0].mxu0
        %v2677 = vpop.f32.mrb[0].mxu0
        %v2678 = vpop.f32.mrb[0].mxu0
        %2679 = vdwg.mxu0
        %v2680 = vadd.f32 %v2586, %v2634
        %v2681 = vadd.f32 %v2587, %v2636
        %v2682 = vadd.f32 %v2588, %v2675
        %v2685 = vcombine.low %v2680, %v2681
        %2687 = vst [vmem:[%s379] sm:$0xff] %v2685
        %2688 = vst [vmem:[%s379 + $0x8] sm:$0xf] %v2682
        %s2689 = sand.u32 %s269, 1
        %s2690 = scalar_lea.sflag [#allocation3], %s2689
        %s2691 = sand.u32 %s269, 1
        %s2692 = smul.addr %s2691, 12
        %s2693 = scalar_lea.vmem [#allocation2], %s2692
        // Predicated region
        $region65: #{tpu_custom_call.1} parent=63 // pred_check
          %p2694 = pneg %p279
        $region66: #{tpu_custom_call.1} parent=63 // pred_check_branch
          %2696 = sbr.rel (%p2694) target = $region68
        $region67: #{tpu_custom_call.1} parent=63 // pred_region
          %s2698 = ssub.s32 192, 192
          %2699 = vsyncadd %s2690, %s2698
          %s2700 = smul.addr %s25, 3
          %s2701 = smul.addr %s2700, 64
          %s2702 = scalar_lea.hbm %s11, %s2701
          %s2704 = sshll.u32 %s2693, 4
          %s2705 = int_to_ptr.vmem [resolvable:$true] %s2704
          %2707 = dma.vmem_to_hbm [thread:$0]  %s2705, 192, %s2702, %s2690
        $region68: #{tpu_custom_call.1} parent=63 // pred_fallthru
          _
      $region64: #{tpu_custom_call.1} parent=5 // pred_fallthru
        _
      %p2708 = scmp.le.s32.totalorder 2, %s20
      // Predicated region
      $region69: #{tpu_custom_call.1} parent=5 // pred_check
        %p2709 = pneg %p2708
      $region70: #{tpu_custom_call.1} parent=5 // pred_check_branch
        %2711 = sbr.rel (%p2709) target = $region72
      $region71: #{tpu_custom_call.1} parent=5 // pred_region
        %s2712 = ssub.s32 %s20, 2
        // Predicated region
        $region73: #{tpu_custom_call.1} parent=71 // pred_check
          %p2713 = pneg %p285
        $region74: #{tpu_custom_call.1} parent=71 // pred_check_branch
          %2715 = sbr.rel (%p2713) target = $region76
        $region75: #{tpu_custom_call.1} parent=71 // pred_region
          %s2716 = sand.u32 %s270, 1
          %s2717 = scalar_lea.sflag [#allocation3], %s2716
          %s2718 = sand.u32 %s270, 1
          %s2719 = smul.addr %s2718, 12
          %s2720 = scalar_lea.vmem [#allocation2], %s2719
          %2721 = dma.done %s2717, 192
        $region76: #{tpu_custom_call.1} parent=71 // pred_fallthru
          _
      $region72: #{tpu_custom_call.1} parent=5 // pred_fallthru
        _
    $region6: #{tpu_custom_call.1} parent=1 // loop_footer
      %s24 = sadd.s32 1, %s20
    $region7: #{tpu_custom_call.1} parent=1 // loop_footer_branch
      %19 = sbr.rel target = $region3
    $region8: #{tpu_custom_call.1} parent=1 // loop_exit
      _
    %2722 = vsyncpa [#allocation3], 1
    %s2723 = scalar_lea.sflag [#allocation3], 1
    %2724 = vsyncpa %s2723, 1

</llo_original>
